<compile_context>
chip_gen: v7x
topology: tpu7x:2x2x1
jax: 0.10.0
libtpu: 0.0.40
codegen_flags: <defaults>
</compile_context>

<pallas_src>
import numpy as np

import jax
import jax.numpy as jnp
from jax.experimental import pallas as pl
from jax.experimental.pallas import tpu as pltpu


# ---------------------------------------------------------------------------
# Fused Pallas kernel: L x (conv3x3 + bias + ReLU), manifold mixup fused in.
# ---------------------------------------------------------------------------

def _fused_manifold_stack(x_pad, w_stacked, b_stacked, mix_layer, lam):
    """Run the whole conv stack in one pallas_call.

    x_pad     : (N, H, W, C)   bf16, channels zero-padded to C (multiple of 128)
    w_stacked : (L, 9, C, C)   bf16, tap-major (kh*3+kw) weight matrices (HWIO)
    b_stacked : (L, 1, C)      f32 biases
    mix_layer : (1,) int32     layer before which to blend; == L means "no mix"
    lam       : (1,) float32   mixup lambda
    returns   : (N, H, W, C)   f32
    """
    N, H, W, C = x_pad.shape
    L = w_stacked.shape[0]
    M = N * H * W

    def kernel(mix_ref, lam_ref, x_ref, w_ref, b_ref, o_ref, act_ref):
        l = pl.program_id(0)

        # --- first step: load the input into the H-halo activation scratch ----
        @pl.when(l == 0)
        def _init():
            act_ref[...] = jnp.zeros_like(act_ref)
            act_ref[:, 1:H + 1, :, :] = x_ref[...].astype(jnp.float32)

        # --- fused manifold mixup (applied before layer `mix_layer`) ----------
        @pl.when(l == mix_ref[0])
        def _mix():
            lam_v = lam_ref[0]
            cur = act_ref[:, 1:H + 1, :, :]
            # roll-by-1 along the batch (leading/major) axis == x[index]
            prev = jnp.concatenate([cur[N - 1:N], cur[:N - 1]], axis=0)
            act_ref[:, 1:H + 1, :, :] = lam_v * cur + (1.0 - lam_v) * prev

        # --- conv3x3 ('same') as 9 accumulated MXU matmuls --------------------
        a = act_ref[...]                                    # (N, H+2, W, C) f32
        zcol = jnp.zeros((N, H + 2, 1, C), jnp.float32)
        left = jnp.concatenate([zcol, a[:, :, :W - 1, :]], axis=2)   # in[.., x-1]
        right = jnp.concatenate([a[:, :, 1:, :], zcol], axis=2)      # in[.., x+1]
        shifts = (left.astype(jnp.bfloat16),                # kw = 0
                  a.astype(jnp.bfloat16),                   # kw = 1
                  right.astype(jnp.bfloat16))               # kw = 2

        acc = jnp.zeros((M, C), jnp.float32)
        for kh in range(3):
            for kw in range(3):
                patch = shifts[kw][:, kh:kh + H, :, :].reshape(M, C)
                acc = acc + jnp.dot(patch, w_ref[0, kh * 3 + kw],
                                    preferred_element_type=jnp.float32)
        acc = jnp.maximum(acc + b_ref[0], 0.0)              # bias + ReLU in f32

        # overwrite only the interior rows; halo rows stay zero for the next layer
        act_ref[:, 1:H + 1, :, :] = acc.reshape(N, H, W, C)

        @pl.when(l == pl.num_programs(0) - 1)
        def _write():
            o_ref[...] = acc.reshape(N, H, W, C).astype(o_ref.dtype)

    grid_spec = pltpu.PrefetchScalarGridSpec(
        num_scalar_prefetch=0,
        grid=(L,),
        in_specs=[
            pl.BlockSpec(memory_space=pltpu.MemorySpace.SMEM),          # mix_layer
            pl.BlockSpec(memory_space=pltpu.MemorySpace.SMEM),          # lam
            pl.BlockSpec((N, H, W, C), lambda l: (0, 0, 0, 0)),         # x (resident)
            pl.BlockSpec((1, 9, C, C), lambda l: (l, 0, 0, 0)),         # w (streamed)
            pl.BlockSpec((1, 1, C), lambda l: (l, 0, 0)),               # b (streamed)
        ],
        out_specs=pl.BlockSpec((N, H, W, C), lambda l: (0, 0, 0, 0)),
        scratch_shapes=[pltpu.VMEM((N, H + 2, W, C), jnp.float32)],      # activation
    )
    return pl.pallas_call(
        kernel,
        out_shape=jax.ShapeDtypeStruct((N, H, W, C), jnp.float32),
        grid_spec=grid_spec,
        compiler_params=pltpu.CompilerParams(
            # layers are sequential (activation carried across grid steps)
            dimension_semantics=("arbitrary",),
        ),
    )(mix_layer, lam, x_pad, w_stacked, b_stacked)


# ---------------------------------------------------------------------------
# Module analogs
# ---------------------------------------------------------------------------

class RandomMixPallas:
    """JAX analog of ABCRandomMix.

    The reference augmentation receives the intermediate batch and returns
    (mixed_batch, lmbd, index).  In the fused Pallas design the intermediate
    activation lives in VMEM inside the kernel, so the augmentation is
    restructured as a sampler: it draws (gate, lambda) on device and the blend
    lam*x + (1-lam)*x[roll(1)] itself is fused into the conv-stack kernel.
    """

    def __init__(self, p: float = 0.5, alpha: float = 1.0):
        assert alpha > 0, "Alpha param can't be zero."
        self.p = p
        self.alpha = alpha

    def sample(self, key, batch_size: int):
        k_lam, k_gate = jax.random.split(key)
        # lambda ~ Dirichlet([alpha, alpha])[0]  (== Beta(alpha, alpha))
        lam = jax.random.dirichlet(
            k_lam, jnp.asarray([self.alpha, self.alpha], jnp.float32))[0]
        apply_mix = jax.random.uniform(k_gate, ()) < self.p
        # TODO(synk): ABCRandomMix.mix_data raises NotImplementedError in the
        # reference; the fused kernel implements the standard manifold-mixup blend.
        lmbd = jnp.full((batch_size, 1), 1.0, jnp.float32) * jnp.where(apply_mix, lam, 1.0)
        index = jnp.roll(jnp.arange(batch_size, dtype=jnp.int32), 1)
        return apply_mix, lam.astype(jnp.float32), lmbd, index


class SequentialManifoldMixPallas:
    """JAX/Pallas analog of SequentialManifoldMix over a stack of conv3x3+ReLU."""

    def __init__(self, params, augmentation, seed: int = 0):
        params = [(jnp.asarray(w, jnp.float32), jnp.asarray(b, jnp.float32))
                  for (w, b) in params]
        assert len(params) >= 1
        for i in range(len(params) - 1):
            assert params[i][0].shape[3] == params[i + 1][0].shape[2], "channel chain mismatch"
        self.params = params
        self.augmentation = augmentation
        self.number_layer = len(params)
        self.training = True
        self._key = jax.random.PRNGKey(seed)

        cins = [w.shape[2] for w, _ in params]
        couts = [w.shape[3] for w, _ in params]
        c_pad = ((max(cins + couts) + 127) // 128) * 128   # lane-dense channels
        self.c_pad = c_pad
        self.in_channels = cins[0]
        self.out_channels = couts[-1]

        # pack weights: zero-pad channels, tap-major (9, C, C) per layer, bf16 for MXU
        w_blocks, b_blocks = [], []
        for w, b in params:
            assert w.shape[:2] == (3, 3), "only 3x3 convs supported"
            ci, co = w.shape[2], w.shape[3]
            wp = jnp.zeros((3, 3, c_pad, c_pad), jnp.float32).at[:, :, :ci, :co].set(w)
            bp = jnp.zeros((c_pad,), jnp.float32).at[:co].set(b)
            w_blocks.append(wp.reshape(9, c_pad, c_pad))
            b_blocks.append(bp.reshape(1, c_pad))
        w_stacked = jnp.stack(w_blocks).astype(jnp.bfloat16)   # (L, 9, C, C)
        b_stacked = jnp.stack(b_blocks)                        # (L, 1, C) f32

        L = self.number_layer
        in_c = self.in_channels
        out_c = self.out_channels
        aug = augmentation

        def _pad_in(x_nhwc):
            return jnp.pad(
                x_nhwc, ((0, 0), (0, 0), (0, 0), (0, c_pad - in_c))
            ).astype(jnp.bfloat16)

        def _run(x_nhwc, mix_layer, lam):
            out_pad = _fused_manifold_stack(
                _pad_in(x_nhwc), w_stacked, b_stacked,
                mix_layer.reshape(1).astype(jnp.int32),
                lam.reshape(1).astype(jnp.float32))
            return out_pad[..., :out_c].astype(x_nhwc.dtype)

        def _train(x_nhwc, key):
            k_layer, k_aug = jax.random.split(key)
            # random.randint(0, L-1) analog, drawn on device (no host sync)
            manifold_id = jax.random.randint(k_layer, (), 0, L, dtype=jnp.int32)
            apply_mix, lam, lmbd, index = aug.sample(k_aug, x_nhwc.shape[0])
            mix_layer = jnp.where(apply_mix, manifold_id, jnp.int32(L))  # L = no mix
            return _run(x_nhwc, mix_layer, lam), lmbd, index

        def _eval(x_nhwc):
            return _run(x_nhwc,
                        jnp.asarray(L, jnp.int32),        # sentinel: never mix
                        jnp.asarray(1.0, jnp.float32))

        self._train_fn = jax.jit(_train)
        self._eval_fn = jax.jit(_eval)
        self._forced_fn = jax.jit(_run)

    def forward(self, x_nchw):
        if x_nchw.ndim != 4:
            raise ValueError(f"Batch ndim should be 4. Got {x_nchw.ndim}")
        if not jnp.issubdtype(x_nchw.dtype, jnp.floating):
            raise TypeError(f"Batch dtype should be a float tensor. Got {x_nchw.dtype}.")
        # TODO(synk): accept NHWC inputs directly to skip these two transpose passes.
        x_nhwc = jnp.transpose(x_nchw, (0, 2, 3, 1))
        if self.training:
            self._key, sub = jax.random.split(self._key)
            out_nhwc, lmbd, index = self._train_fn(x_nhwc, sub)
            return jnp.transpose(out_nhwc, (0, 3, 1, 2)), lmbd, index
        out_nhwc = self._eval_fn(x_nhwc)
        return jnp.transpose(out_nhwc, (0, 3, 1, 2))

    __call__ = forward

    def forward_forced_mix(self, x_nchw, manifold_id, lam):
        """Deterministically apply the fused mixup before layer `manifold_id`."""
        x_nhwc = jnp.transpose(x_nchw, (0, 2, 3, 1))
        out_nhwc = self._forced_fn(x_nhwc,
                                   jnp.asarray(manifold_id, jnp.int32),
                                   jnp.asarray(lam, jnp.float32))
        return jnp.transpose(out_nhwc, (0, 3, 1, 2))


def init_conv_params(key, cin, cout):
    kw, kb = jax.random.split(key)
    fan_in = 9 * cin
    w = jax.random.normal(kw, (3, 3, cin, cout), jnp.float32) * (2.0 / fan_in) ** 0.5
    b = jax.random.normal(kb, (cout,), jnp.float32) * 0.01
    return w, b


# ---------------------------------------------------------------------------
# Pure-JAX reference (for numerical checks; mirrors the kernel's bf16 rounding)
# ---------------------------------------------------------------------------

def _ref_forward_nhwc(x_nhwc, params, mix_layer=None, lam=None):
    h = x_nhwc.astype(jnp.bfloat16).astype(jnp.float32)
    N, H, W, _ = x_nhwc.shape
    for i, (w, b) in enumerate(params):
        if mix_layer is not None and i == mix_layer:
            prev = jnp.concatenate([h[N - 1:N], h[:N - 1]], axis=0)
            h = lam * h + (1.0 - lam) * prev
        wq = jnp.asarray(w, jnp.float32).astype(jnp.bfloat16).astype(jnp.float32)
        hp = jnp.pad(h, ((0, 0), (1, 1), (1, 1), (0, 0)))
        acc = jnp.zeros((N, H, W, w.shape[-1]), jnp.float32) + jnp.asarray(b, jnp.float32)
        for kh in range(3):
            for kw in range(3):
                acc = acc + jnp.einsum(
                    "nhwc,cd->nhwd", hp[:, kh:kh + H, kw:kw + W, :], wq[kh, kw],
                    precision=jax.lax.Precision.HIGHEST)
        h = jnp.maximum(acc, 0.0)
    return h


if __name__ == "__main__":
    key = jax.random.PRNGKey(0)
    k_x, k_p0, k_p1, k_p2 = jax.random.split(key, 4)

    # Small 4-D (NCHW) input, as required by the augmentation's ndim == 4 check.
    N, C, H, W = 2, 4, 16, 16
    x = jax.random.normal(k_x, (N, C, H, W), jnp.float32)

    channels = [C, 8, 8, 4]
    params = [init_conv_params(k, channels[i], channels[i + 1])
              for i, k in enumerate((k_p0, k_p1, k_p2))]

    model = SequentialManifoldMixPallas(params, RandomMixPallas(p=0.5, alpha=1.0), seed=0)
    x_nhwc = jnp.transpose(x, (0, 2, 3, 1))

    # Training-mode forward (manifold mixup at a randomly chosen layer, on-device RNG).
    model.training = True
    out, lmbd, index = model.forward(x)
    jax.block_until_ready((out, lmbd, index))
    assert out.shape == (N, channels[-1], H, W)
    assert lmbd.shape == (N, 1) and index.shape == (N,)

    # Eval-mode forward + numerical check against the pure-JAX reference.
    model.training = False
    out_eval = model.forward(x)
    jax.block_until_ready(out_eval)
    ref_eval = jnp.transpose(_ref_forward_nhwc(x_nhwc, params), (0, 3, 1, 2))
    np.testing.assert_allclose(np.asarray(out_eval), np.asarray(ref_eval),
                               rtol=0.1, atol=0.1)

    # Deterministically exercise the fused mixup branch and verify it.
    out_mix = model.forward_forced_mix(x, manifold_id=1, lam=0.3)
    jax.block_until_ready(out_mix)
    ref_mix = jnp.transpose(_ref_forward_nhwc(x_nhwc, params, mix_layer=1, lam=0.3),
                            (0, 3, 1, 2))
    np.testing.assert_allclose(np.asarray(out_mix), np.asarray(ref_mix),
                               rtol=0.1, atol=0.1)

    print("KERNEL_OK")
</pallas_src>

<mosaic_0001>
module attributes {stable_mosaic.version = 11 : i64} {
  func.func @kernel(%arg0: i32, %arg1: memref<1xi32, #tpu.memory_space<smem>>, %arg2: memref<1xf32, #tpu.memory_space<smem>>, %arg3: memref<2x16x16x128xbf16, #tpu.memory_space<vmem>>, %arg4: memref<1x9x128x128xbf16, #tpu.memory_space<vmem>>, %arg5: memref<1x1x128xf32, #tpu.memory_space<vmem>>, %arg6: memref<2x16x16x128xf32, #tpu.memory_space<vmem>>, %arg7: memref<2x18x16x128xf32, #tpu.memory_space<vmem>>) attributes {dimension_semantics = [#tpu.dimension_semantics<arbitrary>], iteration_bounds = array<i64: 3>, scalar_prefetch = 0 : i64, scratch_operands = 1 : i64, tpu.core_type = #tpu.core_type<tc>, window_params = [{transform_indices = @transform_0, window_bounds = array<i64: 1>}, {transform_indices = @transform_1, window_bounds = array<i64: 1>}, {pipeline_mode = #tpu.pipeline_mode<synchronous>, transform_indices = @transform_2, window_bounds = array<i64: 2, 16, 16, 128>}, {transform_indices = @transform_3, window_bounds = array<i64: 1, 9, 128, 128>}, {transform_indices = @transform_4, window_bounds = array<i64: 1, 1, 128>}, {pipeline_mode = #tpu.pipeline_mode<synchronous>, transform_indices = @transform_5, window_bounds = array<i64: 2, 16, 16, 128>}]} {
    %c0_i32 = arith.constant 0 : i32
    %0 = arith.cmpi eq, %arg0, %c0_i32 : i32
    %1 = arith.extui %0 : i1 to i32
    %c0_i32_0 = arith.constant 0 : i32
    %2 = arith.cmpi ne, %1, %c0_i32_0 : i32
    scf.if %2 {
      %cst_53 = arith.constant 0.000000e+00 : f32
      %82 = vector.broadcast %cst_53 : f32 to vector<2x18x16x128xf32>
      %c0_54 = arith.constant 0 : index
      %c0_55 = arith.constant 0 : index
      %c0_56 = arith.constant 0 : index
      %c0_57 = arith.constant 0 : index
      %83 = vector.load %arg7[%c0_54, %c0_55, %c0_56, %c0_57] : memref<2x18x16x128xf32, #tpu.memory_space<vmem>>, vector<2x18x16x128xf32>
      tpu.vector_store %arg7[%c0_54, %c0_55, %c0_56, %c0_57], %82 {strides = array<i32>} : memref<2x18x16x128xf32, #tpu.memory_space<vmem>>, vector<2x18x16x128xf32>,
      %c0_58 = arith.constant 0 : index
      %c0_59 = arith.constant 0 : index
      %c0_60 = arith.constant 0 : index
      %c0_61 = arith.constant 0 : index
      %84 = vector.load %arg3[%c0_58, %c0_59, %c0_60, %c0_61] : memref<2x16x16x128xbf16, #tpu.memory_space<vmem>>, vector<2x16x16x128xbf16>
      %85 = arith.extf %84 : vector<2x16x16x128xbf16> to vector<2x16x16x128xf32>
      %c0_62 = arith.constant 0 : index
      %c1_63 = arith.constant 1 : index
      %c0_64 = arith.constant 0 : index
      %c0_65 = arith.constant 0 : index
      %86 = vector.load %arg7[%c0_62, %c1_63, %c0_64, %c0_65] : memref<2x18x16x128xf32, #tpu.memory_space<vmem>>, vector<2x16x16x128xf32>
      tpu.vector_store %arg7[%c0_62, %c1_63, %c0_64, %c0_65], %85 {strides = array<i32>} : memref<2x18x16x128xf32, #tpu.memory_space<vmem>>, vector<2x16x16x128xf32>,
    } else {
    }
    %c0 = arith.constant 0 : index
    %3 = memref.load %arg1[%c0] : memref<1xi32, #tpu.memory_space<smem>>
    %4 = arith.cmpi eq, %arg0, %3 : i32
    %5 = arith.extui %4 : i1 to i32
    %c0_i32_1 = arith.constant 0 : i32
    %6 = arith.cmpi ne, %5, %c0_i32_1 : i32
    scf.if %6 {
      %c0_53 = arith.constant 0 : index
      %82 = memref.load %arg2[%c0_53] : memref<1xf32, #tpu.memory_space<smem>>
      %c0_54 = arith.constant 0 : index
      %c1_55 = arith.constant 1 : index
      %c0_56 = arith.constant 0 : index
      %c0_57 = arith.constant 0 : index
      %83 = vector.load %arg7[%c0_54, %c1_55, %c0_56, %c0_57] : memref<2x18x16x128xf32, #tpu.memory_space<vmem>>, vector<2x16x16x128xf32>
      %84 = vector.extract_strided_slice %83 {offsets = [1, 0, 0, 0], sizes = [1, 16, 16, 128], strides = [1, 1, 1, 1]} : vector<2x16x16x128xf32> to vector<1x16x16x128xf32>
      %85 = vector.extract_strided_slice %83 {offsets = [0, 0, 0, 0], sizes = [1, 16, 16, 128], strides = [1, 1, 1, 1]} : vector<2x16x16x128xf32> to vector<1x16x16x128xf32>
      %86 = tpu.concatenate %84, %85 in 0 : vector<1x16x16x128xf32>, vector<1x16x16x128xf32> -> vector<2x16x16x128xf32>
      %87 = vector.broadcast %82 : f32 to vector<2x16x16x128xf32>
      %88 = arith.mulf %87, %83 : vector<2x16x16x128xf32>
      %cst_58 = arith.constant 1.000000e+00 : f32
      %89 = arith.subf %cst_58, %82 : f32
      %90 = vector.broadcast %89 : f32 to vector<2x16x16x128xf32>
      %91 = arith.mulf %90, %86 : vector<2x16x16x128xf32>
      %92 = arith.addf %88, %91 : vector<2x16x16x128xf32>
      %c0_59 = arith.constant 0 : index
      %c1_60 = arith.constant 1 : index
      %c0_61 = arith.constant 0 : index
      %c0_62 = arith.constant 0 : index
      %93 = vector.load %arg7[%c0_59, %c1_60, %c0_61, %c0_62] : memref<2x18x16x128xf32, #tpu.memory_space<vmem>>, vector<2x16x16x128xf32>
      tpu.vector_store %arg7[%c0_59, %c1_60, %c0_61, %c0_62], %92 {strides = array<i32>} : memref<2x18x16x128xf32, #tpu.memory_space<vmem>>, vector<2x16x16x128xf32>,
    } else {
    }
    %c0_2 = arith.constant 0 : index
    %c0_3 = arith.constant 0 : index
    %c0_4 = arith.constant 0 : index
    %c0_5 = arith.constant 0 : index
    %7 = vector.load %arg7[%c0_2, %c0_3, %c0_4, %c0_5] : memref<2x18x16x128xf32, #tpu.memory_space<vmem>>, vector<2x18x16x128xf32>
    %cst = arith.constant 0.000000e+00 : f32
    %8 = vector.broadcast %cst : f32 to vector<2x18x1x128xf32>
    %9 = vector.extract_strided_slice %7 {offsets = [0, 0, 0, 0], sizes = [2, 18, 15, 128], strides = [1, 1, 1, 1]} : vector<2x18x16x128xf32> to vector<2x18x15x128xf32>
    %10 = tpu.concatenate %8, %9 in 2 : vector<2x18x1x128xf32>, vector<2x18x15x128xf32> -> vector<2x18x16x128xf32>
    %11 = vector.extract_strided_slice %7 {offsets = [0, 0, 1, 0], sizes = [2, 18, 15, 128], strides = [1, 1, 1, 1]} : vector<2x18x16x128xf32> to vector<2x18x15x128xf32>
    %12 = tpu.concatenate %11, %8 in 2 : vector<2x18x15x128xf32>, vector<2x18x1x128xf32> -> vector<2x18x16x128xf32>
    %13 = arith.truncf %10 : vector<2x18x16x128xf32> to vector<2x18x16x128xbf16>
    %14 = arith.truncf %7 : vector<2x18x16x128xf32> to vector<2x18x16x128xbf16>
    %15 = arith.truncf %12 : vector<2x18x16x128xf32> to vector<2x18x16x128xbf16>
    %cst_6 = arith.constant 0.000000e+00 : f32
    %16 = vector.broadcast %cst_6 : f32 to vector<512x128xf32>
    %17 = vector.extract_strided_slice %13 {offsets = [0, 0, 0, 0], sizes = [2, 16, 16, 128], strides = [1, 1, 1, 1]} : vector<2x18x16x128xbf16> to vector<2x16x16x128xbf16>
    %18 = vector.shape_cast %17 : vector<2x16x16x128xbf16> to vector<512x128xbf16>
    %c0_7 = arith.constant 0 : index
    %c0_8 = arith.constant 0 : index
    %c0_9 = arith.constant 0 : index
    %c0_10 = arith.constant 0 : index
    %19 = vector.load %arg4[%c0_7, %c0_8, %c0_9, %c0_10] : memref<1x9x128x128xbf16, #tpu.memory_space<vmem>>, vector<1x1x128x128xbf16>
    %20 = vector.shape_cast %19 : vector<1x1x128x128xbf16> to vector<128x128xbf16>
    %cst_11 = arith.constant dense<0.000000e+00> : vector<512x128xf32>
    %21 = tpu.matmul %18, %20, %cst_11 {dimension_numbers = #tpu.dot_dimension_numbers<[1], [0], [0], [1], [0, 0, 1, 1], [], []>} : vector<512x128xbf16>, vector<128x128xbf16>, vector<512x128xf32> -> vector<512x128xf32>
    %22 = arith.addf %16, %21 : vector<512x128xf32>
    %23 = vector.extract_strided_slice %14 {offsets = [0, 0, 0, 0], sizes = [2, 16, 16, 128], strides = [1, 1, 1, 1]} : vector<2x18x16x128xbf16> to vector<2x16x16x128xbf16>
    %24 = vector.shape_cast %23 : vector<2x16x16x128xbf16> to vector<512x128xbf16>
    %c0_12 = arith.constant 0 : index
    %c1 = arith.constant 1 : index
    %c0_13 = arith.constant 0 : index
    %c0_14 = arith.constant 0 : index
    %25 = vector.load %arg4[%c0_12, %c1, %c0_13, %c0_14] : memref<1x9x128x128xbf16, #tpu.memory_space<vmem>>, vector<1x1x128x128xbf16>
    %26 = vector.shape_cast %25 : vector<1x1x128x128xbf16> to vector<128x128xbf16>
    %cst_15 = arith.constant dense<0.000000e+00> : vector<512x128xf32>
    %27 = tpu.matmul %24, %26, %cst_15 {dimension_numbers = #tpu.dot_dimension_numbers<[1], [0], [0], [1], [0, 0, 1, 1], [], []>} : vector<512x128xbf16>, vector<128x128xbf16>, vector<512x128xf32> -> vector<512x128xf32>
    %28 = arith.addf %22, %27 : vector<512x128xf32>
    %29 = vector.extract_strided_slice %15 {offsets = [0, 0, 0, 0], sizes = [2, 16, 16, 128], strides = [1, 1, 1, 1]} : vector<2x18x16x128xbf16> to vector<2x16x16x128xbf16>
    %30 = vector.shape_cast %29 : vector<2x16x16x128xbf16> to vector<512x128xbf16>
    %c0_16 = arith.constant 0 : index
    %c2 = arith.constant 2 : index
    %c0_17 = arith.constant 0 : index
    %c0_18 = arith.constant 0 : index
    %31 = vector.load %arg4[%c0_16, %c2, %c0_17, %c0_18] : memref<1x9x128x128xbf16, #tpu.memory_space<vmem>>, vector<1x1x128x128xbf16>
    %32 = vector.shape_cast %31 : vector<1x1x128x128xbf16> to vector<128x128xbf16>
    %cst_19 = arith.constant dense<0.000000e+00> : vector<512x128xf32>
    %33 = tpu.matmul %30, %32, %cst_19 {dimension_numbers = #tpu.dot_dimension_numbers<[1], [0], [0], [1], [0, 0, 1, 1], [], []>} : vector<512x128xbf16>, vector<128x128xbf16>, vector<512x128xf32> -> vector<512x128xf32>
    %34 = arith.addf %28, %33 : vector<512x128xf32>
    %35 = vector.extract_strided_slice %13 {offsets = [0, 1, 0, 0], sizes = [2, 16, 16, 128], strides = [1, 1, 1, 1]} : vector<2x18x16x128xbf16> to vector<2x16x16x128xbf16>
    %36 = vector.shape_cast %35 : vector<2x16x16x128xbf16> to vector<512x128xbf16>
    %c0_20 = arith.constant 0 : index
    %c3 = arith.constant 3 : index
    %c0_21 = arith.constant 0 : index
    %c0_22 = arith.constant 0 : index
    %37 = vector.load %arg4[%c0_20, %c3, %c0_21, %c0_22] : memref<1x9x128x128xbf16, #tpu.memory_space<vmem>>, vector<1x1x128x128xbf16>
    %38 = vector.shape_cast %37 : vector<1x1x128x128xbf16> to vector<128x128xbf16>
    %cst_23 = arith.constant dense<0.000000e+00> : vector<512x128xf32>
    %39 = tpu.matmul %36, %38, %cst_23 {dimension_numbers = #tpu.dot_dimension_numbers<[1], [0], [0], [1], [0, 0, 1, 1], [], []>} : vector<512x128xbf16>, vector<128x128xbf16>, vector<512x128xf32> -> vector<512x128xf32>
    %40 = arith.addf %34, %39 : vector<512x128xf32>
    %41 = vector.extract_strided_slice %14 {offsets = [0, 1, 0, 0], sizes = [2, 16, 16, 128], strides = [1, 1, 1, 1]} : vector<2x18x16x128xbf16> to vector<2x16x16x128xbf16>
    %42 = vector.shape_cast %41 : vector<2x16x16x128xbf16> to vector<512x128xbf16>
    %c0_24 = arith.constant 0 : index
    %c4 = arith.constant 4 : index
    %c0_25 = arith.constant 0 : index
    %c0_26 = arith.constant 0 : index
    %43 = vector.load %arg4[%c0_24, %c4, %c0_25, %c0_26] : memref<1x9x128x128xbf16, #tpu.memory_space<vmem>>, vector<1x1x128x128xbf16>
    %44 = vector.shape_cast %43 : vector<1x1x128x128xbf16> to vector<128x128xbf16>
    %cst_27 = arith.constant dense<0.000000e+00> : vector<512x128xf32>
    %45 = tpu.matmul %42, %44, %cst_27 {dimension_numbers = #tpu.dot_dimension_numbers<[1], [0], [0], [1], [0, 0, 1, 1], [], []>} : vector<512x128xbf16>, vector<128x128xbf16>, vector<512x128xf32> -> vector<512x128xf32>
    %46 = arith.addf %40, %45 : vector<512x128xf32>
    %47 = vector.extract_strided_slice %15 {offsets = [0, 1, 0, 0], sizes = [2, 16, 16, 128], strides = [1, 1, 1, 1]} : vector<2x18x16x128xbf16> to vector<2x16x16x128xbf16>
    %48 = vector.shape_cast %47 : vector<2x16x16x128xbf16> to vector<512x128xbf16>
    %c0_28 = arith.constant 0 : index
    %c5 = arith.constant 5 : index
    %c0_29 = arith.constant 0 : index
    %c0_30 = arith.constant 0 : index
    %49 = vector.load %arg4[%c0_28, %c5, %c0_29, %c0_30] : memref<1x9x128x128xbf16, #tpu.memory_space<vmem>>, vector<1x1x128x128xbf16>
    %50 = vector.shape_cast %49 : vector<1x1x128x128xbf16> to vector<128x128xbf16>
    %cst_31 = arith.constant dense<0.000000e+00> : vector<512x128xf32>
    %51 = tpu.matmul %48, %50, %cst_31 {dimension_numbers = #tpu.dot_dimension_numbers<[1], [0], [0], [1], [0, 0, 1, 1], [], []>} : vector<512x128xbf16>, vector<128x128xbf16>, vector<512x128xf32> -> vector<512x128xf32>
    %52 = arith.addf %46, %51 : vector<512x128xf32>
    %53 = vector.extract_strided_slice %13 {offsets = [0, 2, 0, 0], sizes = [2, 16, 16, 128], strides = [1, 1, 1, 1]} : vector<2x18x16x128xbf16> to vector<2x16x16x128xbf16>
    %54 = vector.shape_cast %53 : vector<2x16x16x128xbf16> to vector<512x128xbf16>
    %c0_32 = arith.constant 0 : index
    %c6 = arith.constant 6 : index
    %c0_33 = arith.constant 0 : index
    %c0_34 = arith.constant 0 : index
    %55 = vector.load %arg4[%c0_32, %c6, %c0_33, %c0_34] : memref<1x9x128x128xbf16, #tpu.memory_space<vmem>>, vector<1x1x128x128xbf16>
    %56 = vector.shape_cast %55 : vector<1x1x128x128xbf16> to vector<128x128xbf16>
    %cst_35 = arith.constant dense<0.000000e+00> : vector<512x128xf32>
    %57 = tpu.matmul %54, %56, %cst_35 {dimension_numbers = #tpu.dot_dimension_numbers<[1], [0], [0], [1], [0, 0, 1, 1], [], []>} : vector<512x128xbf16>, vector<128x128xbf16>, vector<512x128xf32> -> vector<512x128xf32>
    %58 = arith.addf %52, %57 : vector<512x128xf32>
    %59 = vector.extract_strided_slice %14 {offsets = [0, 2, 0, 0], sizes = [2, 16, 16, 128], strides = [1, 1, 1, 1]} : vector<2x18x16x128xbf16> to vector<2x16x16x128xbf16>
    %60 = vector.shape_cast %59 : vector<2x16x16x128xbf16> to vector<512x128xbf16>
    %c0_36 = arith.constant 0 : index
    %c7 = arith.constant 7 : index
    %c0_37 = arith.constant 0 : index
    %c0_38 = arith.constant 0 : index
    %61 = vector.load %arg4[%c0_36, %c7, %c0_37, %c0_38] : memref<1x9x128x128xbf16, #tpu.memory_space<vmem>>, vector<1x1x128x128xbf16>
    %62 = vector.shape_cast %61 : vector<1x1x128x128xbf16> to vector<128x128xbf16>
    %cst_39 = arith.constant dense<0.000000e+00> : vector<512x128xf32>
    %63 = tpu.matmul %60, %62, %cst_39 {dimension_numbers = #tpu.dot_dimension_numbers<[1], [0], [0], [1], [0, 0, 1, 1], [], []>} : vector<512x128xbf16>, vector<128x128xbf16>, vector<512x128xf32> -> vector<512x128xf32>
    %64 = arith.addf %58, %63 : vector<512x128xf32>
    %65 = vector.extract_strided_slice %15 {offsets = [0, 2, 0, 0], sizes = [2, 16, 16, 128], strides = [1, 1, 1, 1]} : vector<2x18x16x128xbf16> to vector<2x16x16x128xbf16>
    %66 = vector.shape_cast %65 : vector<2x16x16x128xbf16> to vector<512x128xbf16>
    %c0_40 = arith.constant 0 : index
    %c8 = arith.constant 8 : index
    %c0_41 = arith.constant 0 : index
    %c0_42 = arith.constant 0 : index
    %67 = vector.load %arg4[%c0_40, %c8, %c0_41, %c0_42] : memref<1x9x128x128xbf16, #tpu.memory_space<vmem>>, vector<1x1x128x128xbf16>
    %68 = vector.shape_cast %67 : vector<1x1x128x128xbf16> to vector<128x128xbf16>
    %cst_43 = arith.constant dense<0.000000e+00> : vector<512x128xf32>
    %69 = tpu.matmul %66, %68, %cst_43 {dimension_numbers = #tpu.dot_dimension_numbers<[1], [0], [0], [1], [0, 0, 1, 1], [], []>} : vector<512x128xbf16>, vector<128x128xbf16>, vector<512x128xf32> -> vector<512x128xf32>
    %70 = arith.addf %64, %69 : vector<512x128xf32>
    %c0_44 = arith.constant 0 : index
    %c0_45 = arith.constant 0 : index
    %c0_46 = arith.constant 0 : index
    %71 = vector.load %arg5[%c0_44, %c0_45, %c0_46] : memref<1x1x128xf32, #tpu.memory_space<vmem>>, vector<1x1x128xf32>
    %72 = vector.shape_cast %71 : vector<1x1x128xf32> to vector<1x128xf32>
    %73 = vector.broadcast %72 : vector<1x128xf32> to vector<512x128xf32>
    %74 = arith.addf %70, %73 : vector<512x128xf32>
    %cst_47 = arith.constant 0.000000e+00 : f32
    %75 = vector.broadcast %cst_47 : f32 to vector<512x128xf32>
    %76 = arith.maximumf %74, %75 : vector<512x128xf32>
    %77 = vector.shape_cast %76 : vector<512x128xf32> to vector<2x16x16x128xf32>
    %c0_48 = arith.constant 0 : index
    %c1_49 = arith.constant 1 : index
    %c0_50 = arith.constant 0 : index
    %c0_51 = arith.constant 0 : index
    %78 = vector.load %arg7[%c0_48, %c1_49, %c0_50, %c0_51] : memref<2x18x16x128xf32, #tpu.memory_space<vmem>>, vector<2x16x16x128xf32>
    tpu.vector_store %arg7[%c0_48, %c1_49, %c0_50, %c0_51], %77 {strides = array<i32>} : memref<2x18x16x128xf32, #tpu.memory_space<vmem>>, vector<2x16x16x128xf32>,
    %c2_i32 = arith.constant 2 : i32
    %79 = arith.cmpi eq, %arg0, %c2_i32 : i32
    %80 = arith.extui %79 : i1 to i32
    %c0_i32_52 = arith.constant 0 : i32
    %81 = arith.cmpi ne, %80, %c0_i32_52 : i32
    scf.if %81 {
      %82 = vector.shape_cast %76 : vector<512x128xf32> to vector<2x16x16x128xf32>
      %c0_53 = arith.constant 0 : index
      %c0_54 = arith.constant 0 : index
      %c0_55 = arith.constant 0 : index
      %c0_56 = arith.constant 0 : index
      %83 = vector.load %arg6[%c0_53, %c0_54, %c0_55, %c0_56] : memref<2x16x16x128xf32, #tpu.memory_space<vmem>>, vector<2x16x16x128xf32>
      tpu.vector_store %arg6[%c0_53, %c0_54, %c0_55, %c0_56], %82 {strides = array<i32>} : memref<2x16x16x128xf32, #tpu.memory_space<vmem>>, vector<2x16x16x128xf32>,
    } else {
    }
    return
  }
  func.func @transform_0(%arg0: i32) -> i32 {
    %c0_i32 = arith.constant 0 : i32
    %c0_i32_0 = arith.constant 0 : i32
    return %c0_i32 : i32
  }
  func.func @transform_1(%arg0: i32) -> i32 {
    %c0_i32 = arith.constant 0 : i32
    %c0_i32_0 = arith.constant 0 : i32
    return %c0_i32 : i32
  }
  func.func @transform_2(%arg0: i32) -> (i32, i32, i32, i32) {
    %c0_i32 = arith.constant 0 : i32
    %c0_i32_0 = arith.constant 0 : i32
    %c0_i32_1 = arith.constant 0 : i32
    %c0_i32_2 = arith.constant 0 : i32
    %c0_i32_3 = arith.constant 0 : i32
    return %c0_i32, %c0_i32_0, %c0_i32_1, %c0_i32_2 : i32, i32, i32, i32
  }
  func.func @transform_3(%arg0: i32) -> (i32, i32, i32, i32) {
    %c0_i32 = arith.constant 0 : i32
    %c0_i32_0 = arith.constant 0 : i32
    %c0_i32_1 = arith.constant 0 : i32
    %c0_i32_2 = arith.constant 0 : i32
    return %arg0, %c0_i32, %c0_i32_0, %c0_i32_1 : i32, i32, i32, i32
  }
  func.func @transform_4(%arg0: i32) -> (i32, i32, i32) {
    %c0_i32 = arith.constant 0 : i32
    %c0_i32_0 = arith.constant 0 : i32
    %c0_i32_1 = arith.constant 0 : i32
    return %arg0, %c0_i32, %c0_i32_0 : i32, i32, i32
  }
  func.func @transform_5(%arg0: i32) -> (i32, i32, i32, i32) {
    %c0_i32 = arith.constant 0 : i32
    %c0_i32_0 = arith.constant 0 : i32
    %c0_i32_1 = arith.constant 0 : i32
    %c0_i32_2 = arith.constant 0 : i32
    %c0_i32_3 = arith.constant 0 : i32
    return %c0_i32, %c0_i32_0, %c0_i32_1, %c0_i32_2 : i32, i32, i32, i32
  }
}

</mosaic_0001>

<llo_original>
// kernel: mul.43
$region0: #{mul.43}
  #allocation2 [shape = 's32[1]{0}', space=sflag, size = 0x4, scoped, tag = 'scoped memory for mul.43']
  %s0 = inlined_call_operand.<no memory space> [shape: f32[], index: 0, kind: input, shape index: {}]
  %s1 = inlined_call_operand.hbm [shape: f32[2,1], index: 1, kind: output, shape index: {}]
  %v2 = vstv %s0
  $region1: #{mul.43} parent=0
    #allocation0 [shape = 'u8[512]{0}', space=vmem, size = 0x400, scoped, tag = 'operand span for operand 1']
    #allocation1 [shape = 's32[1]{0}', space=sflag, size = 0x4, scoped, tag = 'scoped memory for mul.43']
    %3 = vsyncpa [#allocation1], 0
    %4 = vst [vmem:[#allocation0] sm:$0x1] %v2
    %s6 = ssub.s32 16, 16
    %7 = vsyncadd [#allocation1], %s6
    %s9 = sshll.u32 [#allocation0], 4
    %s10 = int_to_ptr.vmem [resolvable:$true] %s9
    %12 = dma.vmem_to_hbm [thread:$0]  %s10, 16, %s1, [#allocation1]
    %13 = dma.done [#allocation1], 16
    %14 = vsyncpa [#allocation1], 1

// kernel: _train.1
$region0: #{_train.1}
  #allocation0 [shape = 'u32[]', space=smem, size = 0x4, offset = 0x4, fixed_abs, tag = 'smem constant byte address 0x4 - core index']
  #allocation1 [shape = 'u32[144,128]{1,0:T(1,128)}', space=vmem, size = 0x12000, scoped, tag = 'internal scratch']
  #allocation2 [shape = 'f32[2,18,16,128]{3,2,1,0:T(8,128)}', space=vmem, size = 0x48000, scoped, tag = 'scratch operand']
  #allocation3 [shape = 's32[1]{0:T(128)S(6)}', space=smem, size = 0x200, scoped, tag = 'scoped memory for _train.1']
  #allocation4 [shape = 'f32[1]{0:T(128)S(6)}', space=smem, size = 0x200, scoped, tag = 'scoped memory for _train.1']
  %s0 = inlined_call_operand.<no memory space> [shape: s32[1], index: 0, kind: input, shape index: {}]
  %s1 = inlined_call_operand.<no memory space> [shape: f32[1], index: 1, kind: input, shape index: {}]
  %s2 = inlined_call_operand.vmem [shape: bf16[2,16,16,128], index: 2, kind: input, shape index: {}]
  %s3 = inlined_call_operand.vmem [shape: bf16[3,9,128,128], index: 3, kind: input, shape index: {}]
  %s4 = inlined_call_operand.vmem [shape: f32[3,1,128], index: 4, kind: input, shape index: {}]
  %s5 = inlined_call_operand.vmem [shape: f32[2,16,16,128], index: 5, kind: output, shape index: {}]
  %s6 = sld [smem:[#allocation0]]
  $region65: #{_train.1} parent=0
    _
  %s8 = ssub.s32 1, %s6
  %s9 = scalar_select 0, %s8, %s6
  %10 = sst [smem:[#allocation3]] %s0
  %11 = sst [smem:[#allocation4]] %s1
  loop: start=0, step=1, limit=5
  $region2: #{_train.1} parent=0 // loop_pre_header
    _
  $region3: #{_train.1} parent=0 // loop_header
    %s13 = sphi 0, %s17
    %p14 = scmp.ge.s32.totalorder %s13, 5
    %s21 = sphi 0, %s21
    %s23 = sphi 0, %s21
    %s24 = sphi 0, %s23
    %s38 = sphi 0, %s24
    %s42 = sphi 0, %s42
    %s44 = sphi 0, %s42
    %s45 = sphi 0, %s44
    %s59 = sphi 0, %s45
    %s63 = sphi 0, %s63
    %s65 = sphi 0, %s63
    %s66 = sphi 0, %s65
    %s80 = sphi 0, %s66
    %s86 = sphi 0, %s88
    %s89 = sphi 0, %s86
    %s90 = sphi 0, %s89
    %s106 = sphi 0, %s90
    %s112 = sphi 0, %s114
    %s115 = sphi 0, %s112
    %s116 = sphi 0, %s115
    %s132 = sphi 0, %s116
    %s136 = sphi 0, %s136
    %s138 = sphi 0, %s136
    %s139 = sphi 0, %s138
    %s153 = sphi 0, %s139
  $region4: #{_train.1} parent=0 // loop_header_branch
    %16 = sbr.rel (%p14) target = $region8
  $region5: #{_train.1} parent=0 // loop_body
    %s18 = ssub.s32 %s13, 1
    %s19 = ssub.s32 %s13, 2
    %s20 = sadd.s32 %s13, 1
    %s22 = sadd.s32 %s21, 1
    %p25 = scmp.eq.s32.totalorder %s13, 2
    %p26 = scmp.ne.s32.totalorder %s21, %s23
    %p27 = scmp.eq.s32.totalorder %s13, 0
    %p28 = por %p26, %p27
    %p29 = scmp.ne.s32.totalorder %s21, %s23
    %p30 = scmp.eq.s32.totalorder %s18, 2
    %p31 = por %p29, %p30
    %p32 = scmp.ne.s32.totalorder %s23, %s24
    %p33 = scmp.eq.s32.totalorder %s18, 0
    %p34 = por %p32, %p33
    %p35 = scmp.ne.s32.totalorder %s23, %s24
    %p36 = scmp.eq.s32.totalorder %s19, 2
    %p37 = por %p35, %p36
    %p39 = scmp.ne.s32.totalorder %s24, %s38
    %p40 = scmp.eq.s32.totalorder %s19, 0
    %p41 = por %p39, %p40
    %s43 = sadd.s32 %s42, 1
    %p46 = scmp.eq.s32.totalorder %s13, 2
    %p47 = scmp.ne.s32.totalorder %s42, %s44
    %p48 = scmp.eq.s32.totalorder %s13, 0
    %p49 = por %p47, %p48
    %p50 = scmp.ne.s32.totalorder %s42, %s44
    %p51 = scmp.eq.s32.totalorder %s18, 2
    %p52 = por %p50, %p51
    %p53 = scmp.ne.s32.totalorder %s44, %s45
    %p54 = scmp.eq.s32.totalorder %s18, 0
    %p55 = por %p53, %p54
    %p56 = scmp.ne.s32.totalorder %s44, %s45
    %p57 = scmp.eq.s32.totalorder %s19, 2
    %p58 = por %p56, %p57
    %p60 = scmp.ne.s32.totalorder %s45, %s59
    %p61 = scmp.eq.s32.totalorder %s19, 0
    %p62 = por %p60, %p61
    %s64 = sadd.s32 %s63, 1
    %p67 = scmp.eq.s32.totalorder %s13, 2
    %p68 = scmp.ne.s32.totalorder %s63, %s65
    %p69 = scmp.eq.s32.totalorder %s13, 0
    %p70 = por %p68, %p69
    %p71 = scmp.ne.s32.totalorder %s63, %s65
    %p72 = scmp.eq.s32.totalorder %s18, 2
    %p73 = por %p71, %p72
    %p74 = scmp.ne.s32.totalorder %s65, %s66
    %p75 = scmp.eq.s32.totalorder %s18, 0
    %p76 = por %p74, %p75
    %p77 = scmp.ne.s32.totalorder %s65, %s66
    %p78 = scmp.eq.s32.totalorder %s19, 2
    %p79 = por %p77, %p78
    %p81 = scmp.ne.s32.totalorder %s66, %s80
    %p82 = scmp.eq.s32.totalorder %s19, 0
    %p83 = por %p81, %p82
    %s84 = ssub.s32 %s13, %s20
    %p85 = scmp.eq.s32.totalorder %s84, 0
    %s87 = sadd.s32 %s86, 1
    %s88 = scalar_select %p85, %s86, %s87
    %p91 = pneg %p85
    %p92 = scmp.eq.s32.totalorder %s13, 2
    %p93 = por %p91, %p92
    %p94 = scmp.ne.s32.totalorder %s86, %s89
    %p95 = scmp.eq.s32.totalorder %s13, 0
    %p96 = por %p94, %p95
    %p97 = scmp.ne.s32.totalorder %s86, %s89
    %p98 = scmp.eq.s32.totalorder %s18, 2
    %p99 = por %p97, %p98
    %p100 = scmp.ne.s32.totalorder %s89, %s90
    %p101 = scmp.eq.s32.totalorder %s18, 0
    %p102 = por %p100, %p101
    %p103 = scmp.ne.s32.totalorder %s89, %s90
    %p104 = scmp.eq.s32.totalorder %s19, 2
    %p105 = por %p103, %p104
    %p107 = scmp.ne.s32.totalorder %s90, %s106
    %p108 = scmp.eq.s32.totalorder %s19, 0
    %p109 = por %p107, %p108
    %s110 = ssub.s32 %s13, %s20
    %p111 = scmp.eq.s32.totalorder %s110, 0
    %s113 = sadd.s32 %s112, 1
    %s114 = scalar_select %p111, %s112, %s113
    %p117 = pneg %p111
    %p118 = scmp.eq.s32.totalorder %s13, 2
    %p119 = por %p117, %p118
    %p120 = scmp.ne.s32.totalorder %s112, %s115
    %p121 = scmp.eq.s32.totalorder %s13, 0
    %p122 = por %p120, %p121
    %p123 = scmp.ne.s32.totalorder %s112, %s115
    %p124 = scmp.eq.s32.totalorder %s18, 2
    %p125 = por %p123, %p124
    %p126 = scmp.ne.s32.totalorder %s115, %s116
    %p127 = scmp.eq.s32.totalorder %s18, 0
    %p128 = por %p126, %p127
    %p129 = scmp.ne.s32.totalorder %s115, %s116
    %p130 = scmp.eq.s32.totalorder %s19, 2
    %p131 = por %p129, %p130
    %p133 = scmp.ne.s32.totalorder %s116, %s132
    %p134 = scmp.eq.s32.totalorder %s19, 0
    %p135 = por %p133, %p134
    %s137 = sadd.s32 %s136, 1
    %p140 = scmp.eq.s32.totalorder %s13, 2
    %p141 = scmp.ne.s32.totalorder %s136, %s138
    %p142 = scmp.eq.s32.totalorder %s13, 0
    %p143 = por %p141, %p142
    %p144 = scmp.ne.s32.totalorder %s136, %s138
    %p145 = scmp.eq.s32.totalorder %s18, 2
    %p146 = por %p144, %p145
    %p147 = scmp.ne.s32.totalorder %s138, %s139
    %p148 = scmp.eq.s32.totalorder %s18, 0
    %p149 = por %p147, %p148
    %p150 = scmp.ne.s32.totalorder %s138, %s139
    %p151 = scmp.eq.s32.totalorder %s19, 2
    %p152 = por %p150, %p151
    %p154 = scmp.ne.s32.totalorder %s139, %s153
    %p155 = scmp.eq.s32.totalorder %s19, 0
    %p156 = por %p154, %p155
    %p157 = scmp.le.s32.totalorder 1, %s13
    %p158 = scmp.lt.s32.totalorder %s13, 4
    %p159 = pnand %p157, %p158
    %p160 = pneg %p159
    // Predicated region
    $region9: #{_train.1} parent=5 // pred_check
      _
    $region10: #{_train.1} parent=5 // pred_check_branch
      %162 = sbr.rel (%p159) target = $region12
    $region11: #{_train.1} parent=5 // pred_region
      %s163 = ssub.s32 %s13, 1
      // Predicated region
      $region13: #{_train.1} parent=11 // pred_check
        %p164 = pneg %p34
      $region14: #{_train.1} parent=11 // pred_check_branch
        %166 = sbr.rel (%p164) target = $region16
      $region15: #{_train.1} parent=11 // pred_region
        _
      $region16: #{_train.1} parent=11 // pred_fallthru
        _
      // Predicated region
      $region17: #{_train.1} parent=11 // pred_check
        %p167 = pneg %p55
      $region18: #{_train.1} parent=11 // pred_check_branch
        %169 = sbr.rel (%p167) target = $region20
      $region19: #{_train.1} parent=11 // pred_region
        _
      $region20: #{_train.1} parent=11 // pred_fallthru
        _
      // Predicated region
      $region21: #{_train.1} parent=11 // pred_check
        %p170 = pneg %p76
      $region22: #{_train.1} parent=11 // pred_check_branch
        %172 = sbr.rel (%p170) target = $region24
      $region23: #{_train.1} parent=11 // pred_region
        _
      $region24: #{_train.1} parent=11 // pred_fallthru
        _
    $region12: #{_train.1} parent=5 // pred_fallthru
      _
    %p173 = scmp.lt.s32.totalorder %s13, 3
    // Predicated region
    $region25: #{_train.1} parent=5 // pred_check
      %p174 = pneg %p173
    $region26: #{_train.1} parent=5 // pred_check_branch
      %176 = sbr.rel (%p174) target = $region28
    $region27: #{_train.1} parent=5 // pred_region
      // Predicated region
      $region29: #{_train.1} parent=27 // pred_check
        %p177 = pneg %p96
      $region30: #{_train.1} parent=27 // pred_check_branch
        %179 = sbr.rel (%p177) target = $region32
      $region31: #{_train.1} parent=27 // pred_region
        %p180 = scmp.lt.s32.totalorder %s13, 2
        %s181 = scalar_select %p180, %s13, 2
        %s182 = smul.addr %s181, 144
        %s183 = smul.addr %s182, 4
        %s184 = scalar_lea.vmem %s3, %s183
      $region32: #{_train.1} parent=27 // pred_fallthru
        _
      // Predicated region
      $region33: #{_train.1} parent=27 // pred_check
        %p185 = pneg %p122
      $region34: #{_train.1} parent=27 // pred_check_branch
        %187 = sbr.rel (%p185) target = $region36
      $region35: #{_train.1} parent=27 // pred_region
        %p188 = scmp.lt.s32.totalorder %s13, 2
        %s189 = scalar_select %p188, %s13, 2
        %s190 = scalar_lea.vmem %s4, %s189
      $region36: #{_train.1} parent=27 // pred_fallthru
        _
    $region28: #{_train.1} parent=5 // pred_fallthru
      _
    %p191 = scmp.le.s32.totalorder 1, %s13
    %p192 = scmp.lt.s32.totalorder %s13, 4
    %p193 = pnand %p191, %p192
    %p194 = pneg %p193
    // Predicated region
    $region37: #{_train.1} parent=5 // pred_check
      _
    $region38: #{_train.1} parent=5 // pred_check_branch
      %196 = sbr.rel (%p193) target = $region40
    $region39: #{_train.1} parent=5 // pred_region
      %s197 = ssub.s32 %s13, 1
      %p198 = pneg %p34
      %p199 = pneg %p31
      %p200 = pneg %p55
      %p201 = pneg %p52
      %p202 = pneg %p76
      %p203 = pneg %p73
      %p204 = scmp.lt.s32.totalorder %s18, 2
      %s205 = scalar_select %p204, %s18, 2
      %s206 = smul.addr %s205, 144
      %s207 = smul.addr %s206, 4
      %s208 = scalar_lea.vmem %s3, %s207
      %p209 = pneg %p102
      %p210 = pneg %p99
      %p211 = scmp.lt.s32.totalorder %s18, 2
      %s212 = scalar_select %p211, %s18, 2
      %s213 = scalar_lea.vmem %s4, %s212
      %p214 = pneg %p128
      %p215 = pneg %p125
      %p216 = pneg %p149
      %p217 = pneg %p146
      %p218 = scmp.lt.s32.totalorder %s18, 2
      %s219 = scalar_select %p218, %s18, 2
      %s220 = smul.addr %s219, 144
      %s221 = smul.addr %s220, 4
      %s222 = scalar_lea.vmem %s3, %s221
      %p223 = scmp.lt.s32.totalorder %s18, 2
      %s224 = scalar_select %p223, %s18, 2
      %s225 = scalar_lea.vmem %s4, %s224
      %p227 = scmp.eq.s32.totalorder %s18, 0
      // Predicated region
      $region41: #{_train.1} parent=39 // pred_check
        %p228 = pneg %p227
      $region42: #{_train.1} parent=39 // pred_check_branch
        %230 = sbr.rel (%p228) target = $region44
      $region43: #{_train.1} parent=39 // pred_region
        %231 = vst [vmem:[#allocation2] sm:$0xff] 0.0
        %232 = vst [vmem:[#allocation2 + $0x8] sm:$0xff] 0.0
        %233 = vst [vmem:[#allocation2 + $0x10] sm:$0xff] 0.0
        %234 = vst [vmem:[#allocation2 + $0x18] sm:$0xff] 0.0
        %235 = vst [vmem:[#allocation2 + $0x20] sm:$0xff] 0.0
        %236 = vst [vmem:[#allocation2 + $0x28] sm:$0xff] 0.0
        %237 = vst [vmem:[#allocation2 + $0x30] sm:$0xff] 0.0
        %238 = vst [vmem:[#allocation2 + $0x38] sm:$0xff] 0.0
        %239 = vst [vmem:[#allocation2 + $0x40] sm:$0xff] 0.0
        %240 = vst [vmem:[#allocation2 + $0x48] sm:$0xff] 0.0
        %241 = vst [vmem:[#allocation2 + $0x50] sm:$0xff] 0.0
        %242 = vst [vmem:[#allocation2 + $0x58] sm:$0xff] 0.0
        %243 = vst [vmem:[#allocation2 + $0x60] sm:$0xff] 0.0
        %244 = vst [vmem:[#allocation2 + $0x68] sm:$0xff] 0.0
        %245 = vst [vmem:[#allocation2 + $0x70] sm:$0xff] 0.0
        %246 = vst [vmem:[#allocation2 + $0x78] sm:$0xff] 0.0
        %247 = vst [vmem:[#allocation2 + $0x80] sm:$0xff] 0.0
        %248 = vst [vmem:[#allocation2 + $0x88] sm:$0xff] 0.0
        %249 = vst [vmem:[#allocation2 + $0x90] sm:$0xff] 0.0
        %250 = vst [vmem:[#allocation2 + $0x98] sm:$0xff] 0.0
        %251 = vst [vmem:[#allocation2 + $0xa0] sm:$0xff] 0.0
        %252 = vst [vmem:[#allocation2 + $0xa8] sm:$0xff] 0.0
        %253 = vst [vmem:[#allocation2 + $0xb0] sm:$0xff] 0.0
        %254 = vst [vmem:[#allocation2 + $0xb8] sm:$0xff] 0.0
        %255 = vst [vmem:[#allocation2 + $0xc0] sm:$0xff] 0.0
        %256 = vst [vmem:[#allocation2 + $0xc8] sm:$0xff] 0.0
        %257 = vst [vmem:[#allocation2 + $0xd0] sm:$0xff] 0.0
        %258 = vst [vmem:[#allocation2 + $0xd8] sm:$0xff] 0.0
        %259 = vst [vmem:[#allocation2 + $0xe0] sm:$0xff] 0.0
        %260 = vst [vmem:[#allocation2 + $0xe8] sm:$0xff] 0.0
        %261 = vst [vmem:[#allocation2 + $0xf0] sm:$0xff] 0.0
        %262 = vst [vmem:[#allocation2 + $0xf8] sm:$0xff] 0.0
        %263 = vst [vmem:[#allocation2 + $0x100] sm:$0xff] 0.0
        %264 = vst [vmem:[#allocation2 + $0x108] sm:$0xff] 0.0
        %265 = vst [vmem:[#allocation2 + $0x110] sm:$0xff] 0.0
        %266 = vst [vmem:[#allocation2 + $0x118] sm:$0xff] 0.0
        %267 = vst [vmem:[#allocation2 + $0x120] sm:$0xff] 0.0
        %268 = vst [vmem:[#allocation2 + $0x128] sm:$0xff] 0.0
        %269 = vst [vmem:[#allocation2 + $0x130] sm:$0xff] 0.0
        %270 = vst [vmem:[#allocation2 + $0x138] sm:$0xff] 0.0
        %271 = vst [vmem:[#allocation2 + $0x140] sm:$0xff] 0.0
        %272 = vst [vmem:[#allocation2 + $0x148] sm:$0xff] 0.0
        %273 = vst [vmem:[#allocation2 + $0x150] sm:$0xff] 0.0
        %274 = vst [vmem:[#allocation2 + $0x158] sm:$0xff] 0.0
        %275 = vst [vmem:[#allocation2 + $0x160] sm:$0xff] 0.0
        %276 = vst [vmem:[#allocation2 + $0x168] sm:$0xff] 0.0
        %277 = vst [vmem:[#allocation2 + $0x170] sm:$0xff] 0.0
        %278 = vst [vmem:[#allocation2 + $0x178] sm:$0xff] 0.0
        %279 = vst [vmem:[#allocation2 + $0x180] sm:$0xff] 0.0
        %280 = vst [vmem:[#allocation2 + $0x188] sm:$0xff] 0.0
        %281 = vst [vmem:[#allocation2 + $0x190] sm:$0xff] 0.0
        %282 = vst [vmem:[#allocation2 + $0x198] sm:$0xff] 0.0
        %283 = vst [vmem:[#allocation2 + $0x1a0] sm:$0xff] 0.0
        %284 = vst [vmem:[#allocation2 + $0x1a8] sm:$0xff] 0.0
        %285 = vst [vmem:[#allocation2 + $0x1b0] sm:$0xff] 0.0
        %286 = vst [vmem:[#allocation2 + $0x1b8] sm:$0xff] 0.0
        %287 = vst [vmem:[#allocation2 + $0x1c0] sm:$0xff] 0.0
        %288 = vst [vmem:[#allocation2 + $0x1c8] sm:$0xff] 0.0
        %289 = vst [vmem:[#allocation2 + $0x1d0] sm:$0xff] 0.0
        %290 = vst [vmem:[#allocation2 + $0x1d8] sm:$0xff] 0.0
        %291 = vst [vmem:[#allocation2 + $0x1e0] sm:$0xff] 0.0
        %292 = vst [vmem:[#allocation2 + $0x1e8] sm:$0xff] 0.0
        %293 = vst [vmem:[#allocation2 + $0x1f0] sm:$0xff] 0.0
        %294 = vst [vmem:[#allocation2 + $0x1f8] sm:$0xff] 0.0
        %295 = vst [vmem:[#allocation2 + $0x200] sm:$0xff] 0.0
        %296 = vst [vmem:[#allocation2 + $0x208] sm:$0xff] 0.0
        %297 = vst [vmem:[#allocation2 + $0x210] sm:$0xff] 0.0
        %298 = vst [vmem:[#allocation2 + $0x218] sm:$0xff] 0.0
        %299 = vst [vmem:[#allocation2 + $0x220] sm:$0xff] 0.0
        %300 = vst [vmem:[#allocation2 + $0x228] sm:$0xff] 0.0
        %301 = vst [vmem:[#allocation2 + $0x230] sm:$0xff] 0.0
        %302 = vst [vmem:[#allocation2 + $0x238] sm:$0xff] 0.0
        %v303 = vld [vmem:[%s2] sm:$0xf]
        %v304 = vld [vmem:[%s2 + $0x4] sm:$0xf]
        %v305 = vld [vmem:[%s2 + $0x8] sm:$0xf]
        %v306 = vld [vmem:[%s2 + $0xc] sm:$0xf]
        %v307 = vld [vmem:[%s2 + $0x10] sm:$0xf]
        %v308 = vld [vmem:[%s2 + $0x14] sm:$0xf]
        %v309 = vld [vmem:[%s2 + $0x18] sm:$0xf]
        %v310 = vld [vmem:[%s2 + $0x1c] sm:$0xf]
        %v311 = vld [vmem:[%s2 + $0x20] sm:$0xf]
        %v312 = vld [vmem:[%s2 + $0x24] sm:$0xf]
        %v313 = vld [vmem:[%s2 + $0x28] sm:$0xf]
        %v314 = vld [vmem:[%s2 + $0x2c] sm:$0xf]
        %v315 = vld [vmem:[%s2 + $0x30] sm:$0xf]
        %v316 = vld [vmem:[%s2 + $0x34] sm:$0xf]
        %v317 = vld [vmem:[%s2 + $0x38] sm:$0xf]
        %v318 = vld [vmem:[%s2 + $0x3c] sm:$0xf]
        %v319 = vld [vmem:[%s2 + $0x40] sm:$0xf]
        %v320 = vld [vmem:[%s2 + $0x44] sm:$0xf]
        %v321 = vld [vmem:[%s2 + $0x48] sm:$0xf]
        %v322 = vld [vmem:[%s2 + $0x4c] sm:$0xf]
        %v323 = vld [vmem:[%s2 + $0x50] sm:$0xf]
        %v324 = vld [vmem:[%s2 + $0x54] sm:$0xf]
        %v325 = vld [vmem:[%s2 + $0x58] sm:$0xf]
        %v326 = vld [vmem:[%s2 + $0x5c] sm:$0xf]
        %v327 = vld [vmem:[%s2 + $0x60] sm:$0xf]
        %v328 = vld [vmem:[%s2 + $0x64] sm:$0xf]
        %v329 = vld [vmem:[%s2 + $0x68] sm:$0xf]
        %v330 = vld [vmem:[%s2 + $0x6c] sm:$0xf]
        %v331 = vld [vmem:[%s2 + $0x70] sm:$0xf]
        %v332 = vld [vmem:[%s2 + $0x74] sm:$0xf]
        %v333 = vld [vmem:[%s2 + $0x78] sm:$0xf]
        %v334 = vld [vmem:[%s2 + $0x7c] sm:$0xf]
        %v335 = vld [vmem:[%s2 + $0x80] sm:$0xf]
        %v336 = vld [vmem:[%s2 + $0x84] sm:$0xf]
        %v337 = vld [vmem:[%s2 + $0x88] sm:$0xf]
        %v338 = vld [vmem:[%s2 + $0x8c] sm:$0xf]
        %v339 = vld [vmem:[%s2 + $0x90] sm:$0xf]
        %v340 = vld [vmem:[%s2 + $0x94] sm:$0xf]
        %v341 = vld [vmem:[%s2 + $0x98] sm:$0xf]
        %v342 = vld [vmem:[%s2 + $0x9c] sm:$0xf]
        %v343 = vld [vmem:[%s2 + $0xa0] sm:$0xf]
        %v344 = vld [vmem:[%s2 + $0xa4] sm:$0xf]
        %v345 = vld [vmem:[%s2 + $0xa8] sm:$0xf]
        %v346 = vld [vmem:[%s2 + $0xac] sm:$0xf]
        %v347 = vld [vmem:[%s2 + $0xb0] sm:$0xf]
        %v348 = vld [vmem:[%s2 + $0xb4] sm:$0xf]
        %v349 = vld [vmem:[%s2 + $0xb8] sm:$0xf]
        %v350 = vld [vmem:[%s2 + $0xbc] sm:$0xf]
        %v351 = vld [vmem:[%s2 + $0xc0] sm:$0xf]
        %v352 = vld [vmem:[%s2 + $0xc4] sm:$0xf]
        %v353 = vld [vmem:[%s2 + $0xc8] sm:$0xf]
        %v354 = vld [vmem:[%s2 + $0xcc] sm:$0xf]
        %v355 = vld [vmem:[%s2 + $0xd0] sm:$0xf]
        %v356 = vld [vmem:[%s2 + $0xd4] sm:$0xf]
        %v357 = vld [vmem:[%s2 + $0xd8] sm:$0xf]
        %v358 = vld [vmem:[%s2 + $0xdc] sm:$0xf]
        %v359 = vld [vmem:[%s2 + $0xe0] sm:$0xf]
        %v360 = vld [vmem:[%s2 + $0xe4] sm:$0xf]
        %v361 = vld [vmem:[%s2 + $0xe8] sm:$0xf]
        %v362 = vld [vmem:[%s2 + $0xec] sm:$0xf]
        %v363 = vld [vmem:[%s2 + $0xf0] sm:$0xf]
        %v364 = vld [vmem:[%s2 + $0xf4] sm:$0xf]
        %v365 = vld [vmem:[%s2 + $0xf8] sm:$0xf]
        %v366 = vld [vmem:[%s2 + $0xfc] sm:$0xf]
        %v367 = vunpack.c.l.bf16 %v303
        %v368 = vunpack.c.l.bf16 %v304
        %v369 = vunpack.c.l.bf16 %v305
        %v370 = vunpack.c.l.bf16 %v306
        %v371 = vunpack.c.l.bf16 %v307
        %v372 = vunpack.c.l.bf16 %v308
        %v373 = vunpack.c.l.bf16 %v309
        %v374 = vunpack.c.l.bf16 %v310
        %v375 = vunpack.c.l.bf16 %v311
        %v376 = vunpack.c.l.bf16 %v312
        %v377 = vunpack.c.l.bf16 %v313
        %v378 = vunpack.c.l.bf16 %v314
        %v379 = vunpack.c.l.bf16 %v315
        %v380 = vunpack.c.l.bf16 %v316
        %v381 = vunpack.c.l.bf16 %v317
        %v382 = vunpack.c.l.bf16 %v318
        %v383 = vunpack.c.l.bf16 %v319
        %v384 = vunpack.c.l.bf16 %v320
        %v385 = vunpack.c.l.bf16 %v321
        %v386 = vunpack.c.l.bf16 %v322
        %v387 = vunpack.c.l.bf16 %v323
        %v388 = vunpack.c.l.bf16 %v324
        %v389 = vunpack.c.l.bf16 %v325
        %v390 = vunpack.c.l.bf16 %v326
        %v391 = vunpack.c.l.bf16 %v327
        %v392 = vunpack.c.l.bf16 %v328
        %v393 = vunpack.c.l.bf16 %v329
        %v394 = vunpack.c.l.bf16 %v330
        %v395 = vunpack.c.l.bf16 %v331
        %v396 = vunpack.c.l.bf16 %v332
        %v397 = vunpack.c.l.bf16 %v333
        %v398 = vunpack.c.l.bf16 %v334
        %v399 = vunpack.c.l.bf16 %v335
        %v400 = vunpack.c.l.bf16 %v336
        %v401 = vunpack.c.l.bf16 %v337
        %v402 = vunpack.c.l.bf16 %v338
        %v403 = vunpack.c.l.bf16 %v339
        %v404 = vunpack.c.l.bf16 %v340
        %v405 = vunpack.c.l.bf16 %v341
        %v406 = vunpack.c.l.bf16 %v342
        %v407 = vunpack.c.l.bf16 %v343
        %v408 = vunpack.c.l.bf16 %v344
        %v409 = vunpack.c.l.bf16 %v345
        %v410 = vunpack.c.l.bf16 %v346
        %v411 = vunpack.c.l.bf16 %v347
        %v412 = vunpack.c.l.bf16 %v348
        %v413 = vunpack.c.l.bf16 %v349
        %v414 = vunpack.c.l.bf16 %v350
        %v415 = vunpack.c.l.bf16 %v351
        %v416 = vunpack.c.l.bf16 %v352
        %v417 = vunpack.c.l.bf16 %v353
        %v418 = vunpack.c.l.bf16 %v354
        %v419 = vunpack.c.l.bf16 %v355
        %v420 = vunpack.c.l.bf16 %v356
        %v421 = vunpack.c.l.bf16 %v357
        %v422 = vunpack.c.l.bf16 %v358
        %v423 = vunpack.c.l.bf16 %v359
        %v424 = vunpack.c.l.bf16 %v360
        %v425 = vunpack.c.l.bf16 %v361
        %v426 = vunpack.c.l.bf16 %v362
        %v427 = vunpack.c.l.bf16 %v363
        %v428 = vunpack.c.l.bf16 %v364
        %v429 = vunpack.c.l.bf16 %v365
        %v430 = vunpack.c.l.bf16 %v366
        %s431 = scalar_lea.vmem [#allocation2], 16
        %432 = vst [vmem:[%s431] sm:$0xff] %v367
        %433 = vst [vmem:[%s431 + $0x8] sm:$0xff] %v368
        %434 = vst [vmem:[%s431 + $0x10] sm:$0xff] %v369
        %435 = vst [vmem:[%s431 + $0x18] sm:$0xff] %v370
        %436 = vst [vmem:[%s431 + $0x20] sm:$0xff] %v371
        %437 = vst [vmem:[%s431 + $0x28] sm:$0xff] %v372
        %438 = vst [vmem:[%s431 + $0x30] sm:$0xff] %v373
        %439 = vst [vmem:[%s431 + $0x38] sm:$0xff] %v374
        %440 = vst [vmem:[%s431 + $0x40] sm:$0xff] %v375
        %441 = vst [vmem:[%s431 + $0x48] sm:$0xff] %v376
        %442 = vst [vmem:[%s431 + $0x50] sm:$0xff] %v377
        %443 = vst [vmem:[%s431 + $0x58] sm:$0xff] %v378
        %444 = vst [vmem:[%s431 + $0x60] sm:$0xff] %v379
        %445 = vst [vmem:[%s431 + $0x68] sm:$0xff] %v380
        %446 = vst [vmem:[%s431 + $0x70] sm:$0xff] %v381
        %447 = vst [vmem:[%s431 + $0x78] sm:$0xff] %v382
        %448 = vst [vmem:[%s431 + $0x80] sm:$0xff] %v383
        %449 = vst [vmem:[%s431 + $0x88] sm:$0xff] %v384
        %450 = vst [vmem:[%s431 + $0x90] sm:$0xff] %v385
        %451 = vst [vmem:[%s431 + $0x98] sm:$0xff] %v386
        %452 = vst [vmem:[%s431 + $0xa0] sm:$0xff] %v387
        %453 = vst [vmem:[%s431 + $0xa8] sm:$0xff] %v388
        %454 = vst [vmem:[%s431 + $0xb0] sm:$0xff] %v389
        %455 = vst [vmem:[%s431 + $0xb8] sm:$0xff] %v390
        %456 = vst [vmem:[%s431 + $0xc0] sm:$0xff] %v391
        %457 = vst [vmem:[%s431 + $0xc8] sm:$0xff] %v392
        %458 = vst [vmem:[%s431 + $0xd0] sm:$0xff] %v393
        %459 = vst [vmem:[%s431 + $0xd8] sm:$0xff] %v394
        %460 = vst [vmem:[%s431 + $0xe0] sm:$0xff] %v395
        %461 = vst [vmem:[%s431 + $0xe8] sm:$0xff] %v396
        %462 = vst [vmem:[%s431 + $0xf0] sm:$0xff] %v397
        %463 = vst [vmem:[%s431 + $0xf8] sm:$0xff] %v398
        %464 = vst [vmem:[%s431 + $0x120] sm:$0xff] %v399
        %465 = vst [vmem:[%s431 + $0x128] sm:$0xff] %v400
        %466 = vst [vmem:[%s431 + $0x130] sm:$0xff] %v401
        %467 = vst [vmem:[%s431 + $0x138] sm:$0xff] %v402
        %468 = vst [vmem:[%s431 + $0x140] sm:$0xff] %v403
        %469 = vst [vmem:[%s431 + $0x148] sm:$0xff] %v404
        %470 = vst [vmem:[%s431 + $0x150] sm:$0xff] %v405
        %471 = vst [vmem:[%s431 + $0x158] sm:$0xff] %v406
        %472 = vst [vmem:[%s431 + $0x160] sm:$0xff] %v407
        %473 = vst [vmem:[%s431 + $0x168] sm:$0xff] %v408
        %474 = vst [vmem:[%s431 + $0x170] sm:$0xff] %v409
        %475 = vst [vmem:[%s431 + $0x178] sm:$0xff] %v410
        %476 = vst [vmem:[%s431 + $0x180] sm:$0xff] %v411
        %477 = vst [vmem:[%s431 + $0x188] sm:$0xff] %v412
        %478 = vst [vmem:[%s431 + $0x190] sm:$0xff] %v413
        %479 = vst [vmem:[%s431 + $0x198] sm:$0xff] %v414
        %480 = vst [vmem:[%s431 + $0x1a0] sm:$0xff] %v415
        %481 = vst [vmem:[%s431 + $0x1a8] sm:$0xff] %v416
        %482 = vst [vmem:[%s431 + $0x1b0] sm:$0xff] %v417
        %483 = vst [vmem:[%s431 + $0x1b8] sm:$0xff] %v418
        %484 = vst [vmem:[%s431 + $0x1c0] sm:$0xff] %v419
        %485 = vst [vmem:[%s431 + $0x1c8] sm:$0xff] %v420
        %486 = vst [vmem:[%s431 + $0x1d0] sm:$0xff] %v421
        %487 = vst [vmem:[%s431 + $0x1d8] sm:$0xff] %v422
        %488 = vst [vmem:[%s431 + $0x1e0] sm:$0xff] %v423
        %489 = vst [vmem:[%s431 + $0x1e8] sm:$0xff] %v424
        %490 = vst [vmem:[%s431 + $0x1f0] sm:$0xff] %v425
        %491 = vst [vmem:[%s431 + $0x1f8] sm:$0xff] %v426
        %492 = vst [vmem:[%s431 + $0x200] sm:$0xff] %v427
        %493 = vst [vmem:[%s431 + $0x208] sm:$0xff] %v428
        %494 = vst [vmem:[%s431 + $0x210] sm:$0xff] %v429
        %495 = vst [vmem:[%s431 + $0x218] sm:$0xff] %v430
      $region44: #{_train.1} parent=39 // pred_fallthru
        _
      %s496 = sld [smem:[#allocation3]]
      %p497 = scmp.eq.s32.totalorder %s18, %s496
      // Predicated region
      $region45: #{_train.1} parent=39 // pred_check
        %p498 = pneg %p497
      $region46: #{_train.1} parent=39 // pred_check_branch
        %500 = sbr.rel (%p498) target = $region48
      $region47: #{_train.1} parent=39 // pred_region
        %s501 = sld [smem:[#allocation4]]
        %s502 = scalar_lea.vmem [#allocation2], 16
        %v503 = vld [vmem:[%s502] sm:$0xff]
        %v504 = vld [vmem:[%s502 + $0x8] sm:$0xff]
        %v505 = vld [vmem:[%s502 + $0x10] sm:$0xff]
        %v506 = vld [vmem:[%s502 + $0x18] sm:$0xff]
        %v507 = vld [vmem:[%s502 + $0x20] sm:$0xff]
        %v508 = vld [vmem:[%s502 + $0x28] sm:$0xff]
        %v509 = vld [vmem:[%s502 + $0x30] sm:$0xff]
        %v510 = vld [vmem:[%s502 + $0x38] sm:$0xff]
        %v511 = vld [vmem:[%s502 + $0x40] sm:$0xff]
        %v512 = vld [vmem:[%s502 + $0x48] sm:$0xff]
        %v513 = vld [vmem:[%s502 + $0x50] sm:$0xff]
        %v514 = vld [vmem:[%s502 + $0x58] sm:$0xff]
        %v515 = vld [vmem:[%s502 + $0x60] sm:$0xff]
        %v516 = vld [vmem:[%s502 + $0x68] sm:$0xff]
        %v517 = vld [vmem:[%s502 + $0x70] sm:$0xff]
        %v518 = vld [vmem:[%s502 + $0x78] sm:$0xff]
        %v519 = vld [vmem:[%s502 + $0x80] sm:$0xff]
        %v520 = vld [vmem:[%s502 + $0x88] sm:$0xff]
        %v521 = vld [vmem:[%s502 + $0x90] sm:$0xff]
        %v522 = vld [vmem:[%s502 + $0x98] sm:$0xff]
        %v523 = vld [vmem:[%s502 + $0xa0] sm:$0xff]
        %v524 = vld [vmem:[%s502 + $0xa8] sm:$0xff]
        %v525 = vld [vmem:[%s502 + $0xb0] sm:$0xff]
        %v526 = vld [vmem:[%s502 + $0xb8] sm:$0xff]
        %v527 = vld [vmem:[%s502 + $0xc0] sm:$0xff]
        %v528 = vld [vmem:[%s502 + $0xc8] sm:$0xff]
        %v529 = vld [vmem:[%s502 + $0xd0] sm:$0xff]
        %v530 = vld [vmem:[%s502 + $0xd8] sm:$0xff]
        %v531 = vld [vmem:[%s502 + $0xe0] sm:$0xff]
        %v532 = vld [vmem:[%s502 + $0xe8] sm:$0xff]
        %v533 = vld [vmem:[%s502 + $0xf0] sm:$0xff]
        %v534 = vld [vmem:[%s502 + $0xf8] sm:$0xff]
        %v535 = vld [vmem:[%s502 + $0x120] sm:$0xff]
        %v536 = vld [vmem:[%s502 + $0x128] sm:$0xff]
        %v537 = vld [vmem:[%s502 + $0x130] sm:$0xff]
        %v538 = vld [vmem:[%s502 + $0x138] sm:$0xff]
        %v539 = vld [vmem:[%s502 + $0x140] sm:$0xff]
        %v540 = vld [vmem:[%s502 + $0x148] sm:$0xff]
        %v541 = vld [vmem:[%s502 + $0x150] sm:$0xff]
        %v542 = vld [vmem:[%s502 + $0x158] sm:$0xff]
        %v543 = vld [vmem:[%s502 + $0x160] sm:$0xff]
        %v544 = vld [vmem:[%s502 + $0x168] sm:$0xff]
        %v545 = vld [vmem:[%s502 + $0x170] sm:$0xff]
        %v546 = vld [vmem:[%s502 + $0x178] sm:$0xff]
        %v547 = vld [vmem:[%s502 + $0x180] sm:$0xff]
        %v548 = vld [vmem:[%s502 + $0x188] sm:$0xff]
        %v549 = vld [vmem:[%s502 + $0x190] sm:$0xff]
        %v550 = vld [vmem:[%s502 + $0x198] sm:$0xff]
        %v551 = vld [vmem:[%s502 + $0x1a0] sm:$0xff]
        %v552 = vld [vmem:[%s502 + $0x1a8] sm:$0xff]
        %v553 = vld [vmem:[%s502 + $0x1b0] sm:$0xff]
        %v554 = vld [vmem:[%s502 + $0x1b8] sm:$0xff]
        %v555 = vld [vmem:[%s502 + $0x1c0] sm:$0xff]
        %v556 = vld [vmem:[%s502 + $0x1c8] sm:$0xff]
        %v557 = vld [vmem:[%s502 + $0x1d0] sm:$0xff]
        %v558 = vld [vmem:[%s502 + $0x1d8] sm:$0xff]
        %v559 = vld [vmem:[%s502 + $0x1e0] sm:$0xff]
        %v560 = vld [vmem:[%s502 + $0x1e8] sm:$0xff]
        %v561 = vld [vmem:[%s502 + $0x1f0] sm:$0xff]
        %v562 = vld [vmem:[%s502 + $0x1f8] sm:$0xff]
        %v563 = vld [vmem:[%s502 + $0x200] sm:$0xff]
        %v564 = vld [vmem:[%s502 + $0x208] sm:$0xff]
        %v565 = vld [vmem:[%s502 + $0x210] sm:$0xff]
        %v566 = vld [vmem:[%s502 + $0x218] sm:$0xff]
        %v567 = vstv %s501
        %v568 = vmul.f32 %v567, %v503
        %v569 = vmul.f32 %v567, %v504
        %v570 = vmul.f32 %v567, %v505
        %v571 = vmul.f32 %v567, %v506
        %v572 = vmul.f32 %v567, %v507
        %v573 = vmul.f32 %v567, %v508
        %v574 = vmul.f32 %v567, %v509
        %v575 = vmul.f32 %v567, %v510
        %v576 = vmul.f32 %v567, %v511
        %v577 = vmul.f32 %v567, %v512
        %v578 = vmul.f32 %v567, %v513
        %v579 = vmul.f32 %v567, %v514
        %v580 = vmul.f32 %v567, %v515
        %v581 = vmul.f32 %v567, %v516
        %v582 = vmul.f32 %v567, %v517
        %v583 = vmul.f32 %v567, %v518
        %v584 = vmul.f32 %v567, %v519
        %v585 = vmul.f32 %v567, %v520
        %v586 = vmul.f32 %v567, %v521
        %v587 = vmul.f32 %v567, %v522
        %v588 = vmul.f32 %v567, %v523
        %v589 = vmul.f32 %v567, %v524
        %v590 = vmul.f32 %v567, %v525
        %v591 = vmul.f32 %v567, %v526
        %v592 = vmul.f32 %v567, %v527
        %v593 = vmul.f32 %v567, %v528
        %v594 = vmul.f32 %v567, %v529
        %v595 = vmul.f32 %v567, %v530
        %v596 = vmul.f32 %v567, %v531
        %v597 = vmul.f32 %v567, %v532
        %v598 = vmul.f32 %v567, %v533
        %v599 = vmul.f32 %v567, %v534
        %v600 = vmul.f32 %v567, %v535
        %v601 = vmul.f32 %v567, %v536
        %v602 = vmul.f32 %v567, %v537
        %v603 = vmul.f32 %v567, %v538
        %v604 = vmul.f32 %v567, %v539
        %v605 = vmul.f32 %v567, %v540
        %v606 = vmul.f32 %v567, %v541
        %v607 = vmul.f32 %v567, %v542
        %v608 = vmul.f32 %v567, %v543
        %v609 = vmul.f32 %v567, %v544
        %v610 = vmul.f32 %v567, %v545
        %v611 = vmul.f32 %v567, %v546
        %v612 = vmul.f32 %v567, %v547
        %v613 = vmul.f32 %v567, %v548
        %v614 = vmul.f32 %v567, %v549
        %v615 = vmul.f32 %v567, %v550
        %v616 = vmul.f32 %v567, %v551
        %v617 = vmul.f32 %v567, %v552
        %v618 = vmul.f32 %v567, %v553
        %v619 = vmul.f32 %v567, %v554
        %v620 = vmul.f32 %v567, %v555
        %v621 = vmul.f32 %v567, %v556
        %v622 = vmul.f32 %v567, %v557
        %v623 = vmul.f32 %v567, %v558
        %v624 = vmul.f32 %v567, %v559
        %v625 = vmul.f32 %v567, %v560
        %v626 = vmul.f32 %v567, %v561
        %v627 = vmul.f32 %v567, %v562
        %v628 = vmul.f32 %v567, %v563
        %v629 = vmul.f32 %v567, %v564
        %v630 = vmul.f32 %v567, %v565
        %v631 = vmul.f32 %v567, %v566
        %s632 = ssub.f32 1.0, %s501
        %v633 = vstv %s632
        %v634 = vmul.f32 %v633, %v535
        %v635 = vmul.f32 %v633, %v536
        %v636 = vmul.f32 %v633, %v537
        %v637 = vmul.f32 %v633, %v538
        %v638 = vmul.f32 %v633, %v539
        %v639 = vmul.f32 %v633, %v540
        %v640 = vmul.f32 %v633, %v541
        %v641 = vmul.f32 %v633, %v542
        %v642 = vmul.f32 %v633, %v543
        %v643 = vmul.f32 %v633, %v544
        %v644 = vmul.f32 %v633, %v545
        %v645 = vmul.f32 %v633, %v546
        %v646 = vmul.f32 %v633, %v547
        %v647 = vmul.f32 %v633, %v548
        %v648 = vmul.f32 %v633, %v549
        %v649 = vmul.f32 %v633, %v550
        %v650 = vmul.f32 %v633, %v551
        %v651 = vmul.f32 %v633, %v552
        %v652 = vmul.f32 %v633, %v553
        %v653 = vmul.f32 %v633, %v554
        %v654 = vmul.f32 %v633, %v555
        %v655 = vmul.f32 %v633, %v556
        %v656 = vmul.f32 %v633, %v557
        %v657 = vmul.f32 %v633, %v558
        %v658 = vmul.f32 %v633, %v559
        %v659 = vmul.f32 %v633, %v560
        %v660 = vmul.f32 %v633, %v561
        %v661 = vmul.f32 %v633, %v562
        %v662 = vmul.f32 %v633, %v563
        %v663 = vmul.f32 %v633, %v564
        %v664 = vmul.f32 %v633, %v565
        %v665 = vmul.f32 %v633, %v566
        %v666 = vmul.f32 %v633, %v503
        %v667 = vmul.f32 %v633, %v504
        %v668 = vmul.f32 %v633, %v505
        %v669 = vmul.f32 %v633, %v506
        %v670 = vmul.f32 %v633, %v507
        %v671 = vmul.f32 %v633, %v508
        %v672 = vmul.f32 %v633, %v509
        %v673 = vmul.f32 %v633, %v510
        %v674 = vmul.f32 %v633, %v511
        %v675 = vmul.f32 %v633, %v512
        %v676 = vmul.f32 %v633, %v513
        %v677 = vmul.f32 %v633, %v514
        %v678 = vmul.f32 %v633, %v515
        %v679 = vmul.f32 %v633, %v516
        %v680 = vmul.f32 %v633, %v517
        %v681 = vmul.f32 %v633, %v518
        %v682 = vmul.f32 %v633, %v519
        %v683 = vmul.f32 %v633, %v520
        %v684 = vmul.f32 %v633, %v521
        %v685 = vmul.f32 %v633, %v522
        %v686 = vmul.f32 %v633, %v523
        %v687 = vmul.f32 %v633, %v524
        %v688 = vmul.f32 %v633, %v525
        %v689 = vmul.f32 %v633, %v526
        %v690 = vmul.f32 %v633, %v527
        %v691 = vmul.f32 %v633, %v528
        %v692 = vmul.f32 %v633, %v529
        %v693 = vmul.f32 %v633, %v530
        %v694 = vmul.f32 %v633, %v531
        %v695 = vmul.f32 %v633, %v532
        %v696 = vmul.f32 %v633, %v533
        %v697 = vmul.f32 %v633, %v534
        %v698 = vadd.f32 %v568, %v634
        %v699 = vadd.f32 %v569, %v635
        %v700 = vadd.f32 %v570, %v636
        %v701 = vadd.f32 %v571, %v637
        %v702 = vadd.f32 %v572, %v638
        %v703 = vadd.f32 %v573, %v639
        %v704 = vadd.f32 %v574, %v640
        %v705 = vadd.f32 %v575, %v641
        %v706 = vadd.f32 %v576, %v642
        %v707 = vadd.f32 %v577, %v643
        %v708 = vadd.f32 %v578, %v644
        %v709 = vadd.f32 %v579, %v645
        %v710 = vadd.f32 %v580, %v646
        %v711 = vadd.f32 %v581, %v647
        %v712 = vadd.f32 %v582, %v648
        %v713 = vadd.f32 %v583, %v649
        %v714 = vadd.f32 %v584, %v650
        %v715 = vadd.f32 %v585, %v651
        %v716 = vadd.f32 %v586, %v652
        %v717 = vadd.f32 %v587, %v653
        %v718 = vadd.f32 %v588, %v654
        %v719 = vadd.f32 %v589, %v655
        %v720 = vadd.f32 %v590, %v656
        %v721 = vadd.f32 %v591, %v657
        %v722 = vadd.f32 %v592, %v658
        %v723 = vadd.f32 %v593, %v659
        %v724 = vadd.f32 %v594, %v660
        %v725 = vadd.f32 %v595, %v661
        %v726 = vadd.f32 %v596, %v662
        %v727 = vadd.f32 %v597, %v663
        %v728 = vadd.f32 %v598, %v664
        %v729 = vadd.f32 %v599, %v665
        %v730 = vadd.f32 %v600, %v666
        %v731 = vadd.f32 %v601, %v667
        %v732 = vadd.f32 %v602, %v668
        %v733 = vadd.f32 %v603, %v669
        %v734 = vadd.f32 %v604, %v670
        %v735 = vadd.f32 %v605, %v671
        %v736 = vadd.f32 %v606, %v672
        %v737 = vadd.f32 %v607, %v673
        %v738 = vadd.f32 %v608, %v674
        %v739 = vadd.f32 %v609, %v675
        %v740 = vadd.f32 %v610, %v676
        %v741 = vadd.f32 %v611, %v677
        %v742 = vadd.f32 %v612, %v678
        %v743 = vadd.f32 %v613, %v679
        %v744 = vadd.f32 %v614, %v680
        %v745 = vadd.f32 %v615, %v681
        %v746 = vadd.f32 %v616, %v682
        %v747 = vadd.f32 %v617, %v683
        %v748 = vadd.f32 %v618, %v684
        %v749 = vadd.f32 %v619, %v685
        %v750 = vadd.f32 %v620, %v686
        %v751 = vadd.f32 %v621, %v687
        %v752 = vadd.f32 %v622, %v688
        %v753 = vadd.f32 %v623, %v689
        %v754 = vadd.f32 %v624, %v690
        %v755 = vadd.f32 %v625, %v691
        %v756 = vadd.f32 %v626, %v692
        %v757 = vadd.f32 %v627, %v693
        %v758 = vadd.f32 %v628, %v694
        %v759 = vadd.f32 %v629, %v695
        %v760 = vadd.f32 %v630, %v696
        %v761 = vadd.f32 %v631, %v697
        %762 = vst [vmem:[%s502] sm:$0xff] %v698
        %763 = vst [vmem:[%s502 + $0x8] sm:$0xff] %v699
        %764 = vst [vmem:[%s502 + $0x10] sm:$0xff] %v700
        %765 = vst [vmem:[%s502 + $0x18] sm:$0xff] %v701
        %766 = vst [vmem:[%s502 + $0x20] sm:$0xff] %v702
        %767 = vst [vmem:[%s502 + $0x28] sm:$0xff] %v703
        %768 = vst [vmem:[%s502 + $0x30] sm:$0xff] %v704
        %769 = vst [vmem:[%s502 + $0x38] sm:$0xff] %v705
        %770 = vst [vmem:[%s502 + $0x40] sm:$0xff] %v706
        %771 = vst [vmem:[%s502 + $0x48] sm:$0xff] %v707
        %772 = vst [vmem:[%s502 + $0x50] sm:$0xff] %v708
        %773 = vst [vmem:[%s502 + $0x58] sm:$0xff] %v709
        %774 = vst [vmem:[%s502 + $0x60] sm:$0xff] %v710
        %775 = vst [vmem:[%s502 + $0x68] sm:$0xff] %v711
        %776 = vst [vmem:[%s502 + $0x70] sm:$0xff] %v712
        %777 = vst [vmem:[%s502 + $0x78] sm:$0xff] %v713
        %778 = vst [vmem:[%s502 + $0x80] sm:$0xff] %v714
        %779 = vst [vmem:[%s502 + $0x88] sm:$0xff] %v715
        %780 = vst [vmem:[%s502 + $0x90] sm:$0xff] %v716
        %781 = vst [vmem:[%s502 + $0x98] sm:$0xff] %v717
        %782 = vst [vmem:[%s502 + $0xa0] sm:$0xff] %v718
        %783 = vst [vmem:[%s502 + $0xa8] sm:$0xff] %v719
        %784 = vst [vmem:[%s502 + $0xb0] sm:$0xff] %v720
        %785 = vst [vmem:[%s502 + $0xb8] sm:$0xff] %v721
        %786 = vst [vmem:[%s502 + $0xc0] sm:$0xff] %v722
        %787 = vst [vmem:[%s502 + $0xc8] sm:$0xff] %v723
        %788 = vst [vmem:[%s502 + $0xd0] sm:$0xff] %v724
        %789 = vst [vmem:[%s502 + $0xd8] sm:$0xff] %v725
        %790 = vst [vmem:[%s502 + $0xe0] sm:$0xff] %v726
        %791 = vst [vmem:[%s502 + $0xe8] sm:$0xff] %v727
        %792 = vst [vmem:[%s502 + $0xf0] sm:$0xff] %v728
        %793 = vst [vmem:[%s502 + $0xf8] sm:$0xff] %v729
        %794 = vst [vmem:[%s502 + $0x120] sm:$0xff] %v730
        %795 = vst [vmem:[%s502 + $0x128] sm:$0xff] %v731
        %796 = vst [vmem:[%s502 + $0x130] sm:$0xff] %v732
        %797 = vst [vmem:[%s502 + $0x138] sm:$0xff] %v733
        %798 = vst [vmem:[%s502 + $0x140] sm:$0xff] %v734
        %799 = vst [vmem:[%s502 + $0x148] sm:$0xff] %v735
        %800 = vst [vmem:[%s502 + $0x150] sm:$0xff] %v736
        %801 = vst [vmem:[%s502 + $0x158] sm:$0xff] %v737
        %802 = vst [vmem:[%s502 + $0x160] sm:$0xff] %v738
        %803 = vst [vmem:[%s502 + $0x168] sm:$0xff] %v739
        %804 = vst [vmem:[%s502 + $0x170] sm:$0xff] %v740
        %805 = vst [vmem:[%s502 + $0x178] sm:$0xff] %v741
        %806 = vst [vmem:[%s502 + $0x180] sm:$0xff] %v742
        %807 = vst [vmem:[%s502 + $0x188] sm:$0xff] %v743
        %808 = vst [vmem:[%s502 + $0x190] sm:$0xff] %v744
        %809 = vst [vmem:[%s502 + $0x198] sm:$0xff] %v745
        %810 = vst [vmem:[%s502 + $0x1a0] sm:$0xff] %v746
        %811 = vst [vmem:[%s502 + $0x1a8] sm:$0xff] %v747
        %812 = vst [vmem:[%s502 + $0x1b0] sm:$0xff] %v748
        %813 = vst [vmem:[%s502 + $0x1b8] sm:$0xff] %v749
        %814 = vst [vmem:[%s502 + $0x1c0] sm:$0xff] %v750
        %815 = vst [vmem:[%s502 + $0x1c8] sm:$0xff] %v751
        %816 = vst [vmem:[%s502 + $0x1d0] sm:$0xff] %v752
        %817 = vst [vmem:[%s502 + $0x1d8] sm:$0xff] %v753
        %818 = vst [vmem:[%s502 + $0x1e0] sm:$0xff] %v754
        %819 = vst [vmem:[%s502 + $0x1e8] sm:$0xff] %v755
        %820 = vst [vmem:[%s502 + $0x1f0] sm:$0xff] %v756
        %821 = vst [vmem:[%s502 + $0x1f8] sm:$0xff] %v757
        %822 = vst [vmem:[%s502 + $0x200] sm:$0xff] %v758
        %823 = vst [vmem:[%s502 + $0x208] sm:$0xff] %v759
        %824 = vst [vmem:[%s502 + $0x210] sm:$0xff] %v760
        %825 = vst [vmem:[%s502 + $0x218] sm:$0xff] %v761
      $region48: #{_train.1} parent=39 // pred_fallthru
        _
      %v826 = vld [vmem:[#allocation2] sm:$0xff]
      %v827 = vld [vmem:[#allocation2 + $0x8] sm:$0xff]
      %v828 = vld [vmem:[#allocation2 + $0x10] sm:$0xff]
      %v829 = vld [vmem:[#allocation2 + $0x18] sm:$0xff]
      %v830 = vld [vmem:[#allocation2 + $0x20] sm:$0xff]
      %v831 = vld [vmem:[#allocation2 + $0x28] sm:$0xff]
      %v832 = vld [vmem:[#allocation2 + $0x30] sm:$0xff]
      %v833 = vld [vmem:[#allocation2 + $0x38] sm:$0xff]
      %v834 = vld [vmem:[#allocation2 + $0x40] sm:$0xff]
      %v835 = vld [vmem:[#allocation2 + $0x48] sm:$0xff]
      %v836 = vld [vmem:[#allocation2 + $0x50] sm:$0xff]
      %v837 = vld [vmem:[#allocation2 + $0x58] sm:$0xff]
      %v838 = vld [vmem:[#allocation2 + $0x60] sm:$0xff]
      %v839 = vld [vmem:[#allocation2 + $0x68] sm:$0xff]
      %v840 = vld [vmem:[#allocation2 + $0x70] sm:$0xff]
      %v841 = vld [vmem:[#allocation2 + $0x78] sm:$0xff]
      %v842 = vld [vmem:[#allocation2 + $0x80] sm:$0xff]
      %v843 = vld [vmem:[#allocation2 + $0x88] sm:$0xff]
      %v844 = vld [vmem:[#allocation2 + $0x90] sm:$0xff]
      %v845 = vld [vmem:[#allocation2 + $0x98] sm:$0xff]
      %v846 = vld [vmem:[#allocation2 + $0xa0] sm:$0xff]
      %v847 = vld [vmem:[#allocation2 + $0xa8] sm:$0xff]
      %v848 = vld [vmem:[#allocation2 + $0xb0] sm:$0xff]
      %v849 = vld [vmem:[#allocation2 + $0xb8] sm:$0xff]
      %v850 = vld [vmem:[#allocation2 + $0xc0] sm:$0xff]
      %v851 = vld [vmem:[#allocation2 + $0xc8] sm:$0xff]
      %v852 = vld [vmem:[#allocation2 + $0xd0] sm:$0xff]
      %v853 = vld [vmem:[#allocation2 + $0xd8] sm:$0xff]
      %v854 = vld [vmem:[#allocation2 + $0xe0] sm:$0xff]
      %v855 = vld [vmem:[#allocation2 + $0xe8] sm:$0xff]
      %v856 = vld [vmem:[#allocation2 + $0xf0] sm:$0xff]
      %v857 = vld [vmem:[#allocation2 + $0xf8] sm:$0xff]
      %v858 = vld [vmem:[#allocation2 + $0x100] sm:$0xff]
      %v859 = vld [vmem:[#allocation2 + $0x108] sm:$0xff]
      %v860 = vld [vmem:[#allocation2 + $0x110] sm:$0xff]
      %v861 = vld [vmem:[#allocation2 + $0x118] sm:$0xff]
      %v862 = vld [vmem:[#allocation2 + $0x120] sm:$0xff]
      %v863 = vld [vmem:[#allocation2 + $0x128] sm:$0xff]
      %v864 = vld [vmem:[#allocation2 + $0x130] sm:$0xff]
      %v865 = vld [vmem:[#allocation2 + $0x138] sm:$0xff]
      %v866 = vld [vmem:[#allocation2 + $0x140] sm:$0xff]
      %v867 = vld [vmem:[#allocation2 + $0x148] sm:$0xff]
      %v868 = vld [vmem:[#allocation2 + $0x150] sm:$0xff]
      %v869 = vld [vmem:[#allocation2 + $0x158] sm:$0xff]
      %v870 = vld [vmem:[#allocation2 + $0x160] sm:$0xff]
      %v871 = vld [vmem:[#allocation2 + $0x168] sm:$0xff]
      %v872 = vld [vmem:[#allocation2 + $0x170] sm:$0xff]
      %v873 = vld [vmem:[#allocation2 + $0x178] sm:$0xff]
      %v874 = vld [vmem:[#allocation2 + $0x180] sm:$0xff]
      %v875 = vld [vmem:[#allocation2 + $0x188] sm:$0xff]
      %v876 = vld [vmem:[#allocation2 + $0x190] sm:$0xff]
      %v877 = vld [vmem:[#allocation2 + $0x198] sm:$0xff]
      %v878 = vld [vmem:[#allocation2 + $0x1a0] sm:$0xff]
      %v879 = vld [vmem:[#allocation2 + $0x1a8] sm:$0xff]
      %v880 = vld [vmem:[#allocation2 + $0x1b0] sm:$0xff]
      %v881 = vld [vmem:[#allocation2 + $0x1b8] sm:$0xff]
      %v882 = vld [vmem:[#allocation2 + $0x1c0] sm:$0xff]
      %v883 = vld [vmem:[#allocation2 + $0x1c8] sm:$0xff]
      %v884 = vld [vmem:[#allocation2 + $0x1d0] sm:$0xff]
      %v885 = vld [vmem:[#allocation2 + $0x1d8] sm:$0xff]
      %v886 = vld [vmem:[#allocation2 + $0x1e0] sm:$0xff]
      %v887 = vld [vmem:[#allocation2 + $0x1e8] sm:$0xff]
      %v888 = vld [vmem:[#allocation2 + $0x1f0] sm:$0xff]
      %v889 = vld [vmem:[#allocation2 + $0x1f8] sm:$0xff]
      %v890 = vld [vmem:[#allocation2 + $0x200] sm:$0xff]
      %v891 = vld [vmem:[#allocation2 + $0x208] sm:$0xff]
      %v892 = vld [vmem:[#allocation2 + $0x210] sm:$0xff]
      %v893 = vld [vmem:[#allocation2 + $0x218] sm:$0xff]
      %v894 = vld [vmem:[#allocation2 + $0x220] sm:$0xff]
      %v895 = vld [vmem:[#allocation2 + $0x228] sm:$0xff]
      %v896 = vld [vmem:[#allocation2 + $0x230] sm:$0xff]
      %v897 = vld [vmem:[#allocation2 + $0x238] sm:$0xff]
      %vm970 = vcmask 1040384
      %v971 = vrot.slane %v826, 7
      %v972 = vrot.slane %v827, 7
      %v973 = vsel %vm970, %v971, %v972
      %v974 = vrot.slane %v828, 7
      %v975 = vrot.slane %v829, 7
      %v976 = vsel %vm970, %v974, %v975
      %v977 = vrot.slane %v830, 7
      %v978 = vrot.slane %v831, 7
      %v979 = vsel %vm970, %v977, %v978
      %v980 = vrot.slane %v832, 7
      %v981 = vrot.slane %v833, 7
      %v982 = vsel %vm970, %v980, %v981
      %v983 = vrot.slane %v834, 7
      %v984 = vrot.slane %v835, 7
      %v985 = vsel %vm970, %v983, %v984
      %v986 = vrot.slane %v836, 7
      %v987 = vrot.slane %v837, 7
      %v988 = vsel %vm970, %v986, %v987
      %v989 = vrot.slane %v838, 7
      %v990 = vrot.slane %v839, 7
      %v991 = vsel %vm970, %v989, %v990
      %v992 = vrot.slane %v840, 7
      %v993 = vrot.slane %v841, 7
      %v994 = vsel %vm970, %v992, %v993
      %v995 = vrot.slane %v842, 7
      %v996 = vrot.slane %v843, 7
      %v997 = vsel %vm970, %v995, %v996
      %v998 = vrot.slane %v844, 7
      %v999 = vrot.slane %v845, 7
      %v1000 = vsel %vm970, %v998, %v999
      %v1001 = vrot.slane %v846, 7
      %v1002 = vrot.slane %v847, 7
      %v1003 = vsel %vm970, %v1001, %v1002
      %v1004 = vrot.slane %v848, 7
      %v1005 = vrot.slane %v849, 7
      %v1006 = vsel %vm970, %v1004, %v1005
      %v1007 = vrot.slane %v850, 7
      %v1008 = vrot.slane %v851, 7
      %v1009 = vsel %vm970, %v1007, %v1008
      %v1010 = vrot.slane %v852, 7
      %v1011 = vrot.slane %v853, 7
      %v1012 = vsel %vm970, %v1010, %v1011
      %v1013 = vrot.slane %v854, 7
      %v1014 = vrot.slane %v855, 7
      %v1015 = vsel %vm970, %v1013, %v1014
      %v1016 = vrot.slane %v856, 7
      %v1017 = vrot.slane %v857, 7
      %v1018 = vsel %vm970, %v1016, %v1017
      %v1019 = vrot.slane %v858, 7
      %v1020 = vrot.slane %v859, 7
      %v1021 = vsel %vm970, %v1019, %v1020
      %v1022 = vrot.slane %v860, 7
      %v1023 = vrot.slane %v861, 7
      %v1024 = vsel %vm970, %v1022, %v1023
      %v1025 = vrot.slane %v862, 7
      %v1026 = vrot.slane %v863, 7
      %v1027 = vsel %vm970, %v1025, %v1026
      %v1028 = vrot.slane %v864, 7
      %v1029 = vrot.slane %v865, 7
      %v1030 = vsel %vm970, %v1028, %v1029
      %v1031 = vrot.slane %v866, 7
      %v1032 = vrot.slane %v867, 7
      %v1033 = vsel %vm970, %v1031, %v1032
      %v1034 = vrot.slane %v868, 7
      %v1035 = vrot.slane %v869, 7
      %v1036 = vsel %vm970, %v1034, %v1035
      %v1037 = vrot.slane %v870, 7
      %v1038 = vrot.slane %v871, 7
      %v1039 = vsel %vm970, %v1037, %v1038
      %v1040 = vrot.slane %v872, 7
      %v1041 = vrot.slane %v873, 7
      %v1042 = vsel %vm970, %v1040, %v1041
      %v1043 = vrot.slane %v874, 7
      %v1044 = vrot.slane %v875, 7
      %v1045 = vsel %vm970, %v1043, %v1044
      %v1046 = vrot.slane %v876, 7
      %v1047 = vrot.slane %v877, 7
      %v1048 = vsel %vm970, %v1046, %v1047
      %v1049 = vrot.slane %v878, 7
      %v1050 = vrot.slane %v879, 7
      %v1051 = vsel %vm970, %v1049, %v1050
      %v1052 = vrot.slane %v880, 7
      %v1053 = vrot.slane %v881, 7
      %v1054 = vsel %vm970, %v1052, %v1053
      %v1055 = vrot.slane %v882, 7
      %v1056 = vrot.slane %v883, 7
      %v1057 = vsel %vm970, %v1055, %v1056
      %v1058 = vrot.slane %v884, 7
      %v1059 = vrot.slane %v885, 7
      %v1060 = vsel %vm970, %v1058, %v1059
      %v1061 = vrot.slane %v886, 7
      %v1062 = vrot.slane %v887, 7
      %v1063 = vsel %vm970, %v1061, %v1062
      %v1064 = vrot.slane %v888, 7
      %v1065 = vrot.slane %v889, 7
      %v1066 = vsel %vm970, %v1064, %v1065
      %v1067 = vrot.slane %v890, 7
      %v1068 = vrot.slane %v891, 7
      %v1069 = vsel %vm970, %v1067, %v1068
      %v1070 = vrot.slane %v892, 7
      %v1071 = vrot.slane %v893, 7
      %v1072 = vsel %vm970, %v1070, %v1071
      %v1073 = vrot.slane %v894, 7
      %v1074 = vrot.slane %v895, 7
      %v1075 = vsel %vm970, %v1073, %v1074
      %v1076 = vrot.slane %v896, 7
      %v1077 = vrot.slane %v897, 7
      %v1078 = vsel %vm970, %v1076, %v1077
      %v1151 = vsel %vm970, 0.0, %v971
      %v1152 = vsel %vm970, 0.0, %v974
      %v1153 = vsel %vm970, 0.0, %v977
      %v1154 = vsel %vm970, 0.0, %v980
      %v1155 = vsel %vm970, 0.0, %v983
      %v1156 = vsel %vm970, 0.0, %v986
      %v1157 = vsel %vm970, 0.0, %v989
      %v1158 = vsel %vm970, 0.0, %v992
      %v1159 = vsel %vm970, 0.0, %v995
      %v1160 = vsel %vm970, 0.0, %v998
      %v1161 = vsel %vm970, 0.0, %v1001
      %v1162 = vsel %vm970, 0.0, %v1004
      %v1163 = vsel %vm970, 0.0, %v1007
      %v1164 = vsel %vm970, 0.0, %v1010
      %v1165 = vsel %vm970, 0.0, %v1013
      %v1166 = vsel %vm970, 0.0, %v1016
      %v1167 = vsel %vm970, 0.0, %v1019
      %v1168 = vsel %vm970, 0.0, %v1022
      %v1169 = vsel %vm970, 0.0, %v1025
      %v1170 = vsel %vm970, 0.0, %v1028
      %v1171 = vsel %vm970, 0.0, %v1031
      %v1172 = vsel %vm970, 0.0, %v1034
      %v1173 = vsel %vm970, 0.0, %v1037
      %v1174 = vsel %vm970, 0.0, %v1040
      %v1175 = vsel %vm970, 0.0, %v1043
      %v1176 = vsel %vm970, 0.0, %v1046
      %v1177 = vsel %vm970, 0.0, %v1049
      %v1178 = vsel %vm970, 0.0, %v1052
      %v1179 = vsel %vm970, 0.0, %v1055
      %v1180 = vsel %vm970, 0.0, %v1058
      %v1181 = vsel %vm970, 0.0, %v1061
      %v1182 = vsel %vm970, 0.0, %v1064
      %v1183 = vsel %vm970, 0.0, %v1067
      %v1184 = vsel %vm970, 0.0, %v1070
      %v1185 = vsel %vm970, 0.0, %v1073
      %v1186 = vsel %vm970, 0.0, %v1076
      %vm1187 = vcmask 1046528
      %v1188 = vrot.slane %v826, 1
      %v1189 = vrot.slane %v827, 1
      %v1190 = vsel %vm1187, %v1188, %v1189
      %v1191 = vrot.slane %v828, 1
      %v1192 = vrot.slane %v829, 1
      %v1193 = vsel %vm1187, %v1191, %v1192
      %v1194 = vrot.slane %v830, 1
      %v1195 = vrot.slane %v831, 1
      %v1196 = vsel %vm1187, %v1194, %v1195
      %v1197 = vrot.slane %v832, 1
      %v1198 = vrot.slane %v833, 1
      %v1199 = vsel %vm1187, %v1197, %v1198
      %v1200 = vrot.slane %v834, 1
      %v1201 = vrot.slane %v835, 1
      %v1202 = vsel %vm1187, %v1200, %v1201
      %v1203 = vrot.slane %v836, 1
      %v1204 = vrot.slane %v837, 1
      %v1205 = vsel %vm1187, %v1203, %v1204
      %v1206 = vrot.slane %v838, 1
      %v1207 = vrot.slane %v839, 1
      %v1208 = vsel %vm1187, %v1206, %v1207
      %v1209 = vrot.slane %v840, 1
      %v1210 = vrot.slane %v841, 1
      %v1211 = vsel %vm1187, %v1209, %v1210
      %v1212 = vrot.slane %v842, 1
      %v1213 = vrot.slane %v843, 1
      %v1214 = vsel %vm1187, %v1212, %v1213
      %v1215 = vrot.slane %v844, 1
      %v1216 = vrot.slane %v845, 1
      %v1217 = vsel %vm1187, %v1215, %v1216
      %v1218 = vrot.slane %v846, 1
      %v1219 = vrot.slane %v847, 1
      %v1220 = vsel %vm1187, %v1218, %v1219
      %v1221 = vrot.slane %v848, 1
      %v1222 = vrot.slane %v849, 1
      %v1223 = vsel %vm1187, %v1221, %v1222
      %v1224 = vrot.slane %v850, 1
      %v1225 = vrot.slane %v851, 1
      %v1226 = vsel %vm1187, %v1224, %v1225
      %v1227 = vrot.slane %v852, 1
      %v1228 = vrot.slane %v853, 1
      %v1229 = vsel %vm1187, %v1227, %v1228
      %v1230 = vrot.slane %v854, 1
      %v1231 = vrot.slane %v855, 1
      %v1232 = vsel %vm1187, %v1230, %v1231
      %v1233 = vrot.slane %v856, 1
      %v1234 = vrot.slane %v857, 1
      %v1235 = vsel %vm1187, %v1233, %v1234
      %v1236 = vrot.slane %v858, 1
      %v1237 = vrot.slane %v859, 1
      %v1238 = vsel %vm1187, %v1236, %v1237
      %v1239 = vrot.slane %v860, 1
      %v1240 = vrot.slane %v861, 1
      %v1241 = vsel %vm1187, %v1239, %v1240
      %v1242 = vrot.slane %v862, 1
      %v1243 = vrot.slane %v863, 1
      %v1244 = vsel %vm1187, %v1242, %v1243
      %v1245 = vrot.slane %v864, 1
      %v1246 = vrot.slane %v865, 1
      %v1247 = vsel %vm1187, %v1245, %v1246
      %v1248 = vrot.slane %v866, 1
      %v1249 = vrot.slane %v867, 1
      %v1250 = vsel %vm1187, %v1248, %v1249
      %v1251 = vrot.slane %v868, 1
      %v1252 = vrot.slane %v869, 1
      %v1253 = vsel %vm1187, %v1251, %v1252
      %v1254 = vrot.slane %v870, 1
      %v1255 = vrot.slane %v871, 1
      %v1256 = vsel %vm1187, %v1254, %v1255
      %v1257 = vrot.slane %v872, 1
      %v1258 = vrot.slane %v873, 1
      %v1259 = vsel %vm1187, %v1257, %v1258
      %v1260 = vrot.slane %v874, 1
      %v1261 = vrot.slane %v875, 1
      %v1262 = vsel %vm1187, %v1260, %v1261
      %v1263 = vrot.slane %v876, 1
      %v1264 = vrot.slane %v877, 1
      %v1265 = vsel %vm1187, %v1263, %v1264
      %v1266 = vrot.slane %v878, 1
      %v1267 = vrot.slane %v879, 1
      %v1268 = vsel %vm1187, %v1266, %v1267
      %v1269 = vrot.slane %v880, 1
      %v1270 = vrot.slane %v881, 1
      %v1271 = vsel %vm1187, %v1269, %v1270
      %v1272 = vrot.slane %v882, 1
      %v1273 = vrot.slane %v883, 1
      %v1274 = vsel %vm1187, %v1272, %v1273
      %v1275 = vrot.slane %v884, 1
      %v1276 = vrot.slane %v885, 1
      %v1277 = vsel %vm1187, %v1275, %v1276
      %v1278 = vrot.slane %v886, 1
      %v1279 = vrot.slane %v887, 1
      %v1280 = vsel %vm1187, %v1278, %v1279
      %v1281 = vrot.slane %v888, 1
      %v1282 = vrot.slane %v889, 1
      %v1283 = vsel %vm1187, %v1281, %v1282
      %v1284 = vrot.slane %v890, 1
      %v1285 = vrot.slane %v891, 1
      %v1286 = vsel %vm1187, %v1284, %v1285
      %v1287 = vrot.slane %v892, 1
      %v1288 = vrot.slane %v893, 1
      %v1289 = vsel %vm1187, %v1287, %v1288
      %v1290 = vrot.slane %v894, 1
      %v1291 = vrot.slane %v895, 1
      %v1292 = vsel %vm1187, %v1290, %v1291
      %v1293 = vrot.slane %v896, 1
      %v1294 = vrot.slane %v897, 1
      %v1295 = vsel %vm1187, %v1293, %v1294
      %v1368 = vsel %vm1187, %v1189, 0.0
      %v1369 = vsel %vm1187, %v1192, 0.0
      %v1370 = vsel %vm1187, %v1195, 0.0
      %v1371 = vsel %vm1187, %v1198, 0.0
      %v1372 = vsel %vm1187, %v1201, 0.0
      %v1373 = vsel %vm1187, %v1204, 0.0
      %v1374 = vsel %vm1187, %v1207, 0.0
      %v1375 = vsel %vm1187, %v1210, 0.0
      %v1376 = vsel %vm1187, %v1213, 0.0
      %v1377 = vsel %vm1187, %v1216, 0.0
      %v1378 = vsel %vm1187, %v1219, 0.0
      %v1379 = vsel %vm1187, %v1222, 0.0
      %v1380 = vsel %vm1187, %v1225, 0.0
      %v1381 = vsel %vm1187, %v1228, 0.0
      %v1382 = vsel %vm1187, %v1231, 0.0
      %v1383 = vsel %vm1187, %v1234, 0.0
      %v1384 = vsel %vm1187, %v1237, 0.0
      %v1385 = vsel %vm1187, %v1240, 0.0
      %v1386 = vsel %vm1187, %v1243, 0.0
      %v1387 = vsel %vm1187, %v1246, 0.0
      %v1388 = vsel %vm1187, %v1249, 0.0
      %v1389 = vsel %vm1187, %v1252, 0.0
      %v1390 = vsel %vm1187, %v1255, 0.0
      %v1391 = vsel %vm1187, %v1258, 0.0
      %v1392 = vsel %vm1187, %v1261, 0.0
      %v1393 = vsel %vm1187, %v1264, 0.0
      %v1394 = vsel %vm1187, %v1267, 0.0
      %v1395 = vsel %vm1187, %v1270, 0.0
      %v1396 = vsel %vm1187, %v1273, 0.0
      %v1397 = vsel %vm1187, %v1276, 0.0
      %v1398 = vsel %vm1187, %v1279, 0.0
      %v1399 = vsel %vm1187, %v1282, 0.0
      %v1400 = vsel %vm1187, %v1285, 0.0
      %v1401 = vsel %vm1187, %v1288, 0.0
      %v1402 = vsel %vm1187, %v1291, 0.0
      %v1403 = vsel %vm1187, %v1294, 0.0
      %v1404 = vpack.c.bf16 %v973, %v1151
      %v1405 = vpack.c.bf16 %v976, %v1152
      %v1406 = vpack.c.bf16 %v979, %v1153
      %v1407 = vpack.c.bf16 %v982, %v1154
      %v1408 = vpack.c.bf16 %v985, %v1155
      %v1409 = vpack.c.bf16 %v988, %v1156
      %v1410 = vpack.c.bf16 %v991, %v1157
      %v1411 = vpack.c.bf16 %v994, %v1158
      %v1412 = vpack.c.bf16 %v997, %v1159
      %v1413 = vpack.c.bf16 %v1000, %v1160
      %v1414 = vpack.c.bf16 %v1003, %v1161
      %v1415 = vpack.c.bf16 %v1006, %v1162
      %v1416 = vpack.c.bf16 %v1009, %v1163
      %v1417 = vpack.c.bf16 %v1012, %v1164
      %v1418 = vpack.c.bf16 %v1015, %v1165
      %v1419 = vpack.c.bf16 %v1018, %v1166
      %v1420 = vpack.c.bf16 %v1021, %v1167
      %v1421 = vpack.c.bf16 %v1024, %v1168
      %v1422 = vpack.c.bf16 %v1027, %v1169
      %v1423 = vpack.c.bf16 %v1030, %v1170
      %v1424 = vpack.c.bf16 %v1033, %v1171
      %v1425 = vpack.c.bf16 %v1036, %v1172
      %v1426 = vpack.c.bf16 %v1039, %v1173
      %v1427 = vpack.c.bf16 %v1042, %v1174
      %v1428 = vpack.c.bf16 %v1045, %v1175
      %v1429 = vpack.c.bf16 %v1048, %v1176
      %v1430 = vpack.c.bf16 %v1051, %v1177
      %v1431 = vpack.c.bf16 %v1054, %v1178
      %v1432 = vpack.c.bf16 %v1057, %v1179
      %v1433 = vpack.c.bf16 %v1060, %v1180
      %v1434 = vpack.c.bf16 %v1063, %v1181
      %v1435 = vpack.c.bf16 %v1066, %v1182
      %v1436 = vpack.c.bf16 %v1069, %v1183
      %v1437 = vpack.c.bf16 %v1072, %v1184
      %v1438 = vpack.c.bf16 %v1075, %v1185
      %v1439 = vpack.c.bf16 %v1078, %v1186
      %v1440 = vpack.c.bf16 %v827, %v826
      %v1441 = vpack.c.bf16 %v829, %v828
      %v1442 = vpack.c.bf16 %v831, %v830
      %v1443 = vpack.c.bf16 %v833, %v832
      %v1444 = vpack.c.bf16 %v835, %v834
      %v1445 = vpack.c.bf16 %v837, %v836
      %v1446 = vpack.c.bf16 %v839, %v838
      %v1447 = vpack.c.bf16 %v841, %v840
      %v1448 = vpack.c.bf16 %v843, %v842
      %v1449 = vpack.c.bf16 %v845, %v844
      %v1450 = vpack.c.bf16 %v847, %v846
      %v1451 = vpack.c.bf16 %v849, %v848
      %v1452 = vpack.c.bf16 %v851, %v850
      %v1453 = vpack.c.bf16 %v853, %v852
      %v1454 = vpack.c.bf16 %v855, %v854
      %v1455 = vpack.c.bf16 %v857, %v856
      %v1456 = vpack.c.bf16 %v859, %v858
      %v1457 = vpack.c.bf16 %v861, %v860
      %v1458 = vpack.c.bf16 %v863, %v862
      %v1459 = vpack.c.bf16 %v865, %v864
      %v1460 = vpack.c.bf16 %v867, %v866
      %v1461 = vpack.c.bf16 %v869, %v868
      %v1462 = vpack.c.bf16 %v871, %v870
      %v1463 = vpack.c.bf16 %v873, %v872
      %v1464 = vpack.c.bf16 %v875, %v874
      %v1465 = vpack.c.bf16 %v877, %v876
      %v1466 = vpack.c.bf16 %v879, %v878
      %v1467 = vpack.c.bf16 %v881, %v880
      %v1468 = vpack.c.bf16 %v883, %v882
      %v1469 = vpack.c.bf16 %v885, %v884
      %v1470 = vpack.c.bf16 %v887, %v886
      %v1471 = vpack.c.bf16 %v889, %v888
      %v1472 = vpack.c.bf16 %v891, %v890
      %v1473 = vpack.c.bf16 %v893, %v892
      %v1474 = vpack.c.bf16 %v895, %v894
      %v1475 = vpack.c.bf16 %v897, %v896
      %v1476 = vpack.c.bf16 %v1368, %v1190
      %v1477 = vpack.c.bf16 %v1369, %v1193
      %v1478 = vpack.c.bf16 %v1370, %v1196
      %v1479 = vpack.c.bf16 %v1371, %v1199
      %v1480 = vpack.c.bf16 %v1372, %v1202
      %v1481 = vpack.c.bf16 %v1373, %v1205
      %v1482 = vpack.c.bf16 %v1374, %v1208
      %v1483 = vpack.c.bf16 %v1375, %v1211
      %v1484 = vpack.c.bf16 %v1376, %v1214
      %v1485 = vpack.c.bf16 %v1377, %v1217
      %v1486 = vpack.c.bf16 %v1378, %v1220
      %v1487 = vpack.c.bf16 %v1379, %v1223
      %v1488 = vpack.c.bf16 %v1380, %v1226
      %v1489 = vpack.c.bf16 %v1381, %v1229
      %v1490 = vpack.c.bf16 %v1382, %v1232
      %v1491 = vpack.c.bf16 %v1383, %v1235
      %v1492 = vpack.c.bf16 %v1384, %v1238
      %v1493 = vpack.c.bf16 %v1385, %v1241
      %v1494 = vpack.c.bf16 %v1386, %v1244
      %v1495 = vpack.c.bf16 %v1387, %v1247
      %v1496 = vpack.c.bf16 %v1388, %v1250
      %v1497 = vpack.c.bf16 %v1389, %v1253
      %v1498 = vpack.c.bf16 %v1390, %v1256
      %v1499 = vpack.c.bf16 %v1391, %v1259
      %v1500 = vpack.c.bf16 %v1392, %v1262
      %v1501 = vpack.c.bf16 %v1393, %v1265
      %v1502 = vpack.c.bf16 %v1394, %v1268
      %v1503 = vpack.c.bf16 %v1395, %v1271
      %v1504 = vpack.c.bf16 %v1396, %v1274
      %v1505 = vpack.c.bf16 %v1397, %v1277
      %v1506 = vpack.c.bf16 %v1398, %v1280
      %v1507 = vpack.c.bf16 %v1399, %v1283
      %v1508 = vpack.c.bf16 %v1400, %v1286
      %v1509 = vpack.c.bf16 %v1401, %v1289
      %v1510 = vpack.c.bf16 %v1402, %v1292
      %v1511 = vpack.c.bf16 %v1403, %v1295
      %v1512 = vld [vmem:[%s222] sm:$0xf]
      %v1513 = vld [vmem:[%s222 + $0x4] sm:$0xf]
      %v1514 = vld [vmem:[%s222 + $0x8] sm:$0xf]
      %v1515 = vld [vmem:[%s222 + $0xc] sm:$0xf]
      %v1516 = vld [vmem:[%s222 + $0x10] sm:$0xf]
      %v1517 = vld [vmem:[%s222 + $0x14] sm:$0xf]
      %v1518 = vld [vmem:[%s222 + $0x18] sm:$0xf]
      %v1519 = vld [vmem:[%s222 + $0x1c] sm:$0xf]
      %v1520 = vld [vmem:[%s222 + $0x20] sm:$0xf]
      %v1521 = vld [vmem:[%s222 + $0x24] sm:$0xf]
      %v1522 = vld [vmem:[%s222 + $0x28] sm:$0xf]
      %v1523 = vld [vmem:[%s222 + $0x2c] sm:$0xf]
      %v1524 = vld [vmem:[%s222 + $0x30] sm:$0xf]
      %v1525 = vld [vmem:[%s222 + $0x34] sm:$0xf]
      %v1526 = vld [vmem:[%s222 + $0x38] sm:$0xf]
      %v1527 = vld [vmem:[%s222 + $0x3c] sm:$0xf]
      %s1528 = scalar_lea.vmem %s222, 64
      %v1529 = vld [vmem:[%s1528] sm:$0xf]
      %v1530 = vld [vmem:[%s1528 + $0x4] sm:$0xf]
      %v1531 = vld [vmem:[%s1528 + $0x8] sm:$0xf]
      %v1532 = vld [vmem:[%s1528 + $0xc] sm:$0xf]
      %v1533 = vld [vmem:[%s1528 + $0x10] sm:$0xf]
      %v1534 = vld [vmem:[%s1528 + $0x14] sm:$0xf]
      %v1535 = vld [vmem:[%s1528 + $0x18] sm:$0xf]
      %v1536 = vld [vmem:[%s1528 + $0x1c] sm:$0xf]
      %v1537 = vld [vmem:[%s1528 + $0x20] sm:$0xf]
      %v1538 = vld [vmem:[%s1528 + $0x24] sm:$0xf]
      %v1539 = vld [vmem:[%s1528 + $0x28] sm:$0xf]
      %v1540 = vld [vmem:[%s1528 + $0x2c] sm:$0xf]
      %v1541 = vld [vmem:[%s1528 + $0x30] sm:$0xf]
      %v1542 = vld [vmem:[%s1528 + $0x34] sm:$0xf]
      %v1543 = vld [vmem:[%s1528 + $0x38] sm:$0xf]
      %v1544 = vld [vmem:[%s1528 + $0x3c] sm:$0xf]
      %v1561 = vunpack.c.l.b16 %v1529
      %v1562 = vunpack.c.l.b16 %v1530
      %v1563 = vunpack.c.l.b16 %v1531
      %v1564 = vunpack.c.l.b16 %v1532
      %v1565 = vunpack.c.l.b16 %v1533
      %v1566 = vunpack.c.l.b16 %v1534
      %v1567 = vunpack.c.l.b16 %v1535
      %v1568 = vunpack.c.l.b16 %v1536
      %v1569 = vunpack.c.l.b16 %v1537
      %v1570 = vunpack.c.l.b16 %v1538
      %v1571 = vunpack.c.l.b16 %v1539
      %v1572 = vunpack.c.l.b16 %v1540
      %v1573 = vunpack.c.l.b16 %v1541
      %v1574 = vunpack.c.l.b16 %v1542
      %v1575 = vunpack.c.l.b16 %v1543
      %v1576 = vunpack.c.l.b16 %v1544
      %v1577 = vpack.c.b16 %v1562, %v1561
      %v1578 = vpack.c.b16 %v1564, %v1563
      %v1579 = vpack.c.b16 %v1566, %v1565
      %v1580 = vpack.c.b16 %v1568, %v1567
      %v1581 = vpack.c.b16 %v1570, %v1569
      %v1582 = vpack.c.b16 %v1572, %v1571
      %v1583 = vpack.c.b16 %v1574, %v1573
      %v1584 = vpack.c.b16 %v1576, %v1575
      %1593 = vmatprep.subr.bf16.mxu0 0
      %1594 = vmatpush1.bf16.msra.mxu0 %v1577
      %1595 = vmatprep.subr.bf16.mxu0 0
      %1596 = vmatpush1.bf16.msra.mxu0 %v1578
      %1597 = vmatprep.subr.bf16.mxu0 0
      %1598 = vmatpush1.bf16.msra.mxu0 %v1579
      %1599 = vmatprep.subr.bf16.mxu0 0
      %1600 = vmatpush1.bf16.msra.mxu0 %v1580
      %1601 = vmatprep.subr.bf16.mxu0 0
      %1602 = vmatpush1.bf16.msra.mxu0 %v1581
      %1603 = vmatprep.subr.bf16.mxu0 0
      %1604 = vmatpush1.bf16.msra.mxu0 %v1582
      %1605 = vmatprep.subr.bf16.mxu0 0
      %1606 = vmatpush1.bf16.msra.mxu0 %v1583
      %1607 = vmatprep.subr.bf16.mxu0 0
      %1608 = vmatpush1.bf16.msra.mxu0 %v1584
      %1609 = vmatprep.subr.bf16.mxu0 0
      %1610 = vmatpush1.bf16.msra.mxu0 0
      %1611 = vmatprep.subr.bf16.mxu0 0
      %1612 = vmatpush1.bf16.msra.mxu0 0
      %1613 = vmatprep.subr.bf16.mxu0 0
      %1614 = vmatpush1.bf16.msra.mxu0 0
      %1615 = vmatprep.subr.bf16.mxu0 0
      %1616 = vmatpush1.bf16.msra.mxu0 0
      %1617 = vmatprep.subr.bf16.mxu0 0
      %1618 = vmatpush1.bf16.msra.mxu0 0
      %1619 = vmatprep.subr.bf16.mxu0 0
      %1620 = vmatpush1.bf16.msra.mxu0 0
      %1621 = vmatprep.subr.bf16.mxu0 0
      %1622 = vmatpush1.bf16.msra.mxu0 0
      %1623 = vmatprep.subr.bf16.mxu0 0
      %1624 = vmatpush1.bf16.msra.mxu0 0
      %1625 = vmatprep.mubr.bf16.mxu0 0
      %1626 = vmatmul.mubr.bf16.gmra.mrb[0].mxu0 %v1440
      %v1627 = vpop.f32.mrb[0].mxu0
      %v1628 = vadd.f32 0.0, %v1627
      %v1629 = vpop.f32.mrb[0].mxu0
      %v1630 = vpop.f32.mrb[0].mxu0
      %v1631 = vadd.f32 0.0, %v1630
      %v1632 = vpop.f32.mrb[0].mxu0
      %1633 = vmatprep.mubr.bf16.mxu0 0
      %1634 = vmatmul.mubr.bf16.gmra.mrb[0].mxu0 %v1441
      %v1635 = vpop.f32.mrb[0].mxu0
      %v1636 = vadd.f32 0.0, %v1635
      %v1637 = vpop.f32.mrb[0].mxu0
      %v1638 = vpop.f32.mrb[0].mxu0
      %v1639 = vadd.f32 0.0, %v1638
      %v1640 = vpop.f32.mrb[0].mxu0
      %1641 = vmatprep.mubr.bf16.mxu0 0
      %1642 = vmatmul.mubr.bf16.gmra.mrb[0].mxu0 %v1442
      %v1643 = vpop.f32.mrb[0].mxu0
      %v1644 = vadd.f32 0.0, %v1643
      %v1645 = vpop.f32.mrb[0].mxu0
      %v1646 = vpop.f32.mrb[0].mxu0
      %v1647 = vadd.f32 0.0, %v1646
      %v1648 = vpop.f32.mrb[0].mxu0
      %1649 = vmatprep.mubr.bf16.mxu0 0
      %1650 = vmatmul.mubr.bf16.gmra.mrb[0].mxu0 %v1443
      %v1651 = vpop.f32.mrb[0].mxu0
      %v1652 = vadd.f32 0.0, %v1651
      %v1653 = vpop.f32.mrb[0].mxu0
      %v1654 = vpop.f32.mrb[0].mxu0
      %v1655 = vadd.f32 0.0, %v1654
      %v1656 = vpop.f32.mrb[0].mxu0
      %1657 = vmatprep.mubr.bf16.mxu0 0
      %1658 = vmatmul.mubr.bf16.gmra.mrb[0].mxu0 %v1444
      %v1659 = vpop.f32.mrb[0].mxu0
      %v1660 = vadd.f32 0.0, %v1659
      %v1661 = vpop.f32.mrb[0].mxu0
      %v1662 = vpop.f32.mrb[0].mxu0
      %v1663 = vadd.f32 0.0, %v1662
      %v1664 = vpop.f32.mrb[0].mxu0
      %1665 = vmatprep.mubr.bf16.mxu0 0
      %1666 = vmatmul.mubr.bf16.gmra.mrb[0].mxu0 %v1445
      %v1667 = vpop.f32.mrb[0].mxu0
      %v1668 = vadd.f32 0.0, %v1667
      %v1669 = vpop.f32.mrb[0].mxu0
      %v1670 = vpop.f32.mrb[0].mxu0
      %v1671 = vadd.f32 0.0, %v1670
      %v1672 = vpop.f32.mrb[0].mxu0
      %1673 = vmatprep.mubr.bf16.mxu0 0
      %1674 = vmatmul.mubr.bf16.gmra.mrb[0].mxu0 %v1446
      %v1675 = vpop.f32.mrb[0].mxu0
      %v1676 = vadd.f32 0.0, %v1675
      %v1677 = vpop.f32.mrb[0].mxu0
      %v1678 = vpop.f32.mrb[0].mxu0
      %v1679 = vadd.f32 0.0, %v1678
      %v1680 = vpop.f32.mrb[0].mxu0
      %1681 = vmatprep.mubr.bf16.mxu0 0
      %1682 = vmatmul.mubr.bf16.gmra.mrb[0].mxu0 %v1447
      %v1683 = vpop.f32.mrb[0].mxu0
      %v1684 = vadd.f32 0.0, %v1683
      %v1685 = vpop.f32.mrb[0].mxu0
      %v1686 = vpop.f32.mrb[0].mxu0
      %v1687 = vadd.f32 0.0, %v1686
      %v1688 = vpop.f32.mrb[0].mxu0
      %1689 = vmatprep.mubr.bf16.mxu0 0
      %1690 = vmatmul.mubr.bf16.gmra.mrb[0].mxu0 %v1448
      %v1691 = vpop.f32.mrb[0].mxu0
      %v1692 = vadd.f32 0.0, %v1691
      %v1693 = vpop.f32.mrb[0].mxu0
      %v1694 = vpop.f32.mrb[0].mxu0
      %v1695 = vadd.f32 0.0, %v1694
      %v1696 = vpop.f32.mrb[0].mxu0
      %1697 = vmatprep.mubr.bf16.mxu0 0
      %1698 = vmatmul.mubr.bf16.gmra.mrb[0].mxu0 %v1449
      %v1699 = vpop.f32.mrb[0].mxu0
      %v1700 = vadd.f32 0.0, %v1699
      %v1701 = vpop.f32.mrb[0].mxu0
      %v1702 = vpop.f32.mrb[0].mxu0
      %v1703 = vadd.f32 0.0, %v1702
      %v1704 = vpop.f32.mrb[0].mxu0
      %1705 = vmatprep.mubr.bf16.mxu0 0
      %1706 = vmatmul.mubr.bf16.gmra.mrb[0].mxu0 %v1450
      %v1707 = vpop.f32.mrb[0].mxu0
      %v1708 = vadd.f32 0.0, %v1707
      %v1709 = vpop.f32.mrb[0].mxu0
      %v1710 = vpop.f32.mrb[0].mxu0
      %v1711 = vadd.f32 0.0, %v1710
      %v1712 = vpop.f32.mrb[0].mxu0
      %1713 = vmatprep.mubr.bf16.mxu0 0
      %1714 = vmatmul.mubr.bf16.gmra.mrb[0].mxu0 %v1451
      %v1715 = vpop.f32.mrb[0].mxu0
      %v1716 = vadd.f32 0.0, %v1715
      %v1717 = vpop.f32.mrb[0].mxu0
      %v1718 = vpop.f32.mrb[0].mxu0
      %v1719 = vadd.f32 0.0, %v1718
      %v1720 = vpop.f32.mrb[0].mxu0
      %1721 = vmatprep.mubr.bf16.mxu0 0
      %1722 = vmatmul.mubr.bf16.gmra.mrb[0].mxu0 %v1452
      %v1723 = vpop.f32.mrb[0].mxu0
      %v1724 = vadd.f32 0.0, %v1723
      %v1725 = vpop.f32.mrb[0].mxu0
      %v1726 = vpop.f32.mrb[0].mxu0
      %v1727 = vadd.f32 0.0, %v1726
      %v1728 = vpop.f32.mrb[0].mxu0
      %1729 = vmatprep.mubr.bf16.mxu0 0
      %1730 = vmatmul.mubr.bf16.gmra.mrb[0].mxu0 %v1453
      %v1731 = vpop.f32.mrb[0].mxu0
      %v1732 = vadd.f32 0.0, %v1731
      %v1733 = vpop.f32.mrb[0].mxu0
      %v1734 = vpop.f32.mrb[0].mxu0
      %v1735 = vadd.f32 0.0, %v1734
      %v1736 = vpop.f32.mrb[0].mxu0
      %1737 = vmatprep.mubr.bf16.mxu0 0
      %1738 = vmatmul.mubr.bf16.gmra.mrb[0].mxu0 %v1454
      %v1739 = vpop.f32.mrb[0].mxu0
      %v1740 = vadd.f32 0.0, %v1739
      %v1741 = vpop.f32.mrb[0].mxu0
      %v1742 = vpop.f32.mrb[0].mxu0
      %v1743 = vadd.f32 0.0, %v1742
      %v1744 = vpop.f32.mrb[0].mxu0
      %1745 = vmatprep.mubr.bf16.mxu0 0
      %1746 = vmatmul.mubr.bf16.gmra.mrb[0].mxu0 %v1455
      %v1747 = vpop.f32.mrb[0].mxu0
      %v1748 = vadd.f32 0.0, %v1747
      %v1749 = vpop.f32.mrb[0].mxu0
      %v1750 = vpop.f32.mrb[0].mxu0
      %v1751 = vadd.f32 0.0, %v1750
      %v1752 = vpop.f32.mrb[0].mxu0
      %1753 = vmatprep.mubr.bf16.mxu0 0
      %1754 = vmatmul.mubr.bf16.gmra.mrb[0].mxu0 %v1458
      %v1755 = vpop.f32.mrb[0].mxu0
      %v1756 = vadd.f32 0.0, %v1755
      %v1757 = vpop.f32.mrb[0].mxu0
      %v1758 = vpop.f32.mrb[0].mxu0
      %v1759 = vadd.f32 0.0, %v1758
      %v1760 = vpop.f32.mrb[0].mxu0
      %1761 = vmatprep.mubr.bf16.mxu0 0
      %1762 = vmatmul.mubr.bf16.gmra.mrb[0].mxu0 %v1459
      %v1763 = vpop.f32.mrb[0].mxu0
      %v1764 = vadd.f32 0.0, %v1763
      %v1765 = vpop.f32.mrb[0].mxu0
      %v1766 = vpop.f32.mrb[0].mxu0
      %v1767 = vadd.f32 0.0, %v1766
      %v1768 = vpop.f32.mrb[0].mxu0
      %1769 = vmatprep.mubr.bf16.mxu0 0
      %1770 = vmatmul.mubr.bf16.gmra.mrb[0].mxu0 %v1460
      %v1771 = vpop.f32.mrb[0].mxu0
      %v1772 = vadd.f32 0.0, %v1771
      %v1773 = vpop.f32.mrb[0].mxu0
      %v1774 = vpop.f32.mrb[0].mxu0
      %v1775 = vadd.f32 0.0, %v1774
      %v1776 = vpop.f32.mrb[0].mxu0
      %1777 = vmatprep.mubr.bf16.mxu0 0
      %1778 = vmatmul.mubr.bf16.gmra.mrb[0].mxu0 %v1461
      %v1779 = vpop.f32.mrb[0].mxu0
      %v1780 = vadd.f32 0.0, %v1779
      %v1781 = vpop.f32.mrb[0].mxu0
      %v1782 = vpop.f32.mrb[0].mxu0
      %v1783 = vadd.f32 0.0, %v1782
      %v1784 = vpop.f32.mrb[0].mxu0
      %1785 = vmatprep.mubr.bf16.mxu0 0
      %1786 = vmatmul.mubr.bf16.gmra.mrb[0].mxu0 %v1462
      %v1787 = vpop.f32.mrb[0].mxu0
      %v1788 = vadd.f32 0.0, %v1787
      %v1789 = vpop.f32.mrb[0].mxu0
      %v1790 = vpop.f32.mrb[0].mxu0
      %v1791 = vadd.f32 0.0, %v1790
      %v1792 = vpop.f32.mrb[0].mxu0
      %1793 = vmatprep.mubr.bf16.mxu0 0
      %1794 = vmatmul.mubr.bf16.gmra.mrb[0].mxu0 %v1463
      %v1795 = vpop.f32.mrb[0].mxu0
      %v1796 = vadd.f32 0.0, %v1795
      %v1797 = vpop.f32.mrb[0].mxu0
      %v1798 = vpop.f32.mrb[0].mxu0
      %v1799 = vadd.f32 0.0, %v1798
      %v1800 = vpop.f32.mrb[0].mxu0
      %1801 = vmatprep.mubr.bf16.mxu0 0
      %1802 = vmatmul.mubr.bf16.gmra.mrb[0].mxu0 %v1464
      %v1803 = vpop.f32.mrb[0].mxu0
      %v1804 = vadd.f32 0.0, %v1803
      %v1805 = vpop.f32.mrb[0].mxu0
      %v1806 = vpop.f32.mrb[0].mxu0
      %v1807 = vadd.f32 0.0, %v1806
      %v1808 = vpop.f32.mrb[0].mxu0
      %1809 = vmatprep.mubr.bf16.mxu0 0
      %1810 = vmatmul.mubr.bf16.gmra.mrb[0].mxu0 %v1465
      %v1811 = vpop.f32.mrb[0].mxu0
      %v1812 = vadd.f32 0.0, %v1811
      %v1813 = vpop.f32.mrb[0].mxu0
      %v1814 = vpop.f32.mrb[0].mxu0
      %v1815 = vadd.f32 0.0, %v1814
      %v1816 = vpop.f32.mrb[0].mxu0
      %1817 = vmatprep.mubr.bf16.mxu0 0
      %1818 = vmatmul.mubr.bf16.gmra.mrb[0].mxu0 %v1466
      %v1819 = vpop.f32.mrb[0].mxu0
      %v1820 = vadd.f32 0.0, %v1819
      %v1821 = vpop.f32.mrb[0].mxu0
      %v1822 = vpop.f32.mrb[0].mxu0
      %v1823 = vadd.f32 0.0, %v1822
      %v1824 = vpop.f32.mrb[0].mxu0
      %1825 = vmatprep.mubr.bf16.mxu0 0
      %1826 = vmatmul.mubr.bf16.gmra.mrb[0].mxu0 %v1467
      %v1827 = vpop.f32.mrb[0].mxu0
      %v1828 = vadd.f32 0.0, %v1827
      %v1829 = vpop.f32.mrb[0].mxu0
      %v1830 = vpop.f32.mrb[0].mxu0
      %v1831 = vadd.f32 0.0, %v1830
      %v1832 = vpop.f32.mrb[0].mxu0
      %1833 = vmatprep.mubr.bf16.mxu0 0
      %1834 = vmatmul.mubr.bf16.gmra.mrb[0].mxu0 %v1468
      %v1835 = vpop.f32.mrb[0].mxu0
      %v1836 = vadd.f32 0.0, %v1835
      %v1837 = vpop.f32.mrb[0].mxu0
      %v1838 = vpop.f32.mrb[0].mxu0
      %v1839 = vadd.f32 0.0, %v1838
      %v1840 = vpop.f32.mrb[0].mxu0
      %1841 = vmatprep.mubr.bf16.mxu0 0
      %1842 = vmatmul.mubr.bf16.gmra.mrb[0].mxu0 %v1469
      %v1843 = vpop.f32.mrb[0].mxu0
      %v1844 = vadd.f32 0.0, %v1843
      %v1845 = vpop.f32.mrb[0].mxu0
      %v1846 = vpop.f32.mrb[0].mxu0
      %v1847 = vadd.f32 0.0, %v1846
      %v1848 = vpop.f32.mrb[0].mxu0
      %1849 = vmatprep.mubr.bf16.mxu0 0
      %1850 = vmatmul.mubr.bf16.gmra.mrb[0].mxu0 %v1470
      %v1851 = vpop.f32.mrb[0].mxu0
      %v1852 = vadd.f32 0.0, %v1851
      %v1853 = vpop.f32.mrb[0].mxu0
      %v1854 = vpop.f32.mrb[0].mxu0
      %v1855 = vadd.f32 0.0, %v1854
      %v1856 = vpop.f32.mrb[0].mxu0
      %1857 = vmatprep.mubr.bf16.mxu0 0
      %1858 = vmatmul.mubr.bf16.gmra.mrb[0].mxu0 %v1471
      %v1859 = vpop.f32.mrb[0].mxu0
      %v1860 = vadd.f32 0.0, %v1859
      %v1861 = vpop.f32.mrb[0].mxu0
      %v1862 = vpop.f32.mrb[0].mxu0
      %v1863 = vadd.f32 0.0, %v1862
      %v1864 = vpop.f32.mrb[0].mxu0
      %1865 = vmatprep.mubr.bf16.mxu0 0
      %1866 = vmatmul.mubr.bf16.gmra.mrb[0].mxu0 %v1472
      %v1867 = vpop.f32.mrb[0].mxu0
      %v1868 = vadd.f32 0.0, %v1867
      %v1869 = vpop.f32.mrb[0].mxu0
      %v1870 = vpop.f32.mrb[0].mxu0
      %v1871 = vadd.f32 0.0, %v1870
      %v1872 = vpop.f32.mrb[0].mxu0
      %1873 = vmatprep.mubr.bf16.mxu0 0
      %1874 = vmatmul.mubr.bf16.gmra.mrb[0].mxu0 %v1473
      %v1875 = vpop.f32.mrb[0].mxu0
      %v1876 = vadd.f32 0.0, %v1875
      %v1877 = vpop.f32.mrb[0].mxu0
      %v1878 = vpop.f32.mrb[0].mxu0
      %v1879 = vadd.f32 0.0, %v1878
      %v1880 = vpop.f32.mrb[0].mxu0
      %1881 = vdwg.mxu0
      %v1898 = vunpack.c.l.b16 %v1512
      %v1899 = vunpack.c.l.b16 %v1513
      %v1900 = vunpack.c.l.b16 %v1514
      %v1901 = vunpack.c.l.b16 %v1515
      %v1902 = vunpack.c.l.b16 %v1516
      %v1903 = vunpack.c.l.b16 %v1517
      %v1904 = vunpack.c.l.b16 %v1518
      %v1905 = vunpack.c.l.b16 %v1519
      %v1906 = vunpack.c.l.b16 %v1520
      %v1907 = vunpack.c.l.b16 %v1521
      %v1908 = vunpack.c.l.b16 %v1522
      %v1909 = vunpack.c.l.b16 %v1523
      %v1910 = vunpack.c.l.b16 %v1524
      %v1911 = vunpack.c.l.b16 %v1525
      %v1912 = vunpack.c.l.b16 %v1526
      %v1913 = vunpack.c.l.b16 %v1527
      %v1914 = vpack.c.b16 %v1899, %v1898
      %v1915 = vpack.c.b16 %v1901, %v1900
      %v1916 = vpack.c.b16 %v1903, %v1902
      %v1917 = vpack.c.b16 %v1905, %v1904
      %v1918 = vpack.c.b16 %v1907, %v1906
      %v1919 = vpack.c.b16 %v1909, %v1908
      %v1920 = vpack.c.b16 %v1911, %v1910
      %v1921 = vpack.c.b16 %v1913, %v1912
      %1930 = vmatprep.subr.bf16.mxu0 0
      %1931 = vmatpush1.bf16.msra.mxu0 %v1914
      %1932 = vmatprep.subr.bf16.mxu0 0
      %1933 = vmatpush1.bf16.msra.mxu0 %v1915
      %1934 = vmatprep.subr.bf16.mxu0 0
      %1935 = vmatpush1.bf16.msra.mxu0 %v1916
      %1936 = vmatprep.subr.bf16.mxu0 0
      %1937 = vmatpush1.bf16.msra.mxu0 %v1917
      %1938 = vmatprep.subr.bf16.mxu0 0
      %1939 = vmatpush1.bf16.msra.mxu0 %v1918
      %1940 = vmatprep.subr.bf16.mxu0 0
      %1941 = vmatpush1.bf16.msra.mxu0 %v1919
      %1942 = vmatprep.subr.bf16.mxu0 0
      %1943 = vmatpush1.bf16.msra.mxu0 %v1920
      %1944 = vmatprep.subr.bf16.mxu0 0
      %1945 = vmatpush1.bf16.msra.mxu0 %v1921
      %1946 = vmatprep.subr.bf16.mxu0 0
      %1947 = vmatpush1.bf16.msra.mxu0 0
      %1948 = vmatprep.subr.bf16.mxu0 0
      %1949 = vmatpush1.bf16.msra.mxu0 0
      %1950 = vmatprep.subr.bf16.mxu0 0
      %1951 = vmatpush1.bf16.msra.mxu0 0
      %1952 = vmatprep.subr.bf16.mxu0 0
      %1953 = vmatpush1.bf16.msra.mxu0 0
      %1954 = vmatprep.subr.bf16.mxu0 0
      %1955 = vmatpush1.bf16.msra.mxu0 0
      %1956 = vmatprep.subr.bf16.mxu0 0
      %1957 = vmatpush1.bf16.msra.mxu0 0
      %1958 = vmatprep.subr.bf16.mxu0 0
      %1959 = vmatpush1.bf16.msra.mxu0 0
      %1960 = vmatprep.subr.bf16.mxu0 0
      %1961 = vmatpush1.bf16.msra.mxu0 0
      %1962 = vmatprep.mubr.bf16.mxu0 0
      %1963 = vmatmul.mubr.bf16.gmra.mrb[0].mxu0 %v1404
      %v1964 = vpop.f32.mrb[0].mxu0
      %v1965 = vadd.f32 %v1628, %v1964
      %v1966 = vpop.f32.mrb[0].mxu0
      %v1967 = vpop.f32.mrb[0].mxu0
      %v1968 = vadd.f32 %v1631, %v1967
      %v1969 = vpop.f32.mrb[0].mxu0
      %1970 = vmatprep.mubr.bf16.mxu0 0
      %1971 = vmatmul.mubr.bf16.gmra.mrb[0].mxu0 %v1405
      %v1972 = vpop.f32.mrb[0].mxu0
      %v1973 = vadd.f32 %v1636, %v1972
      %v1974 = vpop.f32.mrb[0].mxu0
      %v1975 = vpop.f32.mrb[0].mxu0
      %v1976 = vadd.f32 %v1639, %v1975
      %v1977 = vpop.f32.mrb[0].mxu0
      %1978 = vmatprep.mubr.bf16.mxu0 0
      %1979 = vmatmul.mubr.bf16.gmra.mrb[0].mxu0 %v1406
      %v1980 = vpop.f32.mrb[0].mxu0
      %v1981 = vadd.f32 %v1644, %v1980
      %v1982 = vpop.f32.mrb[0].mxu0
      %v1983 = vpop.f32.mrb[0].mxu0
      %v1984 = vadd.f32 %v1647, %v1983
      %v1985 = vpop.f32.mrb[0].mxu0
      %1986 = vmatprep.mubr.bf16.mxu0 0
      %1987 = vmatmul.mubr.bf16.gmra.mrb[0].mxu0 %v1407
      %v1988 = vpop.f32.mrb[0].mxu0
      %v1989 = vadd.f32 %v1652, %v1988
      %v1990 = vpop.f32.mrb[0].mxu0
      %v1991 = vpop.f32.mrb[0].mxu0
      %v1992 = vadd.f32 %v1655, %v1991
      %v1993 = vpop.f32.mrb[0].mxu0
      %1994 = vmatprep.mubr.bf16.mxu0 0
      %1995 = vmatmul.mubr.bf16.gmra.mrb[0].mxu0 %v1408
      %v1996 = vpop.f32.mrb[0].mxu0
      %v1997 = vadd.f32 %v1660, %v1996
      %v1998 = vpop.f32.mrb[0].mxu0
      %v1999 = vpop.f32.mrb[0].mxu0
      %v2000 = vadd.f32 %v1663, %v1999
      %v2001 = vpop.f32.mrb[0].mxu0
      %2002 = vmatprep.mubr.bf16.mxu0 0
      %2003 = vmatmul.mubr.bf16.gmra.mrb[0].mxu0 %v1409
      %v2004 = vpop.f32.mrb[0].mxu0
      %v2005 = vadd.f32 %v1668, %v2004
      %v2006 = vpop.f32.mrb[0].mxu0
      %v2007 = vpop.f32.mrb[0].mxu0
      %v2008 = vadd.f32 %v1671, %v2007
      %v2009 = vpop.f32.mrb[0].mxu0
      %2010 = vmatprep.mubr.bf16.mxu0 0
      %2011 = vmatmul.mubr.bf16.gmra.mrb[0].mxu0 %v1410
      %v2012 = vpop.f32.mrb[0].mxu0
      %v2013 = vadd.f32 %v1676, %v2012
      %v2014 = vpop.f32.mrb[0].mxu0
      %v2015 = vpop.f32.mrb[0].mxu0
      %v2016 = vadd.f32 %v1679, %v2015
      %v2017 = vpop.f32.mrb[0].mxu0
      %2018 = vmatprep.mubr.bf16.mxu0 0
      %2019 = vmatmul.mubr.bf16.gmra.mrb[0].mxu0 %v1411
      %v2020 = vpop.f32.mrb[0].mxu0
      %v2021 = vadd.f32 %v1684, %v2020
      %v2022 = vpop.f32.mrb[0].mxu0
      %v2023 = vpop.f32.mrb[0].mxu0
      %v2024 = vadd.f32 %v1687, %v2023
      %v2025 = vpop.f32.mrb[0].mxu0
      %2026 = vmatprep.mubr.bf16.mxu0 0
      %2027 = vmatmul.mubr.bf16.gmra.mrb[0].mxu0 %v1412
      %v2028 = vpop.f32.mrb[0].mxu0
      %v2029 = vadd.f32 %v1692, %v2028
      %v2030 = vpop.f32.mrb[0].mxu0
      %v2031 = vpop.f32.mrb[0].mxu0
      %v2032 = vadd.f32 %v1695, %v2031
      %v2033 = vpop.f32.mrb[0].mxu0
      %2034 = vmatprep.mubr.bf16.mxu0 0
      %2035 = vmatmul.mubr.bf16.gmra.mrb[0].mxu0 %v1413
      %v2036 = vpop.f32.mrb[0].mxu0
      %v2037 = vadd.f32 %v1700, %v2036
      %v2038 = vpop.f32.mrb[0].mxu0
      %v2039 = vpop.f32.mrb[0].mxu0
      %v2040 = vadd.f32 %v1703, %v2039
      %v2041 = vpop.f32.mrb[0].mxu0
      %2042 = vmatprep.mubr.bf16.mxu0 0
      %2043 = vmatmul.mubr.bf16.gmra.mrb[0].mxu0 %v1414
      %v2044 = vpop.f32.mrb[0].mxu0
      %v2045 = vadd.f32 %v1708, %v2044
      %v2046 = vpop.f32.mrb[0].mxu0
      %v2047 = vpop.f32.mrb[0].mxu0
      %v2048 = vadd.f32 %v1711, %v2047
      %v2049 = vpop.f32.mrb[0].mxu0
      %2050 = vmatprep.mubr.bf16.mxu0 0
      %2051 = vmatmul.mubr.bf16.gmra.mrb[0].mxu0 %v1415
      %v2052 = vpop.f32.mrb[0].mxu0
      %v2053 = vadd.f32 %v1716, %v2052
      %v2054 = vpop.f32.mrb[0].mxu0
      %v2055 = vpop.f32.mrb[0].mxu0
      %v2056 = vadd.f32 %v1719, %v2055
      %v2057 = vpop.f32.mrb[0].mxu0
      %2058 = vmatprep.mubr.bf16.mxu0 0
      %2059 = vmatmul.mubr.bf16.gmra.mrb[0].mxu0 %v1416
      %v2060 = vpop.f32.mrb[0].mxu0
      %v2061 = vadd.f32 %v1724, %v2060
      %v2062 = vpop.f32.mrb[0].mxu0
      %v2063 = vpop.f32.mrb[0].mxu0
      %v2064 = vadd.f32 %v1727, %v2063
      %v2065 = vpop.f32.mrb[0].mxu0
      %2066 = vmatprep.mubr.bf16.mxu0 0
      %2067 = vmatmul.mubr.bf16.gmra.mrb[0].mxu0 %v1417
      %v2068 = vpop.f32.mrb[0].mxu0
      %v2069 = vadd.f32 %v1732, %v2068
      %v2070 = vpop.f32.mrb[0].mxu0
      %v2071 = vpop.f32.mrb[0].mxu0
      %v2072 = vadd.f32 %v1735, %v2071
      %v2073 = vpop.f32.mrb[0].mxu0
      %2074 = vmatprep.mubr.bf16.mxu0 0
      %2075 = vmatmul.mubr.bf16.gmra.mrb[0].mxu0 %v1418
      %v2076 = vpop.f32.mrb[0].mxu0
      %v2077 = vadd.f32 %v1740, %v2076
      %v2078 = vpop.f32.mrb[0].mxu0
      %v2079 = vpop.f32.mrb[0].mxu0
      %v2080 = vadd.f32 %v1743, %v2079
      %v2081 = vpop.f32.mrb[0].mxu0
      %2082 = vmatprep.mubr.bf16.mxu0 0
      %2083 = vmatmul.mubr.bf16.gmra.mrb[0].mxu0 %v1419
      %v2084 = vpop.f32.mrb[0].mxu0
      %v2085 = vadd.f32 %v1748, %v2084
      %v2086 = vpop.f32.mrb[0].mxu0
      %v2087 = vpop.f32.mrb[0].mxu0
      %v2088 = vadd.f32 %v1751, %v2087
      %v2089 = vpop.f32.mrb[0].mxu0
      %2090 = vmatprep.mubr.bf16.mxu0 0
      %2091 = vmatmul.mubr.bf16.gmra.mrb[0].mxu0 %v1422
      %v2092 = vpop.f32.mrb[0].mxu0
      %v2093 = vadd.f32 %v1756, %v2092
      %v2094 = vpop.f32.mrb[0].mxu0
      %v2095 = vpop.f32.mrb[0].mxu0
      %v2096 = vadd.f32 %v1759, %v2095
      %v2097 = vpop.f32.mrb[0].mxu0
      %2098 = vmatprep.mubr.bf16.mxu0 0
      %2099 = vmatmul.mubr.bf16.gmra.mrb[0].mxu0 %v1423
      %v2100 = vpop.f32.mrb[0].mxu0
      %v2101 = vadd.f32 %v1764, %v2100
      %v2102 = vpop.f32.mrb[0].mxu0
      %v2103 = vpop.f32.mrb[0].mxu0
      %v2104 = vadd.f32 %v1767, %v2103
      %v2105 = vpop.f32.mrb[0].mxu0
      %2106 = vmatprep.mubr.bf16.mxu0 0
      %2107 = vmatmul.mubr.bf16.gmra.mrb[0].mxu0 %v1424
      %v2108 = vpop.f32.mrb[0].mxu0
      %v2109 = vadd.f32 %v1772, %v2108
      %v2110 = vpop.f32.mrb[0].mxu0
      %v2111 = vpop.f32.mrb[0].mxu0
      %v2112 = vadd.f32 %v1775, %v2111
      %v2113 = vpop.f32.mrb[0].mxu0
      %2114 = vmatprep.mubr.bf16.mxu0 0
      %2115 = vmatmul.mubr.bf16.gmra.mrb[0].mxu0 %v1425
      %v2116 = vpop.f32.mrb[0].mxu0
      %v2117 = vadd.f32 %v1780, %v2116
      %v2118 = vpop.f32.mrb[0].mxu0
      %v2119 = vpop.f32.mrb[0].mxu0
      %v2120 = vadd.f32 %v1783, %v2119
      %v2121 = vpop.f32.mrb[0].mxu0
      %2122 = vmatprep.mubr.bf16.mxu0 0
      %2123 = vmatmul.mubr.bf16.gmra.mrb[0].mxu0 %v1426
      %v2124 = vpop.f32.mrb[0].mxu0
      %v2125 = vadd.f32 %v1788, %v2124
      %v2126 = vpop.f32.mrb[0].mxu0
      %v2127 = vpop.f32.mrb[0].mxu0
      %v2128 = vadd.f32 %v1791, %v2127
      %v2129 = vpop.f32.mrb[0].mxu0
      %2130 = vmatprep.mubr.bf16.mxu0 0
      %2131 = vmatmul.mubr.bf16.gmra.mrb[0].mxu0 %v1427
      %v2132 = vpop.f32.mrb[0].mxu0
      %v2133 = vadd.f32 %v1796, %v2132
      %v2134 = vpop.f32.mrb[0].mxu0
      %v2135 = vpop.f32.mrb[0].mxu0
      %v2136 = vadd.f32 %v1799, %v2135
      %v2137 = vpop.f32.mrb[0].mxu0
      %2138 = vmatprep.mubr.bf16.mxu0 0
      %2139 = vmatmul.mubr.bf16.gmra.mrb[0].mxu0 %v1428
      %v2140 = vpop.f32.mrb[0].mxu0
      %v2141 = vadd.f32 %v1804, %v2140
      %v2142 = vpop.f32.mrb[0].mxu0
      %v2143 = vpop.f32.mrb[0].mxu0
      %v2144 = vadd.f32 %v1807, %v2143
      %v2145 = vpop.f32.mrb[0].mxu0
      %2146 = vmatprep.mubr.bf16.mxu0 0
      %2147 = vmatmul.mubr.bf16.gmra.mrb[0].mxu0 %v1429
      %v2148 = vpop.f32.mrb[0].mxu0
      %v2149 = vadd.f32 %v1812, %v2148
      %v2150 = vpop.f32.mrb[0].mxu0
      %v2151 = vpop.f32.mrb[0].mxu0
      %v2152 = vadd.f32 %v1815, %v2151
      %v2153 = vpop.f32.mrb[0].mxu0
      %2154 = vmatprep.mubr.bf16.mxu0 0
      %2155 = vmatmul.mubr.bf16.gmra.mrb[0].mxu0 %v1430
      %v2156 = vpop.f32.mrb[0].mxu0
      %v2157 = vadd.f32 %v1820, %v2156
      %v2158 = vpop.f32.mrb[0].mxu0
      %v2159 = vpop.f32.mrb[0].mxu0
      %v2160 = vadd.f32 %v1823, %v2159
      %v2161 = vpop.f32.mrb[0].mxu0
      %2162 = vmatprep.mubr.bf16.mxu0 0
      %2163 = vmatmul.mubr.bf16.gmra.mrb[0].mxu0 %v1431
      %v2164 = vpop.f32.mrb[0].mxu0
      %v2165 = vadd.f32 %v1828, %v2164
      %v2166 = vpop.f32.mrb[0].mxu0
      %v2167 = vpop.f32.mrb[0].mxu0
      %v2168 = vadd.f32 %v1831, %v2167
      %v2169 = vpop.f32.mrb[0].mxu0
      %2170 = vmatprep.mubr.bf16.mxu0 0
      %2171 = vmatmul.mubr.bf16.gmra.mrb[0].mxu0 %v1432
      %v2172 = vpop.f32.mrb[0].mxu0
      %v2173 = vadd.f32 %v1836, %v2172
      %v2174 = vpop.f32.mrb[0].mxu0
      %v2175 = vpop.f32.mrb[0].mxu0
      %v2176 = vadd.f32 %v1839, %v2175
      %v2177 = vpop.f32.mrb[0].mxu0
      %2178 = vmatprep.mubr.bf16.mxu0 0
      %2179 = vmatmul.mubr.bf16.gmra.mrb[0].mxu0 %v1433
      %v2180 = vpop.f32.mrb[0].mxu0
      %v2181 = vadd.f32 %v1844, %v2180
      %v2182 = vpop.f32.mrb[0].mxu0
      %v2183 = vpop.f32.mrb[0].mxu0
      %v2184 = vadd.f32 %v1847, %v2183
      %v2185 = vpop.f32.mrb[0].mxu0
      %2186 = vmatprep.mubr.bf16.mxu0 0
      %2187 = vmatmul.mubr.bf16.gmra.mrb[0].mxu0 %v1434
      %v2188 = vpop.f32.mrb[0].mxu0
      %v2189 = vadd.f32 %v1852, %v2188
      %v2190 = vpop.f32.mrb[0].mxu0
      %v2191 = vpop.f32.mrb[0].mxu0
      %v2192 = vadd.f32 %v1855, %v2191
      %v2193 = vpop.f32.mrb[0].mxu0
      %2194 = vmatprep.mubr.bf16.mxu0 0
      %2195 = vmatmul.mubr.bf16.gmra.mrb[0].mxu0 %v1435
      %v2196 = vpop.f32.mrb[0].mxu0
      %v2197 = vadd.f32 %v1860, %v2196
      %v2198 = vpop.f32.mrb[0].mxu0
      %v2199 = vpop.f32.mrb[0].mxu0
      %v2200 = vadd.f32 %v1863, %v2199
      %v2201 = vpop.f32.mrb[0].mxu0
      %2202 = vmatprep.mubr.bf16.mxu0 0
      %2203 = vmatmul.mubr.bf16.gmra.mrb[0].mxu0 %v1436
      %v2204 = vpop.f32.mrb[0].mxu0
      %v2205 = vadd.f32 %v1868, %v2204
      %v2206 = vpop.f32.mrb[0].mxu0
      %v2207 = vpop.f32.mrb[0].mxu0
      %v2208 = vadd.f32 %v1871, %v2207
      %v2209 = vpop.f32.mrb[0].mxu0
      %2210 = vmatprep.mubr.bf16.mxu0 0
      %2211 = vmatmul.mubr.bf16.gmra.mrb[0].mxu0 %v1437
      %v2212 = vpop.f32.mrb[0].mxu0
      %v2213 = vadd.f32 %v1876, %v2212
      %v2214 = vpop.f32.mrb[0].mxu0
      %v2215 = vpop.f32.mrb[0].mxu0
      %v2216 = vadd.f32 %v1879, %v2215
      %v2217 = vpop.f32.mrb[0].mxu0
      %2218 = vdwg.mxu0
      %s2219 = scalar_lea.vmem %s222, 128
      %v2220 = vld [vmem:[%s2219] sm:$0xf]
      %v2221 = vld [vmem:[%s2219 + $0x4] sm:$0xf]
      %v2222 = vld [vmem:[%s2219 + $0x8] sm:$0xf]
      %v2223 = vld [vmem:[%s2219 + $0xc] sm:$0xf]
      %v2224 = vld [vmem:[%s2219 + $0x10] sm:$0xf]
      %v2225 = vld [vmem:[%s2219 + $0x14] sm:$0xf]
      %v2226 = vld [vmem:[%s2219 + $0x18] sm:$0xf]
      %v2227 = vld [vmem:[%s2219 + $0x1c] sm:$0xf]
      %v2228 = vld [vmem:[%s2219 + $0x20] sm:$0xf]
      %v2229 = vld [vmem:[%s2219 + $0x24] sm:$0xf]
      %v2230 = vld [vmem:[%s2219 + $0x28] sm:$0xf]
      %v2231 = vld [vmem:[%s2219 + $0x2c] sm:$0xf]
      %v2232 = vld [vmem:[%s2219 + $0x30] sm:$0xf]
      %v2233 = vld [vmem:[%s2219 + $0x34] sm:$0xf]
      %v2234 = vld [vmem:[%s2219 + $0x38] sm:$0xf]
      %v2235 = vld [vmem:[%s2219 + $0x3c] sm:$0xf]
      %v2252 = vunpack.c.l.b16 %v2220
      %v2253 = vunpack.c.l.b16 %v2221
      %v2254 = vunpack.c.l.b16 %v2222
      %v2255 = vunpack.c.l.b16 %v2223
      %v2256 = vunpack.c.l.b16 %v2224
      %v2257 = vunpack.c.l.b16 %v2225
      %v2258 = vunpack.c.l.b16 %v2226
      %v2259 = vunpack.c.l.b16 %v2227
      %v2260 = vunpack.c.l.b16 %v2228
      %v2261 = vunpack.c.l.b16 %v2229
      %v2262 = vunpack.c.l.b16 %v2230
      %v2263 = vunpack.c.l.b16 %v2231
      %v2264 = vunpack.c.l.b16 %v2232
      %v2265 = vunpack.c.l.b16 %v2233
      %v2266 = vunpack.c.l.b16 %v2234
      %v2267 = vunpack.c.l.b16 %v2235
      %v2268 = vpack.c.b16 %v2253, %v2252
      %v2269 = vpack.c.b16 %v2255, %v2254
      %v2270 = vpack.c.b16 %v2257, %v2256
      %v2271 = vpack.c.b16 %v2259, %v2258
      %v2272 = vpack.c.b16 %v2261, %v2260
      %v2273 = vpack.c.b16 %v2263, %v2262
      %v2274 = vpack.c.b16 %v2265, %v2264
      %v2275 = vpack.c.b16 %v2267, %v2266
      %2284 = vmatprep.subr.bf16.mxu0 0
      %2285 = vmatpush1.bf16.msra.mxu0 %v2268
      %2286 = vmatprep.subr.bf16.mxu0 0
      %2287 = vmatpush1.bf16.msra.mxu0 %v2269
      %2288 = vmatprep.subr.bf16.mxu0 0
      %2289 = vmatpush1.bf16.msra.mxu0 %v2270
      %2290 = vmatprep.subr.bf16.mxu0 0
      %2291 = vmatpush1.bf16.msra.mxu0 %v2271
      %2292 = vmatprep.subr.bf16.mxu0 0
      %2293 = vmatpush1.bf16.msra.mxu0 %v2272
      %2294 = vmatprep.subr.bf16.mxu0 0
      %2295 = vmatpush1.bf16.msra.mxu0 %v2273
      %2296 = vmatprep.subr.bf16.mxu0 0
      %2297 = vmatpush1.bf16.msra.mxu0 %v2274
      %2298 = vmatprep.subr.bf16.mxu0 0
      %2299 = vmatpush1.bf16.msra.mxu0 %v2275
      %2300 = vmatprep.subr.bf16.mxu0 0
      %2301 = vmatpush1.bf16.msra.mxu0 0
      %2302 = vmatprep.subr.bf16.mxu0 0
      %2303 = vmatpush1.bf16.msra.mxu0 0
      %2304 = vmatprep.subr.bf16.mxu0 0
      %2305 = vmatpush1.bf16.msra.mxu0 0
      %2306 = vmatprep.subr.bf16.mxu0 0
      %2307 = vmatpush1.bf16.msra.mxu0 0
      %2308 = vmatprep.subr.bf16.mxu0 0
      %2309 = vmatpush1.bf16.msra.mxu0 0
      %2310 = vmatprep.subr.bf16.mxu0 0
      %2311 = vmatpush1.bf16.msra.mxu0 0
      %2312 = vmatprep.subr.bf16.mxu0 0
      %2313 = vmatpush1.bf16.msra.mxu0 0
      %2314 = vmatprep.subr.bf16.mxu0 0
      %2315 = vmatpush1.bf16.msra.mxu0 0
      %2316 = vmatprep.mubr.bf16.mxu0 0
      %2317 = vmatmul.mubr.bf16.gmra.mrb[0].mxu0 %v1476
      %v2318 = vpop.f32.mrb[0].mxu0
      %v2319 = vadd.f32 0.0, %v2318
      %v2320 = vpop.f32.mrb[0].mxu0
      %v2321 = vpop.f32.mrb[0].mxu0
      %v2322 = vadd.f32 0.0, %v2321
      %v2323 = vpop.f32.mrb[0].mxu0
      %2324 = vmatprep.mubr.bf16.mxu0 0
      %2325 = vmatmul.mubr.bf16.gmra.mrb[0].mxu0 %v1477
      %v2326 = vpop.f32.mrb[0].mxu0
      %v2327 = vadd.f32 0.0, %v2326
      %v2328 = vpop.f32.mrb[0].mxu0
      %v2329 = vpop.f32.mrb[0].mxu0
      %v2330 = vadd.f32 0.0, %v2329
      %v2331 = vpop.f32.mrb[0].mxu0
      %2332 = vmatprep.mubr.bf16.mxu0 0
      %2333 = vmatmul.mubr.bf16.gmra.mrb[0].mxu0 %v1478
      %v2334 = vpop.f32.mrb[0].mxu0
      %v2335 = vadd.f32 0.0, %v2334
      %v2336 = vpop.f32.mrb[0].mxu0
      %v2337 = vpop.f32.mrb[0].mxu0
      %v2338 = vadd.f32 0.0, %v2337
      %v2339 = vpop.f32.mrb[0].mxu0
      %2340 = vmatprep.mubr.bf16.mxu0 0
      %2341 = vmatmul.mubr.bf16.gmra.mrb[0].mxu0 %v1479
      %v2342 = vpop.f32.mrb[0].mxu0
      %v2343 = vadd.f32 0.0, %v2342
      %v2344 = vpop.f32.mrb[0].mxu0
      %v2345 = vpop.f32.mrb[0].mxu0
      %v2346 = vadd.f32 0.0, %v2345
      %v2347 = vpop.f32.mrb[0].mxu0
      %2348 = vmatprep.mubr.bf16.mxu0 0
      %2349 = vmatmul.mubr.bf16.gmra.mrb[0].mxu0 %v1480
      %v2350 = vpop.f32.mrb[0].mxu0
      %v2351 = vadd.f32 0.0, %v2350
      %v2352 = vpop.f32.mrb[0].mxu0
      %v2353 = vpop.f32.mrb[0].mxu0
      %v2354 = vadd.f32 0.0, %v2353
      %v2355 = vpop.f32.mrb[0].mxu0
      %2356 = vmatprep.mubr.bf16.mxu0 0
      %2357 = vmatmul.mubr.bf16.gmra.mrb[0].mxu0 %v1481
      %v2358 = vpop.f32.mrb[0].mxu0
      %v2359 = vadd.f32 0.0, %v2358
      %v2360 = vpop.f32.mrb[0].mxu0
      %v2361 = vpop.f32.mrb[0].mxu0
      %v2362 = vadd.f32 0.0, %v2361
      %v2363 = vpop.f32.mrb[0].mxu0
      %2364 = vmatprep.mubr.bf16.mxu0 0
      %2365 = vmatmul.mubr.bf16.gmra.mrb[0].mxu0 %v1482
      %v2366 = vpop.f32.mrb[0].mxu0
      %v2367 = vadd.f32 0.0, %v2366
      %v2368 = vpop.f32.mrb[0].mxu0
      %v2369 = vpop.f32.mrb[0].mxu0
      %v2370 = vadd.f32 0.0, %v2369
      %v2371 = vpop.f32.mrb[0].mxu0
      %2372 = vmatprep.mubr.bf16.mxu0 0
      %2373 = vmatmul.mubr.bf16.gmra.mrb[0].mxu0 %v1483
      %v2374 = vpop.f32.mrb[0].mxu0
      %v2375 = vadd.f32 0.0, %v2374
      %v2376 = vpop.f32.mrb[0].mxu0
      %v2377 = vpop.f32.mrb[0].mxu0
      %v2378 = vadd.f32 0.0, %v2377
      %v2379 = vpop.f32.mrb[0].mxu0
      %2380 = vmatprep.mubr.bf16.mxu0 0
      %2381 = vmatmul.mubr.bf16.gmra.mrb[0].mxu0 %v1484
      %v2382 = vpop.f32.mrb[0].mxu0
      %v2383 = vadd.f32 0.0, %v2382
      %v2384 = vpop.f32.mrb[0].mxu0
      %v2385 = vpop.f32.mrb[0].mxu0
      %v2386 = vadd.f32 0.0, %v2385
      %v2387 = vpop.f32.mrb[0].mxu0
      %2388 = vmatprep.mubr.bf16.mxu0 0
      %2389 = vmatmul.mubr.bf16.gmra.mrb[0].mxu0 %v1485
      %v2390 = vpop.f32.mrb[0].mxu0
      %v2391 = vadd.f32 0.0, %v2390
      %v2392 = vpop.f32.mrb[0].mxu0
      %v2393 = vpop.f32.mrb[0].mxu0
      %v2394 = vadd.f32 0.0, %v2393
      %v2395 = vpop.f32.mrb[0].mxu0
      %2396 = vmatprep.mubr.bf16.mxu0 0
      %2397 = vmatmul.mubr.bf16.gmra.mrb[0].mxu0 %v1486
      %v2398 = vpop.f32.mrb[0].mxu0
      %v2399 = vadd.f32 0.0, %v2398
      %v2400 = vpop.f32.mrb[0].mxu0
      %v2401 = vpop.f32.mrb[0].mxu0
      %v2402 = vadd.f32 0.0, %v2401
      %v2403 = vpop.f32.mrb[0].mxu0
      %2404 = vmatprep.mubr.bf16.mxu0 0
      %2405 = vmatmul.mubr.bf16.gmra.mrb[0].mxu0 %v1487
      %v2406 = vpop.f32.mrb[0].mxu0
      %v2407 = vadd.f32 0.0, %v2406
      %v2408 = vpop.f32.mrb[0].mxu0
      %v2409 = vpop.f32.mrb[0].mxu0
      %v2410 = vadd.f32 0.0, %v2409
      %v2411 = vpop.f32.mrb[0].mxu0
      %2412 = vmatprep.mubr.bf16.mxu0 0
      %2413 = vmatmul.mubr.bf16.gmra.mrb[0].mxu0 %v1488
      %v2414 = vpop.f32.mrb[0].mxu0
      %v2415 = vadd.f32 0.0, %v2414
      %v2416 = vpop.f32.mrb[0].mxu0
      %v2417 = vpop.f32.mrb[0].mxu0
      %v2418 = vadd.f32 0.0, %v2417
      %v2419 = vpop.f32.mrb[0].mxu0
      %2420 = vmatprep.mubr.bf16.mxu0 0
      %2421 = vmatmul.mubr.bf16.gmra.mrb[0].mxu0 %v1489
      %v2422 = vpop.f32.mrb[0].mxu0
      %v2423 = vadd.f32 0.0, %v2422
      %v2424 = vpop.f32.mrb[0].mxu0
      %v2425 = vpop.f32.mrb[0].mxu0
      %v2426 = vadd.f32 0.0, %v2425
      %v2427 = vpop.f32.mrb[0].mxu0
      %2428 = vmatprep.mubr.bf16.mxu0 0
      %2429 = vmatmul.mubr.bf16.gmra.mrb[0].mxu0 %v1490
      %v2430 = vpop.f32.mrb[0].mxu0
      %v2431 = vadd.f32 0.0, %v2430
      %v2432 = vpop.f32.mrb[0].mxu0
      %v2433 = vpop.f32.mrb[0].mxu0
      %v2434 = vadd.f32 0.0, %v2433
      %v2435 = vpop.f32.mrb[0].mxu0
      %2436 = vmatprep.mubr.bf16.mxu0 0
      %2437 = vmatmul.mubr.bf16.gmra.mrb[0].mxu0 %v1491
      %v2438 = vpop.f32.mrb[0].mxu0
      %v2439 = vadd.f32 0.0, %v2438
      %v2440 = vpop.f32.mrb[0].mxu0
      %v2441 = vpop.f32.mrb[0].mxu0
      %v2442 = vadd.f32 0.0, %v2441
      %v2443 = vpop.f32.mrb[0].mxu0
      %2444 = vmatprep.mubr.bf16.mxu0 0
      %2445 = vmatmul.mubr.bf16.gmra.mrb[0].mxu0 %v1494
      %v2446 = vpop.f32.mrb[0].mxu0
      %v2447 = vadd.f32 0.0, %v2446
      %v2448 = vpop.f32.mrb[0].mxu0
      %v2449 = vpop.f32.mrb[0].mxu0
      %v2450 = vadd.f32 0.0, %v2449
      %v2451 = vpop.f32.mrb[0].mxu0
      %2452 = vmatprep.mubr.bf16.mxu0 0
      %2453 = vmatmul.mubr.bf16.gmra.mrb[0].mxu0 %v1495
      %v2454 = vpop.f32.mrb[0].mxu0
      %v2455 = vadd.f32 0.0, %v2454
      %v2456 = vpop.f32.mrb[0].mxu0
      %v2457 = vpop.f32.mrb[0].mxu0
      %v2458 = vadd.f32 0.0, %v2457
      %v2459 = vpop.f32.mrb[0].mxu0
      %2460 = vmatprep.mubr.bf16.mxu0 0
      %2461 = vmatmul.mubr.bf16.gmra.mrb[0].mxu0 %v1496
      %v2462 = vpop.f32.mrb[0].mxu0
      %v2463 = vadd.f32 0.0, %v2462
      %v2464 = vpop.f32.mrb[0].mxu0
      %v2465 = vpop.f32.mrb[0].mxu0
      %v2466 = vadd.f32 0.0, %v2465
      %v2467 = vpop.f32.mrb[0].mxu0
      %2468 = vmatprep.mubr.bf16.mxu0 0
      %2469 = vmatmul.mubr.bf16.gmra.mrb[0].mxu0 %v1497
      %v2470 = vpop.f32.mrb[0].mxu0
      %v2471 = vadd.f32 0.0, %v2470
      %v2472 = vpop.f32.mrb[0].mxu0
      %v2473 = vpop.f32.mrb[0].mxu0
      %v2474 = vadd.f32 0.0, %v2473
      %v2475 = vpop.f32.mrb[0].mxu0
      %2476 = vmatprep.mubr.bf16.mxu0 0
      %2477 = vmatmul.mubr.bf16.gmra.mrb[0].mxu0 %v1498
      %v2478 = vpop.f32.mrb[0].mxu0
      %v2479 = vadd.f32 0.0, %v2478
      %v2480 = vpop.f32.mrb[0].mxu0
      %v2481 = vpop.f32.mrb[0].mxu0
      %v2482 = vadd.f32 0.0, %v2481
      %v2483 = vpop.f32.mrb[0].mxu0
      %2484 = vmatprep.mubr.bf16.mxu0 0
      %2485 = vmatmul.mubr.bf16.gmra.mrb[0].mxu0 %v1499
      %v2486 = vpop.f32.mrb[0].mxu0
      %v2487 = vadd.f32 0.0, %v2486
      %v2488 = vpop.f32.mrb[0].mxu0
      %v2489 = vpop.f32.mrb[0].mxu0
      %v2490 = vadd.f32 0.0, %v2489
      %v2491 = vpop.f32.mrb[0].mxu0
      %2492 = vmatprep.mubr.bf16.mxu0 0
      %2493 = vmatmul.mubr.bf16.gmra.mrb[0].mxu0 %v1500
      %v2494 = vpop.f32.mrb[0].mxu0
      %v2495 = vadd.f32 0.0, %v2494
      %v2496 = vpop.f32.mrb[0].mxu0
      %v2497 = vpop.f32.mrb[0].mxu0
      %v2498 = vadd.f32 0.0, %v2497
      %v2499 = vpop.f32.mrb[0].mxu0
      %2500 = vmatprep.mubr.bf16.mxu0 0
      %2501 = vmatmul.mubr.bf16.gmra.mrb[0].mxu0 %v1501
      %v2502 = vpop.f32.mrb[0].mxu0
      %v2503 = vadd.f32 0.0, %v2502
      %v2504 = vpop.f32.mrb[0].mxu0
      %v2505 = vpop.f32.mrb[0].mxu0
      %v2506 = vadd.f32 0.0, %v2505
      %v2507 = vpop.f32.mrb[0].mxu0
      %2508 = vmatprep.mubr.bf16.mxu0 0
      %2509 = vmatmul.mubr.bf16.gmra.mrb[0].mxu0 %v1502
      %v2510 = vpop.f32.mrb[0].mxu0
      %v2511 = vadd.f32 0.0, %v2510
      %v2512 = vpop.f32.mrb[0].mxu0
      %v2513 = vpop.f32.mrb[0].mxu0
      %v2514 = vadd.f32 0.0, %v2513
      %v2515 = vpop.f32.mrb[0].mxu0
      %2516 = vmatprep.mubr.bf16.mxu0 0
      %2517 = vmatmul.mubr.bf16.gmra.mrb[0].mxu0 %v1503
      %v2518 = vpop.f32.mrb[0].mxu0
      %v2519 = vadd.f32 0.0, %v2518
      %v2520 = vpop.f32.mrb[0].mxu0
      %v2521 = vpop.f32.mrb[0].mxu0
      %v2522 = vadd.f32 0.0, %v2521
      %v2523 = vpop.f32.mrb[0].mxu0
      %2524 = vmatprep.mubr.bf16.mxu0 0
      %2525 = vmatmul.mubr.bf16.gmra.mrb[0].mxu0 %v1504
      %v2526 = vpop.f32.mrb[0].mxu0
      %v2527 = vadd.f32 0.0, %v2526
      %v2528 = vpop.f32.mrb[0].mxu0
      %v2529 = vpop.f32.mrb[0].mxu0
      %v2530 = vadd.f32 0.0, %v2529
      %v2531 = vpop.f32.mrb[0].mxu0
      %2532 = vmatprep.mubr.bf16.mxu0 0
      %2533 = vmatmul.mubr.bf16.gmra.mrb[0].mxu0 %v1505
      %v2534 = vpop.f32.mrb[0].mxu0
      %v2535 = vadd.f32 0.0, %v2534
      %v2536 = vpop.f32.mrb[0].mxu0
      %v2537 = vpop.f32.mrb[0].mxu0
      %v2538 = vadd.f32 0.0, %v2537
      %v2539 = vpop.f32.mrb[0].mxu0
      %2540 = vmatprep.mubr.bf16.mxu0 0
      %2541 = vmatmul.mubr.bf16.gmra.mrb[0].mxu0 %v1506
      %v2542 = vpop.f32.mrb[0].mxu0
      %v2543 = vadd.f32 0.0, %v2542
      %v2544 = vpop.f32.mrb[0].mxu0
      %v2545 = vpop.f32.mrb[0].mxu0
      %v2546 = vadd.f32 0.0, %v2545
      %v2547 = vpop.f32.mrb[0].mxu0
      %2548 = vmatprep.mubr.bf16.mxu0 0
      %2549 = vmatmul.mubr.bf16.gmra.mrb[0].mxu0 %v1507
      %v2550 = vpop.f32.mrb[0].mxu0
      %v2551 = vadd.f32 0.0, %v2550
      %v2552 = vpop.f32.mrb[0].mxu0
      %v2553 = vpop.f32.mrb[0].mxu0
      %v2554 = vadd.f32 0.0, %v2553
      %v2555 = vpop.f32.mrb[0].mxu0
      %2556 = vmatprep.mubr.bf16.mxu0 0
      %2557 = vmatmul.mubr.bf16.gmra.mrb[0].mxu0 %v1508
      %v2558 = vpop.f32.mrb[0].mxu0
      %v2559 = vadd.f32 0.0, %v2558
      %v2560 = vpop.f32.mrb[0].mxu0
      %v2561 = vpop.f32.mrb[0].mxu0
      %v2562 = vadd.f32 0.0, %v2561
      %v2563 = vpop.f32.mrb[0].mxu0
      %2564 = vmatprep.mubr.bf16.mxu0 0
      %2565 = vmatmul.mubr.bf16.gmra.mrb[0].mxu0 %v1509
      %v2566 = vpop.f32.mrb[0].mxu0
      %v2567 = vadd.f32 0.0, %v2566
      %v2568 = vpop.f32.mrb[0].mxu0
      %v2569 = vpop.f32.mrb[0].mxu0
      %v2570 = vadd.f32 0.0, %v2569
      %v2571 = vpop.f32.mrb[0].mxu0
      %2572 = vdwg.mxu0
      %v2573 = vadd.f32 %v1965, %v2319
      %v2574 = vadd.f32 %v1968, %v2322
      %v2575 = vadd.f32 %v1973, %v2327
      %v2576 = vadd.f32 %v1976, %v2330
      %v2577 = vadd.f32 %v1981, %v2335
      %v2578 = vadd.f32 %v1984, %v2338
      %v2579 = vadd.f32 %v1989, %v2343
      %v2580 = vadd.f32 %v1992, %v2346
      %v2581 = vadd.f32 %v1997, %v2351
      %v2582 = vadd.f32 %v2000, %v2354
      %v2583 = vadd.f32 %v2005, %v2359
      %v2584 = vadd.f32 %v2008, %v2362
      %v2585 = vadd.f32 %v2013, %v2367
      %v2586 = vadd.f32 %v2016, %v2370
      %v2587 = vadd.f32 %v2021, %v2375
      %v2588 = vadd.f32 %v2024, %v2378
      %v2589 = vadd.f32 %v2029, %v2383
      %v2590 = vadd.f32 %v2032, %v2386
      %v2591 = vadd.f32 %v2037, %v2391
      %v2592 = vadd.f32 %v2040, %v2394
      %v2593 = vadd.f32 %v2045, %v2399
      %v2594 = vadd.f32 %v2048, %v2402
      %v2595 = vadd.f32 %v2053, %v2407
      %v2596 = vadd.f32 %v2056, %v2410
      %v2597 = vadd.f32 %v2061, %v2415
      %v2598 = vadd.f32 %v2064, %v2418
      %v2599 = vadd.f32 %v2069, %v2423
      %v2600 = vadd.f32 %v2072, %v2426
      %v2601 = vadd.f32 %v2077, %v2431
      %v2602 = vadd.f32 %v2080, %v2434
      %v2603 = vadd.f32 %v2085, %v2439
      %v2604 = vadd.f32 %v2088, %v2442
      %v2605 = vadd.f32 %v2093, %v2447
      %v2606 = vadd.f32 %v2096, %v2450
      %v2607 = vadd.f32 %v2101, %v2455
      %v2608 = vadd.f32 %v2104, %v2458
      %v2609 = vadd.f32 %v2109, %v2463
      %v2610 = vadd.f32 %v2112, %v2466
      %v2611 = vadd.f32 %v2117, %v2471
      %v2612 = vadd.f32 %v2120, %v2474
      %v2613 = vadd.f32 %v2125, %v2479
      %v2614 = vadd.f32 %v2128, %v2482
      %v2615 = vadd.f32 %v2133, %v2487
      %v2616 = vadd.f32 %v2136, %v2490
      %v2617 = vadd.f32 %v2141, %v2495
      %v2618 = vadd.f32 %v2144, %v2498
      %v2619 = vadd.f32 %v2149, %v2503
      %v2620 = vadd.f32 %v2152, %v2506
      %v2621 = vadd.f32 %v2157, %v2511
      %v2622 = vadd.f32 %v2160, %v2514
      %v2623 = vadd.f32 %v2165, %v2519
      %v2624 = vadd.f32 %v2168, %v2522
      %v2625 = vadd.f32 %v2173, %v2527
      %v2626 = vadd.f32 %v2176, %v2530
      %v2627 = vadd.f32 %v2181, %v2535
      %v2628 = vadd.f32 %v2184, %v2538
      %v2629 = vadd.f32 %v2189, %v2543
      %v2630 = vadd.f32 %v2192, %v2546
      %v2631 = vadd.f32 %v2197, %v2551
      %v2632 = vadd.f32 %v2200, %v2554
      %v2633 = vadd.f32 %v2205, %v2559
      %v2634 = vadd.f32 %v2208, %v2562
      %v2635 = vadd.f32 %v2213, %v2567
      %v2636 = vadd.f32 %v2216, %v2570
      %s2637 = scalar_lea.vmem %s222, 192
      %v2638 = vld [vmem:[%s2637] sm:$0xf]
      %v2639 = vld [vmem:[%s2637 + $0x4] sm:$0xf]
      %v2640 = vld [vmem:[%s2637 + $0x8] sm:$0xf]
      %v2641 = vld [vmem:[%s2637 + $0xc] sm:$0xf]
      %v2642 = vld [vmem:[%s2637 + $0x10] sm:$0xf]
      %v2643 = vld [vmem:[%s2637 + $0x14] sm:$0xf]
      %v2644 = vld [vmem:[%s2637 + $0x18] sm:$0xf]
      %v2645 = vld [vmem:[%s2637 + $0x1c] sm:$0xf]
      %v2646 = vld [vmem:[%s2637 + $0x20] sm:$0xf]
      %v2647 = vld [vmem:[%s2637 + $0x24] sm:$0xf]
      %v2648 = vld [vmem:[%s2637 + $0x28] sm:$0xf]
      %v2649 = vld [vmem:[%s2637 + $0x2c] sm:$0xf]
      %v2650 = vld [vmem:[%s2637 + $0x30] sm:$0xf]
      %v2651 = vld [vmem:[%s2637 + $0x34] sm:$0xf]
      %v2652 = vld [vmem:[%s2637 + $0x38] sm:$0xf]
      %v2653 = vld [vmem:[%s2637 + $0x3c] sm:$0xf]
      %v2670 = vunpack.c.l.b16 %v2638
      %v2671 = vunpack.c.l.b16 %v2639
      %v2672 = vunpack.c.l.b16 %v2640
      %v2673 = vunpack.c.l.b16 %v2641
      %v2674 = vunpack.c.l.b16 %v2642
      %v2675 = vunpack.c.l.b16 %v2643
      %v2676 = vunpack.c.l.b16 %v2644
      %v2677 = vunpack.c.l.b16 %v2645
      %v2678 = vunpack.c.l.b16 %v2646
      %v2679 = vunpack.c.l.b16 %v2647
      %v2680 = vunpack.c.l.b16 %v2648
      %v2681 = vunpack.c.l.b16 %v2649
      %v2682 = vunpack.c.l.b16 %v2650
      %v2683 = vunpack.c.l.b16 %v2651
      %v2684 = vunpack.c.l.b16 %v2652
      %v2685 = vunpack.c.l.b16 %v2653
      %v2686 = vpack.c.b16 %v2671, %v2670
      %v2687 = vpack.c.b16 %v2673, %v2672
      %v2688 = vpack.c.b16 %v2675, %v2674
      %v2689 = vpack.c.b16 %v2677, %v2676
      %v2690 = vpack.c.b16 %v2679, %v2678
      %v2691 = vpack.c.b16 %v2681, %v2680
      %v2692 = vpack.c.b16 %v2683, %v2682
      %v2693 = vpack.c.b16 %v2685, %v2684
      %2702 = vmatprep.subr.bf16.mxu0 0
      %2703 = vmatpush1.bf16.msra.mxu0 %v2686
      %2704 = vmatprep.subr.bf16.mxu0 0
      %2705 = vmatpush1.bf16.msra.mxu0 %v2687
      %2706 = vmatprep.subr.bf16.mxu0 0
      %2707 = vmatpush1.bf16.msra.mxu0 %v2688
      %2708 = vmatprep.subr.bf16.mxu0 0
      %2709 = vmatpush1.bf16.msra.mxu0 %v2689
      %2710 = vmatprep.subr.bf16.mxu0 0
      %2711 = vmatpush1.bf16.msra.mxu0 %v2690
      %2712 = vmatprep.subr.bf16.mxu0 0
      %2713 = vmatpush1.bf16.msra.mxu0 %v2691
      %2714 = vmatprep.subr.bf16.mxu0 0
      %2715 = vmatpush1.bf16.msra.mxu0 %v2692
      %2716 = vmatprep.subr.bf16.mxu0 0
      %2717 = vmatpush1.bf16.msra.mxu0 %v2693
      %2718 = vmatprep.subr.bf16.mxu0 0
      %2719 = vmatpush1.bf16.msra.mxu0 0
      %2720 = vmatprep.subr.bf16.mxu0 0
      %2721 = vmatpush1.bf16.msra.mxu0 0
      %2722 = vmatprep.subr.bf16.mxu0 0
      %2723 = vmatpush1.bf16.msra.mxu0 0
      %2724 = vmatprep.subr.bf16.mxu0 0
      %2725 = vmatpush1.bf16.msra.mxu0 0
      %2726 = vmatprep.subr.bf16.mxu0 0
      %2727 = vmatpush1.bf16.msra.mxu0 0
      %2728 = vmatprep.subr.bf16.mxu0 0
      %2729 = vmatpush1.bf16.msra.mxu0 0
      %2730 = vmatprep.subr.bf16.mxu0 0
      %2731 = vmatpush1.bf16.msra.mxu0 0
      %2732 = vmatprep.subr.bf16.mxu0 0
      %2733 = vmatpush1.bf16.msra.mxu0 0
      %2734 = vmatprep.mubr.bf16.mxu0 0
      %2735 = vmatmul.mubr.bf16.gmra.mrb[0].mxu0 %v1405
      %v2736 = vpop.f32.mrb[0].mxu0
      %v2737 = vadd.f32 0.0, %v2736
      %v2738 = vpop.f32.mrb[0].mxu0
      %v2739 = vpop.f32.mrb[0].mxu0
      %v2740 = vadd.f32 0.0, %v2739
      %v2741 = vpop.f32.mrb[0].mxu0
      %2742 = vmatprep.mubr.bf16.mxu0 0
      %2743 = vmatmul.mubr.bf16.gmra.mrb[0].mxu0 %v1406
      %v2744 = vpop.f32.mrb[0].mxu0
      %v2745 = vadd.f32 0.0, %v2744
      %v2746 = vpop.f32.mrb[0].mxu0
      %v2747 = vpop.f32.mrb[0].mxu0
      %v2748 = vadd.f32 0.0, %v2747
      %v2749 = vpop.f32.mrb[0].mxu0
      %2750 = vmatprep.mubr.bf16.mxu0 0
      %2751 = vmatmul.mubr.bf16.gmra.mrb[0].mxu0 %v1407
      %v2752 = vpop.f32.mrb[0].mxu0
      %v2753 = vadd.f32 0.0, %v2752
      %v2754 = vpop.f32.mrb[0].mxu0
      %v2755 = vpop.f32.mrb[0].mxu0
      %v2756 = vadd.f32 0.0, %v2755
      %v2757 = vpop.f32.mrb[0].mxu0
      %2758 = vmatprep.mubr.bf16.mxu0 0
      %2759 = vmatmul.mubr.bf16.gmra.mrb[0].mxu0 %v1408
      %v2760 = vpop.f32.mrb[0].mxu0
      %v2761 = vadd.f32 0.0, %v2760
      %v2762 = vpop.f32.mrb[0].mxu0
      %v2763 = vpop.f32.mrb[0].mxu0
      %v2764 = vadd.f32 0.0, %v2763
      %v2765 = vpop.f32.mrb[0].mxu0
      %2766 = vmatprep.mubr.bf16.mxu0 0
      %2767 = vmatmul.mubr.bf16.gmra.mrb[0].mxu0 %v1409
      %v2768 = vpop.f32.mrb[0].mxu0
      %v2769 = vadd.f32 0.0, %v2768
      %v2770 = vpop.f32.mrb[0].mxu0
      %v2771 = vpop.f32.mrb[0].mxu0
      %v2772 = vadd.f32 0.0, %v2771
      %v2773 = vpop.f32.mrb[0].mxu0
      %2774 = vmatprep.mubr.bf16.mxu0 0
      %2775 = vmatmul.mubr.bf16.gmra.mrb[0].mxu0 %v1410
      %v2776 = vpop.f32.mrb[0].mxu0
      %v2777 = vadd.f32 0.0, %v2776
      %v2778 = vpop.f32.mrb[0].mxu0
      %v2779 = vpop.f32.mrb[0].mxu0
      %v2780 = vadd.f32 0.0, %v2779
      %v2781 = vpop.f32.mrb[0].mxu0
      %2782 = vmatprep.mubr.bf16.mxu0 0
      %2783 = vmatmul.mubr.bf16.gmra.mrb[0].mxu0 %v1411
      %v2784 = vpop.f32.mrb[0].mxu0
      %v2785 = vadd.f32 0.0, %v2784
      %v2786 = vpop.f32.mrb[0].mxu0
      %v2787 = vpop.f32.mrb[0].mxu0
      %v2788 = vadd.f32 0.0, %v2787
      %v2789 = vpop.f32.mrb[0].mxu0
      %2790 = vmatprep.mubr.bf16.mxu0 0
      %2791 = vmatmul.mubr.bf16.gmra.mrb[0].mxu0 %v1412
      %v2792 = vpop.f32.mrb[0].mxu0
      %v2793 = vadd.f32 0.0, %v2792
      %v2794 = vpop.f32.mrb[0].mxu0
      %v2795 = vpop.f32.mrb[0].mxu0
      %v2796 = vadd.f32 0.0, %v2795
      %v2797 = vpop.f32.mrb[0].mxu0
      %2798 = vmatprep.mubr.bf16.mxu0 0
      %2799 = vmatmul.mubr.bf16.gmra.mrb[0].mxu0 %v1413
      %v2800 = vpop.f32.mrb[0].mxu0
      %v2801 = vadd.f32 0.0, %v2800
      %v2802 = vpop.f32.mrb[0].mxu0
      %v2803 = vpop.f32.mrb[0].mxu0
      %v2804 = vadd.f32 0.0, %v2803
      %v2805 = vpop.f32.mrb[0].mxu0
      %2806 = vmatprep.mubr.bf16.mxu0 0
      %2807 = vmatmul.mubr.bf16.gmra.mrb[0].mxu0 %v1414
      %v2808 = vpop.f32.mrb[0].mxu0
      %v2809 = vadd.f32 0.0, %v2808
      %v2810 = vpop.f32.mrb[0].mxu0
      %v2811 = vpop.f32.mrb[0].mxu0
      %v2812 = vadd.f32 0.0, %v2811
      %v2813 = vpop.f32.mrb[0].mxu0
      %2814 = vmatprep.mubr.bf16.mxu0 0
      %2815 = vmatmul.mubr.bf16.gmra.mrb[0].mxu0 %v1415
      %v2816 = vpop.f32.mrb[0].mxu0
      %v2817 = vadd.f32 0.0, %v2816
      %v2818 = vpop.f32.mrb[0].mxu0
      %v2819 = vpop.f32.mrb[0].mxu0
      %v2820 = vadd.f32 0.0, %v2819
      %v2821 = vpop.f32.mrb[0].mxu0
      %2822 = vmatprep.mubr.bf16.mxu0 0
      %2823 = vmatmul.mubr.bf16.gmra.mrb[0].mxu0 %v1416
      %v2824 = vpop.f32.mrb[0].mxu0
      %v2825 = vadd.f32 0.0, %v2824
      %v2826 = vpop.f32.mrb[0].mxu0
      %v2827 = vpop.f32.mrb[0].mxu0
      %v2828 = vadd.f32 0.0, %v2827
      %v2829 = vpop.f32.mrb[0].mxu0
      %2830 = vmatprep.mubr.bf16.mxu0 0
      %2831 = vmatmul.mubr.bf16.gmra.mrb[0].mxu0 %v1417
      %v2832 = vpop.f32.mrb[0].mxu0
      %v2833 = vadd.f32 0.0, %v2832
      %v2834 = vpop.f32.mrb[0].mxu0
      %v2835 = vpop.f32.mrb[0].mxu0
      %v2836 = vadd.f32 0.0, %v2835
      %v2837 = vpop.f32.mrb[0].mxu0
      %2838 = vmatprep.mubr.bf16.mxu0 0
      %2839 = vmatmul.mubr.bf16.gmra.mrb[0].mxu0 %v1418
      %v2840 = vpop.f32.mrb[0].mxu0
      %v2841 = vadd.f32 0.0, %v2840
      %v2842 = vpop.f32.mrb[0].mxu0
      %v2843 = vpop.f32.mrb[0].mxu0
      %v2844 = vadd.f32 0.0, %v2843
      %v2845 = vpop.f32.mrb[0].mxu0
      %2846 = vmatprep.mubr.bf16.mxu0 0
      %2847 = vmatmul.mubr.bf16.gmra.mrb[0].mxu0 %v1419
      %v2848 = vpop.f32.mrb[0].mxu0
      %v2849 = vadd.f32 0.0, %v2848
      %v2850 = vpop.f32.mrb[0].mxu0
      %v2851 = vpop.f32.mrb[0].mxu0
      %v2852 = vadd.f32 0.0, %v2851
      %v2853 = vpop.f32.mrb[0].mxu0
      %2854 = vmatprep.mubr.bf16.mxu0 0
      %2855 = vmatmul.mubr.bf16.gmra.mrb[0].mxu0 %v1420
      %v2856 = vpop.f32.mrb[0].mxu0
      %v2857 = vadd.f32 0.0, %v2856
      %v2858 = vpop.f32.mrb[0].mxu0
      %v2859 = vpop.f32.mrb[0].mxu0
      %v2860 = vadd.f32 0.0, %v2859
      %v2861 = vpop.f32.mrb[0].mxu0
      %2862 = vmatprep.mubr.bf16.mxu0 0
      %2863 = vmatmul.mubr.bf16.gmra.mrb[0].mxu0 %v1423
      %v2864 = vpop.f32.mrb[0].mxu0
      %v2865 = vadd.f32 0.0, %v2864
      %v2866 = vpop.f32.mrb[0].mxu0
      %v2867 = vpop.f32.mrb[0].mxu0
      %v2868 = vadd.f32 0.0, %v2867
      %v2869 = vpop.f32.mrb[0].mxu0
      %2870 = vmatprep.mubr.bf16.mxu0 0
      %2871 = vmatmul.mubr.bf16.gmra.mrb[0].mxu0 %v1424
      %v2872 = vpop.f32.mrb[0].mxu0
      %v2873 = vadd.f32 0.0, %v2872
      %v2874 = vpop.f32.mrb[0].mxu0
      %v2875 = vpop.f32.mrb[0].mxu0
      %v2876 = vadd.f32 0.0, %v2875
      %v2877 = vpop.f32.mrb[0].mxu0
      %2878 = vmatprep.mubr.bf16.mxu0 0
      %2879 = vmatmul.mubr.bf16.gmra.mrb[0].mxu0 %v1425
      %v2880 = vpop.f32.mrb[0].mxu0
      %v2881 = vadd.f32 0.0, %v2880
      %v2882 = vpop.f32.mrb[0].mxu0
      %v2883 = vpop.f32.mrb[0].mxu0
      %v2884 = vadd.f32 0.0, %v2883
      %v2885 = vpop.f32.mrb[0].mxu0
      %2886 = vmatprep.mubr.bf16.mxu0 0
      %2887 = vmatmul.mubr.bf16.gmra.mrb[0].mxu0 %v1426
      %v2888 = vpop.f32.mrb[0].mxu0
      %v2889 = vadd.f32 0.0, %v2888
      %v2890 = vpop.f32.mrb[0].mxu0
      %v2891 = vpop.f32.mrb[0].mxu0
      %v2892 = vadd.f32 0.0, %v2891
      %v2893 = vpop.f32.mrb[0].mxu0
      %2894 = vmatprep.mubr.bf16.mxu0 0
      %2895 = vmatmul.mubr.bf16.gmra.mrb[0].mxu0 %v1427
      %v2896 = vpop.f32.mrb[0].mxu0
      %v2897 = vadd.f32 0.0, %v2896
      %v2898 = vpop.f32.mrb[0].mxu0
      %v2899 = vpop.f32.mrb[0].mxu0
      %v2900 = vadd.f32 0.0, %v2899
      %v2901 = vpop.f32.mrb[0].mxu0
      %2902 = vmatprep.mubr.bf16.mxu0 0
      %2903 = vmatmul.mubr.bf16.gmra.mrb[0].mxu0 %v1428
      %v2904 = vpop.f32.mrb[0].mxu0
      %v2905 = vadd.f32 0.0, %v2904
      %v2906 = vpop.f32.mrb[0].mxu0
      %v2907 = vpop.f32.mrb[0].mxu0
      %v2908 = vadd.f32 0.0, %v2907
      %v2909 = vpop.f32.mrb[0].mxu0
      %2910 = vmatprep.mubr.bf16.mxu0 0
      %2911 = vmatmul.mubr.bf16.gmra.mrb[0].mxu0 %v1429
      %v2912 = vpop.f32.mrb[0].mxu0
      %v2913 = vadd.f32 0.0, %v2912
      %v2914 = vpop.f32.mrb[0].mxu0
      %v2915 = vpop.f32.mrb[0].mxu0
      %v2916 = vadd.f32 0.0, %v2915
      %v2917 = vpop.f32.mrb[0].mxu0
      %2918 = vmatprep.mubr.bf16.mxu0 0
      %2919 = vmatmul.mubr.bf16.gmra.mrb[0].mxu0 %v1430
      %v2920 = vpop.f32.mrb[0].mxu0
      %v2921 = vadd.f32 0.0, %v2920
      %v2922 = vpop.f32.mrb[0].mxu0
      %v2923 = vpop.f32.mrb[0].mxu0
      %v2924 = vadd.f32 0.0, %v2923
      %v2925 = vpop.f32.mrb[0].mxu0
      %2926 = vmatprep.mubr.bf16.mxu0 0
      %2927 = vmatmul.mubr.bf16.gmra.mrb[0].mxu0 %v1431
      %v2928 = vpop.f32.mrb[0].mxu0
      %v2929 = vadd.f32 0.0, %v2928
      %v2930 = vpop.f32.mrb[0].mxu0
      %v2931 = vpop.f32.mrb[0].mxu0
      %v2932 = vadd.f32 0.0, %v2931
      %v2933 = vpop.f32.mrb[0].mxu0
      %2934 = vmatprep.mubr.bf16.mxu0 0
      %2935 = vmatmul.mubr.bf16.gmra.mrb[0].mxu0 %v1432
      %v2936 = vpop.f32.mrb[0].mxu0
      %v2937 = vadd.f32 0.0, %v2936
      %v2938 = vpop.f32.mrb[0].mxu0
      %v2939 = vpop.f32.mrb[0].mxu0
      %v2940 = vadd.f32 0.0, %v2939
      %v2941 = vpop.f32.mrb[0].mxu0
      %2942 = vmatprep.mubr.bf16.mxu0 0
      %2943 = vmatmul.mubr.bf16.gmra.mrb[0].mxu0 %v1433
      %v2944 = vpop.f32.mrb[0].mxu0
      %v2945 = vadd.f32 0.0, %v2944
      %v2946 = vpop.f32.mrb[0].mxu0
      %v2947 = vpop.f32.mrb[0].mxu0
      %v2948 = vadd.f32 0.0, %v2947
      %v2949 = vpop.f32.mrb[0].mxu0
      %2950 = vmatprep.mubr.bf16.mxu0 0
      %2951 = vmatmul.mubr.bf16.gmra.mrb[0].mxu0 %v1434
      %v2952 = vpop.f32.mrb[0].mxu0
      %v2953 = vadd.f32 0.0, %v2952
      %v2954 = vpop.f32.mrb[0].mxu0
      %v2955 = vpop.f32.mrb[0].mxu0
      %v2956 = vadd.f32 0.0, %v2955
      %v2957 = vpop.f32.mrb[0].mxu0
      %2958 = vmatprep.mubr.bf16.mxu0 0
      %2959 = vmatmul.mubr.bf16.gmra.mrb[0].mxu0 %v1435
      %v2960 = vpop.f32.mrb[0].mxu0
      %v2961 = vadd.f32 0.0, %v2960
      %v2962 = vpop.f32.mrb[0].mxu0
      %v2963 = vpop.f32.mrb[0].mxu0
      %v2964 = vadd.f32 0.0, %v2963
      %v2965 = vpop.f32.mrb[0].mxu0
      %2966 = vmatprep.mubr.bf16.mxu0 0
      %2967 = vmatmul.mubr.bf16.gmra.mrb[0].mxu0 %v1436
      %v2968 = vpop.f32.mrb[0].mxu0
      %v2969 = vadd.f32 0.0, %v2968
      %v2970 = vpop.f32.mrb[0].mxu0
      %v2971 = vpop.f32.mrb[0].mxu0
      %v2972 = vadd.f32 0.0, %v2971
      %v2973 = vpop.f32.mrb[0].mxu0
      %2974 = vmatprep.mubr.bf16.mxu0 0
      %2975 = vmatmul.mubr.bf16.gmra.mrb[0].mxu0 %v1437
      %v2976 = vpop.f32.mrb[0].mxu0
      %v2977 = vadd.f32 0.0, %v2976
      %v2978 = vpop.f32.mrb[0].mxu0
      %v2979 = vpop.f32.mrb[0].mxu0
      %v2980 = vadd.f32 0.0, %v2979
      %v2981 = vpop.f32.mrb[0].mxu0
      %2982 = vmatprep.mubr.bf16.mxu0 0
      %2983 = vmatmul.mubr.bf16.gmra.mrb[0].mxu0 %v1438
      %v2984 = vpop.f32.mrb[0].mxu0
      %v2985 = vadd.f32 0.0, %v2984
      %v2986 = vpop.f32.mrb[0].mxu0
      %v2987 = vpop.f32.mrb[0].mxu0
      %v2988 = vadd.f32 0.0, %v2987
      %v2989 = vpop.f32.mrb[0].mxu0
      %2990 = vdwg.mxu0
      %v2991 = vadd.f32 %v2573, %v2737
      %v2992 = vadd.f32 %v2574, %v2740
      %v2993 = vadd.f32 %v2575, %v2745
      %v2994 = vadd.f32 %v2576, %v2748
      %v2995 = vadd.f32 %v2577, %v2753
      %v2996 = vadd.f32 %v2578, %v2756
      %v2997 = vadd.f32 %v2579, %v2761
      %v2998 = vadd.f32 %v2580, %v2764
      %v2999 = vadd.f32 %v2581, %v2769
      %v3000 = vadd.f32 %v2582, %v2772
      %v3001 = vadd.f32 %v2583, %v2777
      %v3002 = vadd.f32 %v2584, %v2780
      %v3003 = vadd.f32 %v2585, %v2785
      %v3004 = vadd.f32 %v2586, %v2788
      %v3005 = vadd.f32 %v2587, %v2793
      %v3006 = vadd.f32 %v2588, %v2796
      %v3007 = vadd.f32 %v2589, %v2801
      %v3008 = vadd.f32 %v2590, %v2804
      %v3009 = vadd.f32 %v2591, %v2809
      %v3010 = vadd.f32 %v2592, %v2812
      %v3011 = vadd.f32 %v2593, %v2817
      %v3012 = vadd.f32 %v2594, %v2820
      %v3013 = vadd.f32 %v2595, %v2825
      %v3014 = vadd.f32 %v2596, %v2828
      %v3015 = vadd.f32 %v2597, %v2833
      %v3016 = vadd.f32 %v2598, %v2836
      %v3017 = vadd.f32 %v2599, %v2841
      %v3018 = vadd.f32 %v2600, %v2844
      %v3019 = vadd.f32 %v2601, %v2849
      %v3020 = vadd.f32 %v2602, %v2852
      %v3021 = vadd.f32 %v2603, %v2857
      %v3022 = vadd.f32 %v2604, %v2860
      %v3023 = vadd.f32 %v2605, %v2865
      %v3024 = vadd.f32 %v2606, %v2868
      %v3025 = vadd.f32 %v2607, %v2873
      %v3026 = vadd.f32 %v2608, %v2876
      %v3027 = vadd.f32 %v2609, %v2881
      %v3028 = vadd.f32 %v2610, %v2884
      %v3029 = vadd.f32 %v2611, %v2889
      %v3030 = vadd.f32 %v2612, %v2892
      %v3031 = vadd.f32 %v2613, %v2897
      %v3032 = vadd.f32 %v2614, %v2900
      %v3033 = vadd.f32 %v2615, %v2905
      %v3034 = vadd.f32 %v2616, %v2908
      %v3035 = vadd.f32 %v2617, %v2913
      %v3036 = vadd.f32 %v2618, %v2916
      %v3037 = vadd.f32 %v2619, %v2921
      %v3038 = vadd.f32 %v2620, %v2924
      %v3039 = vadd.f32 %v2621, %v2929
      %v3040 = vadd.f32 %v2622, %v2932
      %v3041 = vadd.f32 %v2623, %v2937
      %v3042 = vadd.f32 %v2624, %v2940
      %v3043 = vadd.f32 %v2625, %v2945
      %v3044 = vadd.f32 %v2626, %v2948
      %v3045 = vadd.f32 %v2627, %v2953
      %v3046 = vadd.f32 %v2628, %v2956
      %v3047 = vadd.f32 %v2629, %v2961
      %v3048 = vadd.f32 %v2630, %v2964
      %v3049 = vadd.f32 %v2631, %v2969
      %v3050 = vadd.f32 %v2632, %v2972
      %v3051 = vadd.f32 %v2633, %v2977
      %v3052 = vadd.f32 %v2634, %v2980
      %v3053 = vadd.f32 %v2635, %v2985
      %v3054 = vadd.f32 %v2636, %v2988
      %s3055 = scalar_lea.vmem %s222, 256
      %v3056 = vld [vmem:[%s3055] sm:$0xf]
      %v3057 = vld [vmem:[%s3055 + $0x4] sm:$0xf]
      %v3058 = vld [vmem:[%s3055 + $0x8] sm:$0xf]
      %v3059 = vld [vmem:[%s3055 + $0xc] sm:$0xf]
      %v3060 = vld [vmem:[%s3055 + $0x10] sm:$0xf]
      %v3061 = vld [vmem:[%s3055 + $0x14] sm:$0xf]
      %v3062 = vld [vmem:[%s3055 + $0x18] sm:$0xf]
      %v3063 = vld [vmem:[%s3055 + $0x1c] sm:$0xf]
      %v3064 = vld [vmem:[%s3055 + $0x20] sm:$0xf]
      %v3065 = vld [vmem:[%s3055 + $0x24] sm:$0xf]
      %v3066 = vld [vmem:[%s3055 + $0x28] sm:$0xf]
      %v3067 = vld [vmem:[%s3055 + $0x2c] sm:$0xf]
      %v3068 = vld [vmem:[%s3055 + $0x30] sm:$0xf]
      %v3069 = vld [vmem:[%s3055 + $0x34] sm:$0xf]
      %v3070 = vld [vmem:[%s3055 + $0x38] sm:$0xf]
      %v3071 = vld [vmem:[%s3055 + $0x3c] sm:$0xf]
      %v3088 = vunpack.c.l.b16 %v3056
      %v3089 = vunpack.c.l.b16 %v3057
      %v3090 = vunpack.c.l.b16 %v3058
      %v3091 = vunpack.c.l.b16 %v3059
      %v3092 = vunpack.c.l.b16 %v3060
      %v3093 = vunpack.c.l.b16 %v3061
      %v3094 = vunpack.c.l.b16 %v3062
      %v3095 = vunpack.c.l.b16 %v3063
      %v3096 = vunpack.c.l.b16 %v3064
      %v3097 = vunpack.c.l.b16 %v3065
      %v3098 = vunpack.c.l.b16 %v3066
      %v3099 = vunpack.c.l.b16 %v3067
      %v3100 = vunpack.c.l.b16 %v3068
      %v3101 = vunpack.c.l.b16 %v3069
      %v3102 = vunpack.c.l.b16 %v3070
      %v3103 = vunpack.c.l.b16 %v3071
      %v3104 = vpack.c.b16 %v3089, %v3088
      %v3105 = vpack.c.b16 %v3091, %v3090
      %v3106 = vpack.c.b16 %v3093, %v3092
      %v3107 = vpack.c.b16 %v3095, %v3094
      %v3108 = vpack.c.b16 %v3097, %v3096
      %v3109 = vpack.c.b16 %v3099, %v3098
      %v3110 = vpack.c.b16 %v3101, %v3100
      %v3111 = vpack.c.b16 %v3103, %v3102
      %3120 = vmatprep.subr.bf16.mxu0 0
      %3121 = vmatpush1.bf16.msra.mxu0 %v3104
      %3122 = vmatprep.subr.bf16.mxu0 0
      %3123 = vmatpush1.bf16.msra.mxu0 %v3105
      %3124 = vmatprep.subr.bf16.mxu0 0
      %3125 = vmatpush1.bf16.msra.mxu0 %v3106
      %3126 = vmatprep.subr.bf16.mxu0 0
      %3127 = vmatpush1.bf16.msra.mxu0 %v3107
      %3128 = vmatprep.subr.bf16.mxu0 0
      %3129 = vmatpush1.bf16.msra.mxu0 %v3108
      %3130 = vmatprep.subr.bf16.mxu0 0
      %3131 = vmatpush1.bf16.msra.mxu0 %v3109
      %3132 = vmatprep.subr.bf16.mxu0 0
      %3133 = vmatpush1.bf16.msra.mxu0 %v3110
      %3134 = vmatprep.subr.bf16.mxu0 0
      %3135 = vmatpush1.bf16.msra.mxu0 %v3111
      %3136 = vmatprep.subr.bf16.mxu0 0
      %3137 = vmatpush1.bf16.msra.mxu0 0
      %3138 = vmatprep.subr.bf16.mxu0 0
      %3139 = vmatpush1.bf16.msra.mxu0 0
      %3140 = vmatprep.subr.bf16.mxu0 0
      %3141 = vmatpush1.bf16.msra.mxu0 0
      %3142 = vmatprep.subr.bf16.mxu0 0
      %3143 = vmatpush1.bf16.msra.mxu0 0
      %3144 = vmatprep.subr.bf16.mxu0 0
      %3145 = vmatpush1.bf16.msra.mxu0 0
      %3146 = vmatprep.subr.bf16.mxu0 0
      %3147 = vmatpush1.bf16.msra.mxu0 0
      %3148 = vmatprep.subr.bf16.mxu0 0
      %3149 = vmatpush1.bf16.msra.mxu0 0
      %3150 = vmatprep.subr.bf16.mxu0 0
      %3151 = vmatpush1.bf16.msra.mxu0 0
      %3152 = vmatprep.mubr.bf16.mxu0 0
      %3153 = vmatmul.mubr.bf16.gmra.mrb[0].mxu0 %v1441
      %v3154 = vpop.f32.mrb[0].mxu0
      %v3155 = vadd.f32 0.0, %v3154
      %v3156 = vpop.f32.mrb[0].mxu0
      %v3157 = vpop.f32.mrb[0].mxu0
      %v3158 = vadd.f32 0.0, %v3157
      %v3159 = vpop.f32.mrb[0].mxu0
      %3160 = vmatprep.mubr.bf16.mxu0 0
      %3161 = vmatmul.mubr.bf16.gmra.mrb[0].mxu0 %v1442
      %v3162 = vpop.f32.mrb[0].mxu0
      %v3163 = vadd.f32 0.0, %v3162
      %v3164 = vpop.f32.mrb[0].mxu0
      %v3165 = vpop.f32.mrb[0].mxu0
      %v3166 = vadd.f32 0.0, %v3165
      %v3167 = vpop.f32.mrb[0].mxu0
      %3168 = vmatprep.mubr.bf16.mxu0 0
      %3169 = vmatmul.mubr.bf16.gmra.mrb[0].mxu0 %v1443
      %v3170 = vpop.f32.mrb[0].mxu0
      %v3171 = vadd.f32 0.0, %v3170
      %v3172 = vpop.f32.mrb[0].mxu0
      %v3173 = vpop.f32.mrb[0].mxu0
      %v3174 = vadd.f32 0.0, %v3173
      %v3175 = vpop.f32.mrb[0].mxu0
      %3176 = vmatprep.mubr.bf16.mxu0 0
      %3177 = vmatmul.mubr.bf16.gmra.mrb[0].mxu0 %v1444
      %v3178 = vpop.f32.mrb[0].mxu0
      %v3179 = vadd.f32 0.0, %v3178
      %v3180 = vpop.f32.mrb[0].mxu0
      %v3181 = vpop.f32.mrb[0].mxu0
      %v3182 = vadd.f32 0.0, %v3181
      %v3183 = vpop.f32.mrb[0].mxu0
      %3184 = vmatprep.mubr.bf16.mxu0 0
      %3185 = vmatmul.mubr.bf16.gmra.mrb[0].mxu0 %v1445
      %v3186 = vpop.f32.mrb[0].mxu0
      %v3187 = vadd.f32 0.0, %v3186
      %v3188 = vpop.f32.mrb[0].mxu0
      %v3189 = vpop.f32.mrb[0].mxu0
      %v3190 = vadd.f32 0.0, %v3189
      %v3191 = vpop.f32.mrb[0].mxu0
      %3192 = vmatprep.mubr.bf16.mxu0 0
      %3193 = vmatmul.mubr.bf16.gmra.mrb[0].mxu0 %v1446
      %v3194 = vpop.f32.mrb[0].mxu0
      %v3195 = vadd.f32 0.0, %v3194
      %v3196 = vpop.f32.mrb[0].mxu0
      %v3197 = vpop.f32.mrb[0].mxu0
      %v3198 = vadd.f32 0.0, %v3197
      %v3199 = vpop.f32.mrb[0].mxu0
      %3200 = vmatprep.mubr.bf16.mxu0 0
      %3201 = vmatmul.mubr.bf16.gmra.mrb[0].mxu0 %v1447
      %v3202 = vpop.f32.mrb[0].mxu0
      %v3203 = vadd.f32 0.0, %v3202
      %v3204 = vpop.f32.mrb[0].mxu0
      %v3205 = vpop.f32.mrb[0].mxu0
      %v3206 = vadd.f32 0.0, %v3205
      %v3207 = vpop.f32.mrb[0].mxu0
      %3208 = vmatprep.mubr.bf16.mxu0 0
      %3209 = vmatmul.mubr.bf16.gmra.mrb[0].mxu0 %v1448
      %v3210 = vpop.f32.mrb[0].mxu0
      %v3211 = vadd.f32 0.0, %v3210
      %v3212 = vpop.f32.mrb[0].mxu0
      %v3213 = vpop.f32.mrb[0].mxu0
      %v3214 = vadd.f32 0.0, %v3213
      %v3215 = vpop.f32.mrb[0].mxu0
      %3216 = vmatprep.mubr.bf16.mxu0 0
      %3217 = vmatmul.mubr.bf16.gmra.mrb[0].mxu0 %v1449
      %v3218 = vpop.f32.mrb[0].mxu0
      %v3219 = vadd.f32 0.0, %v3218
      %v3220 = vpop.f32.mrb[0].mxu0
      %v3221 = vpop.f32.mrb[0].mxu0
      %v3222 = vadd.f32 0.0, %v3221
      %v3223 = vpop.f32.mrb[0].mxu0
      %3224 = vmatprep.mubr.bf16.mxu0 0
      %3225 = vmatmul.mubr.bf16.gmra.mrb[0].mxu0 %v1450
      %v3226 = vpop.f32.mrb[0].mxu0
      %v3227 = vadd.f32 0.0, %v3226
      %v3228 = vpop.f32.mrb[0].mxu0
      %v3229 = vpop.f32.mrb[0].mxu0
      %v3230 = vadd.f32 0.0, %v3229
      %v3231 = vpop.f32.mrb[0].mxu0
      %3232 = vmatprep.mubr.bf16.mxu0 0
      %3233 = vmatmul.mubr.bf16.gmra.mrb[0].mxu0 %v1451
      %v3234 = vpop.f32.mrb[0].mxu0
      %v3235 = vadd.f32 0.0, %v3234
      %v3236 = vpop.f32.mrb[0].mxu0
      %v3237 = vpop.f32.mrb[0].mxu0
      %v3238 = vadd.f32 0.0, %v3237
      %v3239 = vpop.f32.mrb[0].mxu0
      %3240 = vmatprep.mubr.bf16.mxu0 0
      %3241 = vmatmul.mubr.bf16.gmra.mrb[0].mxu0 %v1452
      %v3242 = vpop.f32.mrb[0].mxu0
      %v3243 = vadd.f32 0.0, %v3242
      %v3244 = vpop.f32.mrb[0].mxu0
      %v3245 = vpop.f32.mrb[0].mxu0
      %v3246 = vadd.f32 0.0, %v3245
      %v3247 = vpop.f32.mrb[0].mxu0
      %3248 = vmatprep.mubr.bf16.mxu0 0
      %3249 = vmatmul.mubr.bf16.gmra.mrb[0].mxu0 %v1453
      %v3250 = vpop.f32.mrb[0].mxu0
      %v3251 = vadd.f32 0.0, %v3250
      %v3252 = vpop.f32.mrb[0].mxu0
      %v3253 = vpop.f32.mrb[0].mxu0
      %v3254 = vadd.f32 0.0, %v3253
      %v3255 = vpop.f32.mrb[0].mxu0
      %3256 = vmatprep.mubr.bf16.mxu0 0
      %3257 = vmatmul.mubr.bf16.gmra.mrb[0].mxu0 %v1454
      %v3258 = vpop.f32.mrb[0].mxu0
      %v3259 = vadd.f32 0.0, %v3258
      %v3260 = vpop.f32.mrb[0].mxu0
      %v3261 = vpop.f32.mrb[0].mxu0
      %v3262 = vadd.f32 0.0, %v3261
      %v3263 = vpop.f32.mrb[0].mxu0
      %3264 = vmatprep.mubr.bf16.mxu0 0
      %3265 = vmatmul.mubr.bf16.gmra.mrb[0].mxu0 %v1455
      %v3266 = vpop.f32.mrb[0].mxu0
      %v3267 = vadd.f32 0.0, %v3266
      %v3268 = vpop.f32.mrb[0].mxu0
      %v3269 = vpop.f32.mrb[0].mxu0
      %v3270 = vadd.f32 0.0, %v3269
      %v3271 = vpop.f32.mrb[0].mxu0
      %3272 = vmatprep.mubr.bf16.mxu0 0
      %3273 = vmatmul.mubr.bf16.gmra.mrb[0].mxu0 %v1456
      %v3274 = vpop.f32.mrb[0].mxu0
      %v3275 = vadd.f32 0.0, %v3274
      %v3276 = vpop.f32.mrb[0].mxu0
      %v3277 = vpop.f32.mrb[0].mxu0
      %v3278 = vadd.f32 0.0, %v3277
      %v3279 = vpop.f32.mrb[0].mxu0
      %3280 = vmatprep.mubr.bf16.mxu0 0
      %3281 = vmatmul.mubr.bf16.gmra.mrb[0].mxu0 %v1459
      %v3282 = vpop.f32.mrb[0].mxu0
      %v3283 = vadd.f32 0.0, %v3282
      %v3284 = vpop.f32.mrb[0].mxu0
      %v3285 = vpop.f32.mrb[0].mxu0
      %v3286 = vadd.f32 0.0, %v3285
      %v3287 = vpop.f32.mrb[0].mxu0
      %3288 = vmatprep.mubr.bf16.mxu0 0
      %3289 = vmatmul.mubr.bf16.gmra.mrb[0].mxu0 %v1460
      %v3290 = vpop.f32.mrb[0].mxu0
      %v3291 = vadd.f32 0.0, %v3290
      %v3292 = vpop.f32.mrb[0].mxu0
      %v3293 = vpop.f32.mrb[0].mxu0
      %v3294 = vadd.f32 0.0, %v3293
      %v3295 = vpop.f32.mrb[0].mxu0
      %3296 = vmatprep.mubr.bf16.mxu0 0
      %3297 = vmatmul.mubr.bf16.gmra.mrb[0].mxu0 %v1461
      %v3298 = vpop.f32.mrb[0].mxu0
      %v3299 = vadd.f32 0.0, %v3298
      %v3300 = vpop.f32.mrb[0].mxu0
      %v3301 = vpop.f32.mrb[0].mxu0
      %v3302 = vadd.f32 0.0, %v3301
      %v3303 = vpop.f32.mrb[0].mxu0
      %3304 = vmatprep.mubr.bf16.mxu0 0
      %3305 = vmatmul.mubr.bf16.gmra.mrb[0].mxu0 %v1462
      %v3306 = vpop.f32.mrb[0].mxu0
      %v3307 = vadd.f32 0.0, %v3306
      %v3308 = vpop.f32.mrb[0].mxu0
      %v3309 = vpop.f32.mrb[0].mxu0
      %v3310 = vadd.f32 0.0, %v3309
      %v3311 = vpop.f32.mrb[0].mxu0
      %3312 = vmatprep.mubr.bf16.mxu0 0
      %3313 = vmatmul.mubr.bf16.gmra.mrb[0].mxu0 %v1463
      %v3314 = vpop.f32.mrb[0].mxu0
      %v3315 = vadd.f32 0.0, %v3314
      %v3316 = vpop.f32.mrb[0].mxu0
      %v3317 = vpop.f32.mrb[0].mxu0
      %v3318 = vadd.f32 0.0, %v3317
      %v3319 = vpop.f32.mrb[0].mxu0
      %3320 = vmatprep.mubr.bf16.mxu0 0
      %3321 = vmatmul.mubr.bf16.gmra.mrb[0].mxu0 %v1464
      %v3322 = vpop.f32.mrb[0].mxu0
      %v3323 = vadd.f32 0.0, %v3322
      %v3324 = vpop.f32.mrb[0].mxu0
      %v3325 = vpop.f32.mrb[0].mxu0
      %v3326 = vadd.f32 0.0, %v3325
      %v3327 = vpop.f32.mrb[0].mxu0
      %3328 = vmatprep.mubr.bf16.mxu0 0
      %3329 = vmatmul.mubr.bf16.gmra.mrb[0].mxu0 %v1465
      %v3330 = vpop.f32.mrb[0].mxu0
      %v3331 = vadd.f32 0.0, %v3330
      %v3332 = vpop.f32.mrb[0].mxu0
      %v3333 = vpop.f32.mrb[0].mxu0
      %v3334 = vadd.f32 0.0, %v3333
      %v3335 = vpop.f32.mrb[0].mxu0
      %3336 = vmatprep.mubr.bf16.mxu0 0
      %3337 = vmatmul.mubr.bf16.gmra.mrb[0].mxu0 %v1466
      %v3338 = vpop.f32.mrb[0].mxu0
      %v3339 = vadd.f32 0.0, %v3338
      %v3340 = vpop.f32.mrb[0].mxu0
      %v3341 = vpop.f32.mrb[0].mxu0
      %v3342 = vadd.f32 0.0, %v3341
      %v3343 = vpop.f32.mrb[0].mxu0
      %3344 = vmatprep.mubr.bf16.mxu0 0
      %3345 = vmatmul.mubr.bf16.gmra.mrb[0].mxu0 %v1467
      %v3346 = vpop.f32.mrb[0].mxu0
      %v3347 = vadd.f32 0.0, %v3346
      %v3348 = vpop.f32.mrb[0].mxu0
      %v3349 = vpop.f32.mrb[0].mxu0
      %v3350 = vadd.f32 0.0, %v3349
      %v3351 = vpop.f32.mrb[0].mxu0
      %3352 = vmatprep.mubr.bf16.mxu0 0
      %3353 = vmatmul.mubr.bf16.gmra.mrb[0].mxu0 %v1468
      %v3354 = vpop.f32.mrb[0].mxu0
      %v3355 = vadd.f32 0.0, %v3354
      %v3356 = vpop.f32.mrb[0].mxu0
      %v3357 = vpop.f32.mrb[0].mxu0
      %v3358 = vadd.f32 0.0, %v3357
      %v3359 = vpop.f32.mrb[0].mxu0
      %3360 = vmatprep.mubr.bf16.mxu0 0
      %3361 = vmatmul.mubr.bf16.gmra.mrb[0].mxu0 %v1469
      %v3362 = vpop.f32.mrb[0].mxu0
      %v3363 = vadd.f32 0.0, %v3362
      %v3364 = vpop.f32.mrb[0].mxu0
      %v3365 = vpop.f32.mrb[0].mxu0
      %v3366 = vadd.f32 0.0, %v3365
      %v3367 = vpop.f32.mrb[0].mxu0
      %3368 = vmatprep.mubr.bf16.mxu0 0
      %3369 = vmatmul.mubr.bf16.gmra.mrb[0].mxu0 %v1470
      %v3370 = vpop.f32.mrb[0].mxu0
      %v3371 = vadd.f32 0.0, %v3370
      %v3372 = vpop.f32.mrb[0].mxu0
      %v3373 = vpop.f32.mrb[0].mxu0
      %v3374 = vadd.f32 0.0, %v3373
      %v3375 = vpop.f32.mrb[0].mxu0
      %3376 = vmatprep.mubr.bf16.mxu0 0
      %3377 = vmatmul.mubr.bf16.gmra.mrb[0].mxu0 %v1471
      %v3378 = vpop.f32.mrb[0].mxu0
      %v3379 = vadd.f32 0.0, %v3378
      %v3380 = vpop.f32.mrb[0].mxu0
      %v3381 = vpop.f32.mrb[0].mxu0
      %v3382 = vadd.f32 0.0, %v3381
      %v3383 = vpop.f32.mrb[0].mxu0
      %3384 = vmatprep.mubr.bf16.mxu0 0
      %3385 = vmatmul.mubr.bf16.gmra.mrb[0].mxu0 %v1472
      %v3386 = vpop.f32.mrb[0].mxu0
      %v3387 = vadd.f32 0.0, %v3386
      %v3388 = vpop.f32.mrb[0].mxu0
      %v3389 = vpop.f32.mrb[0].mxu0
      %v3390 = vadd.f32 0.0, %v3389
      %v3391 = vpop.f32.mrb[0].mxu0
      %3392 = vmatprep.mubr.bf16.mxu0 0
      %3393 = vmatmul.mubr.bf16.gmra.mrb[0].mxu0 %v1473
      %v3394 = vpop.f32.mrb[0].mxu0
      %v3395 = vadd.f32 0.0, %v3394
      %v3396 = vpop.f32.mrb[0].mxu0
      %v3397 = vpop.f32.mrb[0].mxu0
      %v3398 = vadd.f32 0.0, %v3397
      %v3399 = vpop.f32.mrb[0].mxu0
      %3400 = vmatprep.mubr.bf16.mxu0 0
      %3401 = vmatmul.mubr.bf16.gmra.mrb[0].mxu0 %v1474
      %v3402 = vpop.f32.mrb[0].mxu0
      %v3403 = vadd.f32 0.0, %v3402
      %v3404 = vpop.f32.mrb[0].mxu0
      %v3405 = vpop.f32.mrb[0].mxu0
      %v3406 = vadd.f32 0.0, %v3405
      %v3407 = vpop.f32.mrb[0].mxu0
      %3408 = vdwg.mxu0
      %v3409 = vadd.f32 %v2991, %v3155
      %v3410 = vadd.f32 %v2992, %v3158
      %v3411 = vadd.f32 %v2993, %v3163
      %v3412 = vadd.f32 %v2994, %v3166
      %v3413 = vadd.f32 %v2995, %v3171
      %v3414 = vadd.f32 %v2996, %v3174
      %v3415 = vadd.f32 %v2997, %v3179
      %v3416 = vadd.f32 %v2998, %v3182
      %v3417 = vadd.f32 %v2999, %v3187
      %v3418 = vadd.f32 %v3000, %v3190
      %v3419 = vadd.f32 %v3001, %v3195
      %v3420 = vadd.f32 %v3002, %v3198
      %v3421 = vadd.f32 %v3003, %v3203
      %v3422 = vadd.f32 %v3004, %v3206
      %v3423 = vadd.f32 %v3005, %v3211
      %v3424 = vadd.f32 %v3006, %v3214
      %v3425 = vadd.f32 %v3007, %v3219
      %v3426 = vadd.f32 %v3008, %v3222
      %v3427 = vadd.f32 %v3009, %v3227
      %v3428 = vadd.f32 %v3010, %v3230
      %v3429 = vadd.f32 %v3011, %v3235
      %v3430 = vadd.f32 %v3012, %v3238
      %v3431 = vadd.f32 %v3013, %v3243
      %v3432 = vadd.f32 %v3014, %v3246
      %v3433 = vadd.f32 %v3015, %v3251
      %v3434 = vadd.f32 %v3016, %v3254
      %v3435 = vadd.f32 %v3017, %v3259
      %v3436 = vadd.f32 %v3018, %v3262
      %v3437 = vadd.f32 %v3019, %v3267
      %v3438 = vadd.f32 %v3020, %v3270
      %v3439 = vadd.f32 %v3021, %v3275
      %v3440 = vadd.f32 %v3022, %v3278
      %v3441 = vadd.f32 %v3023, %v3283
      %v3442 = vadd.f32 %v3024, %v3286
      %v3443 = vadd.f32 %v3025, %v3291
      %v3444 = vadd.f32 %v3026, %v3294
      %v3445 = vadd.f32 %v3027, %v3299
      %v3446 = vadd.f32 %v3028, %v3302
      %v3447 = vadd.f32 %v3029, %v3307
      %v3448 = vadd.f32 %v3030, %v3310
      %v3449 = vadd.f32 %v3031, %v3315
      %v3450 = vadd.f32 %v3032, %v3318
      %v3451 = vadd.f32 %v3033, %v3323
      %v3452 = vadd.f32 %v3034, %v3326
      %v3453 = vadd.f32 %v3035, %v3331
      %v3454 = vadd.f32 %v3036, %v3334
      %v3455 = vadd.f32 %v3037, %v3339
      %v3456 = vadd.f32 %v3038, %v3342
      %v3457 = vadd.f32 %v3039, %v3347
      %v3458 = vadd.f32 %v3040, %v3350
      %v3459 = vadd.f32 %v3041, %v3355
      %v3460 = vadd.f32 %v3042, %v3358
      %v3461 = vadd.f32 %v3043, %v3363
      %v3462 = vadd.f32 %v3044, %v3366
      %v3463 = vadd.f32 %v3045, %v3371
      %v3464 = vadd.f32 %v3046, %v3374
      %v3465 = vadd.f32 %v3047, %v3379
      %v3466 = vadd.f32 %v3048, %v3382
      %v3467 = vadd.f32 %v3049, %v3387
      %v3468 = vadd.f32 %v3050, %v3390
      %v3469 = vadd.f32 %v3051, %v3395
      %v3470 = vadd.f32 %v3052, %v3398
      %v3471 = vadd.f32 %v3053, %v3403
      %v3472 = vadd.f32 %v3054, %v3406
      %s3473 = scalar_lea.vmem %s222, 320
      %v3474 = vld [vmem:[%s3473] sm:$0xf]
      %v3475 = vld [vmem:[%s3473 + $0x4] sm:$0xf]
      %v3476 = vld [vmem:[%s3473 + $0x8] sm:$0xf]
      %v3477 = vld [vmem:[%s3473 + $0xc] sm:$0xf]
      %v3478 = vld [vmem:[%s3473 + $0x10] sm:$0xf]
      %v3479 = vld [vmem:[%s3473 + $0x14] sm:$0xf]
      %v3480 = vld [vmem:[%s3473 + $0x18] sm:$0xf]
      %v3481 = vld [vmem:[%s3473 + $0x1c] sm:$0xf]
      %v3482 = vld [vmem:[%s3473 + $0x20] sm:$0xf]
      %v3483 = vld [vmem:[%s3473 + $0x24] sm:$0xf]
      %v3484 = vld [vmem:[%s3473 + $0x28] sm:$0xf]
      %v3485 = vld [vmem:[%s3473 + $0x2c] sm:$0xf]
      %v3486 = vld [vmem:[%s3473 + $0x30] sm:$0xf]
      %v3487 = vld [vmem:[%s3473 + $0x34] sm:$0xf]
      %v3488 = vld [vmem:[%s3473 + $0x38] sm:$0xf]
      %v3489 = vld [vmem:[%s3473 + $0x3c] sm:$0xf]
      %v3506 = vunpack.c.l.b16 %v3474
      %v3507 = vunpack.c.l.b16 %v3475
      %v3508 = vunpack.c.l.b16 %v3476
      %v3509 = vunpack.c.l.b16 %v3477
      %v3510 = vunpack.c.l.b16 %v3478
      %v3511 = vunpack.c.l.b16 %v3479
      %v3512 = vunpack.c.l.b16 %v3480
      %v3513 = vunpack.c.l.b16 %v3481
      %v3514 = vunpack.c.l.b16 %v3482
      %v3515 = vunpack.c.l.b16 %v3483
      %v3516 = vunpack.c.l.b16 %v3484
      %v3517 = vunpack.c.l.b16 %v3485
      %v3518 = vunpack.c.l.b16 %v3486
      %v3519 = vunpack.c.l.b16 %v3487
      %v3520 = vunpack.c.l.b16 %v3488
      %v3521 = vunpack.c.l.b16 %v3489
      %v3522 = vpack.c.b16 %v3507, %v3506
      %v3523 = vpack.c.b16 %v3509, %v3508
      %v3524 = vpack.c.b16 %v3511, %v3510
      %v3525 = vpack.c.b16 %v3513, %v3512
      %v3526 = vpack.c.b16 %v3515, %v3514
      %v3527 = vpack.c.b16 %v3517, %v3516
      %v3528 = vpack.c.b16 %v3519, %v3518
      %v3529 = vpack.c.b16 %v3521, %v3520
      %3538 = vmatprep.subr.bf16.mxu0 0
      %3539 = vmatpush1.bf16.msra.mxu0 %v3522
      %3540 = vmatprep.subr.bf16.mxu0 0
      %3541 = vmatpush1.bf16.msra.mxu0 %v3523
      %3542 = vmatprep.subr.bf16.mxu0 0
      %3543 = vmatpush1.bf16.msra.mxu0 %v3524
      %3544 = vmatprep.subr.bf16.mxu0 0
      %3545 = vmatpush1.bf16.msra.mxu0 %v3525
      %3546 = vmatprep.subr.bf16.mxu0 0
      %3547 = vmatpush1.bf16.msra.mxu0 %v3526
      %3548 = vmatprep.subr.bf16.mxu0 0
      %3549 = vmatpush1.bf16.msra.mxu0 %v3527
      %3550 = vmatprep.subr.bf16.mxu0 0
      %3551 = vmatpush1.bf16.msra.mxu0 %v3528
      %3552 = vmatprep.subr.bf16.mxu0 0
      %3553 = vmatpush1.bf16.msra.mxu0 %v3529
      %3554 = vmatprep.subr.bf16.mxu0 0
      %3555 = vmatpush1.bf16.msra.mxu0 0
      %3556 = vmatprep.subr.bf16.mxu0 0
      %3557 = vmatpush1.bf16.msra.mxu0 0
      %3558 = vmatprep.subr.bf16.mxu0 0
      %3559 = vmatpush1.bf16.msra.mxu0 0
      %3560 = vmatprep.subr.bf16.mxu0 0
      %3561 = vmatpush1.bf16.msra.mxu0 0
      %3562 = vmatprep.subr.bf16.mxu0 0
      %3563 = vmatpush1.bf16.msra.mxu0 0
      %3564 = vmatprep.subr.bf16.mxu0 0
      %3565 = vmatpush1.bf16.msra.mxu0 0
      %3566 = vmatprep.subr.bf16.mxu0 0
      %3567 = vmatpush1.bf16.msra.mxu0 0
      %3568 = vmatprep.subr.bf16.mxu0 0
      %3569 = vmatpush1.bf16.msra.mxu0 0
      %3570 = vmatprep.mubr.bf16.mxu0 0
      %3571 = vmatmul.mubr.bf16.gmra.mrb[0].mxu0 %v1477
      %v3572 = vpop.f32.mrb[0].mxu0
      %v3573 = vadd.f32 0.0, %v3572
      %v3574 = vpop.f32.mrb[0].mxu0
      %v3575 = vpop.f32.mrb[0].mxu0
      %v3576 = vadd.f32 0.0, %v3575
      %v3577 = vpop.f32.mrb[0].mxu0
      %3578 = vmatprep.mubr.bf16.mxu0 0
      %3579 = vmatmul.mubr.bf16.gmra.mrb[0].mxu0 %v1478
      %v3580 = vpop.f32.mrb[0].mxu0
      %v3581 = vadd.f32 0.0, %v3580
      %v3582 = vpop.f32.mrb[0].mxu0
      %v3583 = vpop.f32.mrb[0].mxu0
      %v3584 = vadd.f32 0.0, %v3583
      %v3585 = vpop.f32.mrb[0].mxu0
      %3586 = vmatprep.mubr.bf16.mxu0 0
      %3587 = vmatmul.mubr.bf16.gmra.mrb[0].mxu0 %v1479
      %v3588 = vpop.f32.mrb[0].mxu0
      %v3589 = vadd.f32 0.0, %v3588
      %v3590 = vpop.f32.mrb[0].mxu0
      %v3591 = vpop.f32.mrb[0].mxu0
      %v3592 = vadd.f32 0.0, %v3591
      %v3593 = vpop.f32.mrb[0].mxu0
      %3594 = vmatprep.mubr.bf16.mxu0 0
      %3595 = vmatmul.mubr.bf16.gmra.mrb[0].mxu0 %v1480
      %v3596 = vpop.f32.mrb[0].mxu0
      %v3597 = vadd.f32 0.0, %v3596
      %v3598 = vpop.f32.mrb[0].mxu0
      %v3599 = vpop.f32.mrb[0].mxu0
      %v3600 = vadd.f32 0.0, %v3599
      %v3601 = vpop.f32.mrb[0].mxu0
      %3602 = vmatprep.mubr.bf16.mxu0 0
      %3603 = vmatmul.mubr.bf16.gmra.mrb[0].mxu0 %v1481
      %v3604 = vpop.f32.mrb[0].mxu0
      %v3605 = vadd.f32 0.0, %v3604
      %v3606 = vpop.f32.mrb[0].mxu0
      %v3607 = vpop.f32.mrb[0].mxu0
      %v3608 = vadd.f32 0.0, %v3607
      %v3609 = vpop.f32.mrb[0].mxu0
      %3610 = vmatprep.mubr.bf16.mxu0 0
      %3611 = vmatmul.mubr.bf16.gmra.mrb[0].mxu0 %v1482
      %v3612 = vpop.f32.mrb[0].mxu0
      %v3613 = vadd.f32 0.0, %v3612
      %v3614 = vpop.f32.mrb[0].mxu0
      %v3615 = vpop.f32.mrb[0].mxu0
      %v3616 = vadd.f32 0.0, %v3615
      %v3617 = vpop.f32.mrb[0].mxu0
      %3618 = vmatprep.mubr.bf16.mxu0 0
      %3619 = vmatmul.mubr.bf16.gmra.mrb[0].mxu0 %v1483
      %v3620 = vpop.f32.mrb[0].mxu0
      %v3621 = vadd.f32 0.0, %v3620
      %v3622 = vpop.f32.mrb[0].mxu0
      %v3623 = vpop.f32.mrb[0].mxu0
      %v3624 = vadd.f32 0.0, %v3623
      %v3625 = vpop.f32.mrb[0].mxu0
      %3626 = vmatprep.mubr.bf16.mxu0 0
      %3627 = vmatmul.mubr.bf16.gmra.mrb[0].mxu0 %v1484
      %v3628 = vpop.f32.mrb[0].mxu0
      %v3629 = vadd.f32 0.0, %v3628
      %v3630 = vpop.f32.mrb[0].mxu0
      %v3631 = vpop.f32.mrb[0].mxu0
      %v3632 = vadd.f32 0.0, %v3631
      %v3633 = vpop.f32.mrb[0].mxu0
      %3634 = vmatprep.mubr.bf16.mxu0 0
      %3635 = vmatmul.mubr.bf16.gmra.mrb[0].mxu0 %v1485
      %v3636 = vpop.f32.mrb[0].mxu0
      %v3637 = vadd.f32 0.0, %v3636
      %v3638 = vpop.f32.mrb[0].mxu0
      %v3639 = vpop.f32.mrb[0].mxu0
      %v3640 = vadd.f32 0.0, %v3639
      %v3641 = vpop.f32.mrb[0].mxu0
      %3642 = vmatprep.mubr.bf16.mxu0 0
      %3643 = vmatmul.mubr.bf16.gmra.mrb[0].mxu0 %v1486
      %v3644 = vpop.f32.mrb[0].mxu0
      %v3645 = vadd.f32 0.0, %v3644
      %v3646 = vpop.f32.mrb[0].mxu0
      %v3647 = vpop.f32.mrb[0].mxu0
      %v3648 = vadd.f32 0.0, %v3647
      %v3649 = vpop.f32.mrb[0].mxu0
      %3650 = vmatprep.mubr.bf16.mxu0 0
      %3651 = vmatmul.mubr.bf16.gmra.mrb[0].mxu0 %v1487
      %v3652 = vpop.f32.mrb[0].mxu0
      %v3653 = vadd.f32 0.0, %v3652
      %v3654 = vpop.f32.mrb[0].mxu0
      %v3655 = vpop.f32.mrb[0].mxu0
      %v3656 = vadd.f32 0.0, %v3655
      %v3657 = vpop.f32.mrb[0].mxu0
      %3658 = vmatprep.mubr.bf16.mxu0 0
      %3659 = vmatmul.mubr.bf16.gmra.mrb[0].mxu0 %v1488
      %v3660 = vpop.f32.mrb[0].mxu0
      %v3661 = vadd.f32 0.0, %v3660
      %v3662 = vpop.f32.mrb[0].mxu0
      %v3663 = vpop.f32.mrb[0].mxu0
      %v3664 = vadd.f32 0.0, %v3663
      %v3665 = vpop.f32.mrb[0].mxu0
      %3666 = vmatprep.mubr.bf16.mxu0 0
      %3667 = vmatmul.mubr.bf16.gmra.mrb[0].mxu0 %v1489
      %v3668 = vpop.f32.mrb[0].mxu0
      %v3669 = vadd.f32 0.0, %v3668
      %v3670 = vpop.f32.mrb[0].mxu0
      %v3671 = vpop.f32.mrb[0].mxu0
      %v3672 = vadd.f32 0.0, %v3671
      %v3673 = vpop.f32.mrb[0].mxu0
      %3674 = vmatprep.mubr.bf16.mxu0 0
      %3675 = vmatmul.mubr.bf16.gmra.mrb[0].mxu0 %v1490
      %v3676 = vpop.f32.mrb[0].mxu0
      %v3677 = vadd.f32 0.0, %v3676
      %v3678 = vpop.f32.mrb[0].mxu0
      %v3679 = vpop.f32.mrb[0].mxu0
      %v3680 = vadd.f32 0.0, %v3679
      %v3681 = vpop.f32.mrb[0].mxu0
      %3682 = vmatprep.mubr.bf16.mxu0 0
      %3683 = vmatmul.mubr.bf16.gmra.mrb[0].mxu0 %v1491
      %v3684 = vpop.f32.mrb[0].mxu0
      %v3685 = vadd.f32 0.0, %v3684
      %v3686 = vpop.f32.mrb[0].mxu0
      %v3687 = vpop.f32.mrb[0].mxu0
      %v3688 = vadd.f32 0.0, %v3687
      %v3689 = vpop.f32.mrb[0].mxu0
      %3690 = vmatprep.mubr.bf16.mxu0 0
      %3691 = vmatmul.mubr.bf16.gmra.mrb[0].mxu0 %v1492
      %v3692 = vpop.f32.mrb[0].mxu0
      %v3693 = vadd.f32 0.0, %v3692
      %v3694 = vpop.f32.mrb[0].mxu0
      %v3695 = vpop.f32.mrb[0].mxu0
      %v3696 = vadd.f32 0.0, %v3695
      %v3697 = vpop.f32.mrb[0].mxu0
      %3698 = vmatprep.mubr.bf16.mxu0 0
      %3699 = vmatmul.mubr.bf16.gmra.mrb[0].mxu0 %v1495
      %v3700 = vpop.f32.mrb[0].mxu0
      %v3701 = vadd.f32 0.0, %v3700
      %v3702 = vpop.f32.mrb[0].mxu0
      %v3703 = vpop.f32.mrb[0].mxu0
      %v3704 = vadd.f32 0.0, %v3703
      %v3705 = vpop.f32.mrb[0].mxu0
      %3706 = vmatprep.mubr.bf16.mxu0 0
      %3707 = vmatmul.mubr.bf16.gmra.mrb[0].mxu0 %v1496
      %v3708 = vpop.f32.mrb[0].mxu0
      %v3709 = vadd.f32 0.0, %v3708
      %v3710 = vpop.f32.mrb[0].mxu0
      %v3711 = vpop.f32.mrb[0].mxu0
      %v3712 = vadd.f32 0.0, %v3711
      %v3713 = vpop.f32.mrb[0].mxu0
      %3714 = vmatprep.mubr.bf16.mxu0 0
      %3715 = vmatmul.mubr.bf16.gmra.mrb[0].mxu0 %v1497
      %v3716 = vpop.f32.mrb[0].mxu0
      %v3717 = vadd.f32 0.0, %v3716
      %v3718 = vpop.f32.mrb[0].mxu0
      %v3719 = vpop.f32.mrb[0].mxu0
      %v3720 = vadd.f32 0.0, %v3719
      %v3721 = vpop.f32.mrb[0].mxu0
      %3722 = vmatprep.mubr.bf16.mxu0 0
      %3723 = vmatmul.mubr.bf16.gmra.mrb[0].mxu0 %v1498
      %v3724 = vpop.f32.mrb[0].mxu0
      %v3725 = vadd.f32 0.0, %v3724
      %v3726 = vpop.f32.mrb[0].mxu0
      %v3727 = vpop.f32.mrb[0].mxu0
      %v3728 = vadd.f32 0.0, %v3727
      %v3729 = vpop.f32.mrb[0].mxu0
      %3730 = vmatprep.mubr.bf16.mxu0 0
      %3731 = vmatmul.mubr.bf16.gmra.mrb[0].mxu0 %v1499
      %v3732 = vpop.f32.mrb[0].mxu0
      %v3733 = vadd.f32 0.0, %v3732
      %v3734 = vpop.f32.mrb[0].mxu0
      %v3735 = vpop.f32.mrb[0].mxu0
      %v3736 = vadd.f32 0.0, %v3735
      %v3737 = vpop.f32.mrb[0].mxu0
      %3738 = vmatprep.mubr.bf16.mxu0 0
      %3739 = vmatmul.mubr.bf16.gmra.mrb[0].mxu0 %v1500
      %v3740 = vpop.f32.mrb[0].mxu0
      %v3741 = vadd.f32 0.0, %v3740
      %v3742 = vpop.f32.mrb[0].mxu0
      %v3743 = vpop.f32.mrb[0].mxu0
      %v3744 = vadd.f32 0.0, %v3743
      %v3745 = vpop.f32.mrb[0].mxu0
      %3746 = vmatprep.mubr.bf16.mxu0 0
      %3747 = vmatmul.mubr.bf16.gmra.mrb[0].mxu0 %v1501
      %v3748 = vpop.f32.mrb[0].mxu0
      %v3749 = vadd.f32 0.0, %v3748
      %v3750 = vpop.f32.mrb[0].mxu0
      %v3751 = vpop.f32.mrb[0].mxu0
      %v3752 = vadd.f32 0.0, %v3751
      %v3753 = vpop.f32.mrb[0].mxu0
      %3754 = vmatprep.mubr.bf16.mxu0 0
      %3755 = vmatmul.mubr.bf16.gmra.mrb[0].mxu0 %v1502
      %v3756 = vpop.f32.mrb[0].mxu0
      %v3757 = vadd.f32 0.0, %v3756
      %v3758 = vpop.f32.mrb[0].mxu0
      %v3759 = vpop.f32.mrb[0].mxu0
      %v3760 = vadd.f32 0.0, %v3759
      %v3761 = vpop.f32.mrb[0].mxu0
      %3762 = vmatprep.mubr.bf16.mxu0 0
      %3763 = vmatmul.mubr.bf16.gmra.mrb[0].mxu0 %v1503
      %v3764 = vpop.f32.mrb[0].mxu0
      %v3765 = vadd.f32 0.0, %v3764
      %v3766 = vpop.f32.mrb[0].mxu0
      %v3767 = vpop.f32.mrb[0].mxu0
      %v3768 = vadd.f32 0.0, %v3767
      %v3769 = vpop.f32.mrb[0].mxu0
      %3770 = vmatprep.mubr.bf16.mxu0 0
      %3771 = vmatmul.mubr.bf16.gmra.mrb[0].mxu0 %v1504
      %v3772 = vpop.f32.mrb[0].mxu0
      %v3773 = vadd.f32 0.0, %v3772
      %v3774 = vpop.f32.mrb[0].mxu0
      %v3775 = vpop.f32.mrb[0].mxu0
      %v3776 = vadd.f32 0.0, %v3775
      %v3777 = vpop.f32.mrb[0].mxu0
      %3778 = vmatprep.mubr.bf16.mxu0 0
      %3779 = vmatmul.mubr.bf16.gmra.mrb[0].mxu0 %v1505
      %v3780 = vpop.f32.mrb[0].mxu0
      %v3781 = vadd.f32 0.0, %v3780
      %v3782 = vpop.f32.mrb[0].mxu0
      %v3783 = vpop.f32.mrb[0].mxu0
      %v3784 = vadd.f32 0.0, %v3783
      %v3785 = vpop.f32.mrb[0].mxu0
      %3786 = vmatprep.mubr.bf16.mxu0 0
      %3787 = vmatmul.mubr.bf16.gmra.mrb[0].mxu0 %v1506
      %v3788 = vpop.f32.mrb[0].mxu0
      %v3789 = vadd.f32 0.0, %v3788
      %v3790 = vpop.f32.mrb[0].mxu0
      %v3791 = vpop.f32.mrb[0].mxu0
      %v3792 = vadd.f32 0.0, %v3791
      %v3793 = vpop.f32.mrb[0].mxu0
      %3794 = vmatprep.mubr.bf16.mxu0 0
      %3795 = vmatmul.mubr.bf16.gmra.mrb[0].mxu0 %v1507
      %v3796 = vpop.f32.mrb[0].mxu0
      %v3797 = vadd.f32 0.0, %v3796
      %v3798 = vpop.f32.mrb[0].mxu0
      %v3799 = vpop.f32.mrb[0].mxu0
      %v3800 = vadd.f32 0.0, %v3799
      %v3801 = vpop.f32.mrb[0].mxu0
      %3802 = vmatprep.mubr.bf16.mxu0 0
      %3803 = vmatmul.mubr.bf16.gmra.mrb[0].mxu0 %v1508
      %v3804 = vpop.f32.mrb[0].mxu0
      %v3805 = vadd.f32 0.0, %v3804
      %v3806 = vpop.f32.mrb[0].mxu0
      %v3807 = vpop.f32.mrb[0].mxu0
      %v3808 = vadd.f32 0.0, %v3807
      %v3809 = vpop.f32.mrb[0].mxu0
      %3810 = vmatprep.mubr.bf16.mxu0 0
      %3811 = vmatmul.mubr.bf16.gmra.mrb[0].mxu0 %v1509
      %v3812 = vpop.f32.mrb[0].mxu0
      %v3813 = vadd.f32 0.0, %v3812
      %v3814 = vpop.f32.mrb[0].mxu0
      %v3815 = vpop.f32.mrb[0].mxu0
      %v3816 = vadd.f32 0.0, %v3815
      %v3817 = vpop.f32.mrb[0].mxu0
      %3818 = vmatprep.mubr.bf16.mxu0 0
      %3819 = vmatmul.mubr.bf16.gmra.mrb[0].mxu0 %v1510
      %v3820 = vpop.f32.mrb[0].mxu0
      %v3821 = vadd.f32 0.0, %v3820
      %v3822 = vpop.f32.mrb[0].mxu0
      %v3823 = vpop.f32.mrb[0].mxu0
      %v3824 = vadd.f32 0.0, %v3823
      %v3825 = vpop.f32.mrb[0].mxu0
      %3826 = vdwg.mxu0
      %v3827 = vadd.f32 %v3409, %v3573
      %v3828 = vadd.f32 %v3410, %v3576
      %v3829 = vadd.f32 %v3411, %v3581
      %v3830 = vadd.f32 %v3412, %v3584
      %v3831 = vadd.f32 %v3413, %v3589
      %v3832 = vadd.f32 %v3414, %v3592
      %v3833 = vadd.f32 %v3415, %v3597
      %v3834 = vadd.f32 %v3416, %v3600
      %v3835 = vadd.f32 %v3417, %v3605
      %v3836 = vadd.f32 %v3418, %v3608
      %v3837 = vadd.f32 %v3419, %v3613
      %v3838 = vadd.f32 %v3420, %v3616
      %v3839 = vadd.f32 %v3421, %v3621
      %v3840 = vadd.f32 %v3422, %v3624
      %v3841 = vadd.f32 %v3423, %v3629
      %v3842 = vadd.f32 %v3424, %v3632
      %v3843 = vadd.f32 %v3425, %v3637
      %v3844 = vadd.f32 %v3426, %v3640
      %v3845 = vadd.f32 %v3427, %v3645
      %v3846 = vadd.f32 %v3428, %v3648
      %v3847 = vadd.f32 %v3429, %v3653
      %v3848 = vadd.f32 %v3430, %v3656
      %v3849 = vadd.f32 %v3431, %v3661
      %v3850 = vadd.f32 %v3432, %v3664
      %v3851 = vadd.f32 %v3433, %v3669
      %v3852 = vadd.f32 %v3434, %v3672
      %v3853 = vadd.f32 %v3435, %v3677
      %v3854 = vadd.f32 %v3436, %v3680
      %v3855 = vadd.f32 %v3437, %v3685
      %v3856 = vadd.f32 %v3438, %v3688
      %v3857 = vadd.f32 %v3439, %v3693
      %v3858 = vadd.f32 %v3440, %v3696
      %v3859 = vadd.f32 %v3441, %v3701
      %v3860 = vadd.f32 %v3442, %v3704
      %v3861 = vadd.f32 %v3443, %v3709
      %v3862 = vadd.f32 %v3444, %v3712
      %v3863 = vadd.f32 %v3445, %v3717
      %v3864 = vadd.f32 %v3446, %v3720
      %v3865 = vadd.f32 %v3447, %v3725
      %v3866 = vadd.f32 %v3448, %v3728
      %v3867 = vadd.f32 %v3449, %v3733
      %v3868 = vadd.f32 %v3450, %v3736
      %v3869 = vadd.f32 %v3451, %v3741
      %v3870 = vadd.f32 %v3452, %v3744
      %v3871 = vadd.f32 %v3453, %v3749
      %v3872 = vadd.f32 %v3454, %v3752
      %v3873 = vadd.f32 %v3455, %v3757
      %v3874 = vadd.f32 %v3456, %v3760
      %v3875 = vadd.f32 %v3457, %v3765
      %v3876 = vadd.f32 %v3458, %v3768
      %v3877 = vadd.f32 %v3459, %v3773
      %v3878 = vadd.f32 %v3460, %v3776
      %v3879 = vadd.f32 %v3461, %v3781
      %v3880 = vadd.f32 %v3462, %v3784
      %v3881 = vadd.f32 %v3463, %v3789
      %v3882 = vadd.f32 %v3464, %v3792
      %v3883 = vadd.f32 %v3465, %v3797
      %v3884 = vadd.f32 %v3466, %v3800
      %v3885 = vadd.f32 %v3467, %v3805
      %v3886 = vadd.f32 %v3468, %v3808
      %v3887 = vadd.f32 %v3469, %v3813
      %v3888 = vadd.f32 %v3470, %v3816
      %v3889 = vadd.f32 %v3471, %v3821
      %v3890 = vadd.f32 %v3472, %v3824
      %s3891 = scalar_lea.vmem %s222, 384
      %v3892 = vld [vmem:[%s3891] sm:$0xf]
      %v3893 = vld [vmem:[%s3891 + $0x4] sm:$0xf]
      %v3894 = vld [vmem:[%s3891 + $0x8] sm:$0xf]
      %v3895 = vld [vmem:[%s3891 + $0xc] sm:$0xf]
      %v3896 = vld [vmem:[%s3891 + $0x10] sm:$0xf]
      %v3897 = vld [vmem:[%s3891 + $0x14] sm:$0xf]
      %v3898 = vld [vmem:[%s3891 + $0x18] sm:$0xf]
      %v3899 = vld [vmem:[%s3891 + $0x1c] sm:$0xf]
      %v3900 = vld [vmem:[%s3891 + $0x20] sm:$0xf]
      %v3901 = vld [vmem:[%s3891 + $0x24] sm:$0xf]
      %v3902 = vld [vmem:[%s3891 + $0x28] sm:$0xf]
      %v3903 = vld [vmem:[%s3891 + $0x2c] sm:$0xf]
      %v3904 = vld [vmem:[%s3891 + $0x30] sm:$0xf]
      %v3905 = vld [vmem:[%s3891 + $0x34] sm:$0xf]
      %v3906 = vld [vmem:[%s3891 + $0x38] sm:$0xf]
      %v3907 = vld [vmem:[%s3891 + $0x3c] sm:$0xf]
      %v3924 = vunpack.c.l.b16 %v3892
      %v3925 = vunpack.c.l.b16 %v3893
      %v3926 = vunpack.c.l.b16 %v3894
      %v3927 = vunpack.c.l.b16 %v3895
      %v3928 = vunpack.c.l.b16 %v3896
      %v3929 = vunpack.c.l.b16 %v3897
      %v3930 = vunpack.c.l.b16 %v3898
      %v3931 = vunpack.c.l.b16 %v3899
      %v3932 = vunpack.c.l.b16 %v3900
      %v3933 = vunpack.c.l.b16 %v3901
      %v3934 = vunpack.c.l.b16 %v3902
      %v3935 = vunpack.c.l.b16 %v3903
      %v3936 = vunpack.c.l.b16 %v3904
      %v3937 = vunpack.c.l.b16 %v3905
      %v3938 = vunpack.c.l.b16 %v3906
      %v3939 = vunpack.c.l.b16 %v3907
      %v3940 = vpack.c.b16 %v3925, %v3924
      %v3941 = vpack.c.b16 %v3927, %v3926
      %v3942 = vpack.c.b16 %v3929, %v3928
      %v3943 = vpack.c.b16 %v3931, %v3930
      %v3944 = vpack.c.b16 %v3933, %v3932
      %v3945 = vpack.c.b16 %v3935, %v3934
      %v3946 = vpack.c.b16 %v3937, %v3936
      %v3947 = vpack.c.b16 %v3939, %v3938
      %3956 = vmatprep.subr.bf16.mxu0 0
      %3957 = vmatpush1.bf16.msra.mxu0 %v3940
      %3958 = vmatprep.subr.bf16.mxu0 0
      %3959 = vmatpush1.bf16.msra.mxu0 %v3941
      %3960 = vmatprep.subr.bf16.mxu0 0
      %3961 = vmatpush1.bf16.msra.mxu0 %v3942
      %3962 = vmatprep.subr.bf16.mxu0 0
      %3963 = vmatpush1.bf16.msra.mxu0 %v3943
      %3964 = vmatprep.subr.bf16.mxu0 0
      %3965 = vmatpush1.bf16.msra.mxu0 %v3944
      %3966 = vmatprep.subr.bf16.mxu0 0
      %3967 = vmatpush1.bf16.msra.mxu0 %v3945
      %3968 = vmatprep.subr.bf16.mxu0 0
      %3969 = vmatpush1.bf16.msra.mxu0 %v3946
      %3970 = vmatprep.subr.bf16.mxu0 0
      %3971 = vmatpush1.bf16.msra.mxu0 %v3947
      %3972 = vmatprep.subr.bf16.mxu0 0
      %3973 = vmatpush1.bf16.msra.mxu0 0
      %3974 = vmatprep.subr.bf16.mxu0 0
      %3975 = vmatpush1.bf16.msra.mxu0 0
      %3976 = vmatprep.subr.bf16.mxu0 0
      %3977 = vmatpush1.bf16.msra.mxu0 0
      %3978 = vmatprep.subr.bf16.mxu0 0
      %3979 = vmatpush1.bf16.msra.mxu0 0
      %3980 = vmatprep.subr.bf16.mxu0 0
      %3981 = vmatpush1.bf16.msra.mxu0 0
      %3982 = vmatprep.subr.bf16.mxu0 0
      %3983 = vmatpush1.bf16.msra.mxu0 0
      %3984 = vmatprep.subr.bf16.mxu0 0
      %3985 = vmatpush1.bf16.msra.mxu0 0
      %3986 = vmatprep.subr.bf16.mxu0 0
      %3987 = vmatpush1.bf16.msra.mxu0 0
      %3988 = vmatprep.mubr.bf16.mxu0 0
      %3989 = vmatmul.mubr.bf16.gmra.mrb[0].mxu0 %v1406
      %v3990 = vpop.f32.mrb[0].mxu0
      %v3991 = vadd.f32 0.0, %v3990
      %v3992 = vpop.f32.mrb[0].mxu0
      %v3993 = vpop.f32.mrb[0].mxu0
      %v3994 = vadd.f32 0.0, %v3993
      %v3995 = vpop.f32.mrb[0].mxu0
      %3996 = vmatprep.mubr.bf16.mxu0 0
      %3997 = vmatmul.mubr.bf16.gmra.mrb[0].mxu0 %v1407
      %v3998 = vpop.f32.mrb[0].mxu0
      %v3999 = vadd.f32 0.0, %v3998
      %v4000 = vpop.f32.mrb[0].mxu0
      %v4001 = vpop.f32.mrb[0].mxu0
      %v4002 = vadd.f32 0.0, %v4001
      %v4003 = vpop.f32.mrb[0].mxu0
      %4004 = vmatprep.mubr.bf16.mxu0 0
      %4005 = vmatmul.mubr.bf16.gmra.mrb[0].mxu0 %v1408
      %v4006 = vpop.f32.mrb[0].mxu0
      %v4007 = vadd.f32 0.0, %v4006
      %v4008 = vpop.f32.mrb[0].mxu0
      %v4009 = vpop.f32.mrb[0].mxu0
      %v4010 = vadd.f32 0.0, %v4009
      %v4011 = vpop.f32.mrb[0].mxu0
      %4012 = vmatprep.mubr.bf16.mxu0 0
      %4013 = vmatmul.mubr.bf16.gmra.mrb[0].mxu0 %v1409
      %v4014 = vpop.f32.mrb[0].mxu0
      %v4015 = vadd.f32 0.0, %v4014
      %v4016 = vpop.f32.mrb[0].mxu0
      %v4017 = vpop.f32.mrb[0].mxu0
      %v4018 = vadd.f32 0.0, %v4017
      %v4019 = vpop.f32.mrb[0].mxu0
      %4020 = vmatprep.mubr.bf16.mxu0 0
      %4021 = vmatmul.mubr.bf16.gmra.mrb[0].mxu0 %v1410
      %v4022 = vpop.f32.mrb[0].mxu0
      %v4023 = vadd.f32 0.0, %v4022
      %v4024 = vpop.f32.mrb[0].mxu0
      %v4025 = vpop.f32.mrb[0].mxu0
      %v4026 = vadd.f32 0.0, %v4025
      %v4027 = vpop.f32.mrb[0].mxu0
      %4028 = vmatprep.mubr.bf16.mxu0 0
      %4029 = vmatmul.mubr.bf16.gmra.mrb[0].mxu0 %v1411
      %v4030 = vpop.f32.mrb[0].mxu0
      %v4031 = vadd.f32 0.0, %v4030
      %v4032 = vpop.f32.mrb[0].mxu0
      %v4033 = vpop.f32.mrb[0].mxu0
      %v4034 = vadd.f32 0.0, %v4033
      %v4035 = vpop.f32.mrb[0].mxu0
      %4036 = vmatprep.mubr.bf16.mxu0 0
      %4037 = vmatmul.mubr.bf16.gmra.mrb[0].mxu0 %v1412
      %v4038 = vpop.f32.mrb[0].mxu0
      %v4039 = vadd.f32 0.0, %v4038
      %v4040 = vpop.f32.mrb[0].mxu0
      %v4041 = vpop.f32.mrb[0].mxu0
      %v4042 = vadd.f32 0.0, %v4041
      %v4043 = vpop.f32.mrb[0].mxu0
      %4044 = vmatprep.mubr.bf16.mxu0 0
      %4045 = vmatmul.mubr.bf16.gmra.mrb[0].mxu0 %v1413
      %v4046 = vpop.f32.mrb[0].mxu0
      %v4047 = vadd.f32 0.0, %v4046
      %v4048 = vpop.f32.mrb[0].mxu0
      %v4049 = vpop.f32.mrb[0].mxu0
      %v4050 = vadd.f32 0.0, %v4049
      %v4051 = vpop.f32.mrb[0].mxu0
      %4052 = vmatprep.mubr.bf16.mxu0 0
      %4053 = vmatmul.mubr.bf16.gmra.mrb[0].mxu0 %v1414
      %v4054 = vpop.f32.mrb[0].mxu0
      %v4055 = vadd.f32 0.0, %v4054
      %v4056 = vpop.f32.mrb[0].mxu0
      %v4057 = vpop.f32.mrb[0].mxu0
      %v4058 = vadd.f32 0.0, %v4057
      %v4059 = vpop.f32.mrb[0].mxu0
      %4060 = vmatprep.mubr.bf16.mxu0 0
      %4061 = vmatmul.mubr.bf16.gmra.mrb[0].mxu0 %v1415
      %v4062 = vpop.f32.mrb[0].mxu0
      %v4063 = vadd.f32 0.0, %v4062
      %v4064 = vpop.f32.mrb[0].mxu0
      %v4065 = vpop.f32.mrb[0].mxu0
      %v4066 = vadd.f32 0.0, %v4065
      %v4067 = vpop.f32.mrb[0].mxu0
      %4068 = vmatprep.mubr.bf16.mxu0 0
      %4069 = vmatmul.mubr.bf16.gmra.mrb[0].mxu0 %v1416
      %v4070 = vpop.f32.mrb[0].mxu0
      %v4071 = vadd.f32 0.0, %v4070
      %v4072 = vpop.f32.mrb[0].mxu0
      %v4073 = vpop.f32.mrb[0].mxu0
      %v4074 = vadd.f32 0.0, %v4073
      %v4075 = vpop.f32.mrb[0].mxu0
      %4076 = vmatprep.mubr.bf16.mxu0 0
      %4077 = vmatmul.mubr.bf16.gmra.mrb[0].mxu0 %v1417
      %v4078 = vpop.f32.mrb[0].mxu0
      %v4079 = vadd.f32 0.0, %v4078
      %v4080 = vpop.f32.mrb[0].mxu0
      %v4081 = vpop.f32.mrb[0].mxu0
      %v4082 = vadd.f32 0.0, %v4081
      %v4083 = vpop.f32.mrb[0].mxu0
      %4084 = vmatprep.mubr.bf16.mxu0 0
      %4085 = vmatmul.mubr.bf16.gmra.mrb[0].mxu0 %v1418
      %v4086 = vpop.f32.mrb[0].mxu0
      %v4087 = vadd.f32 0.0, %v4086
      %v4088 = vpop.f32.mrb[0].mxu0
      %v4089 = vpop.f32.mrb[0].mxu0
      %v4090 = vadd.f32 0.0, %v4089
      %v4091 = vpop.f32.mrb[0].mxu0
      %4092 = vmatprep.mubr.bf16.mxu0 0
      %4093 = vmatmul.mubr.bf16.gmra.mrb[0].mxu0 %v1419
      %v4094 = vpop.f32.mrb[0].mxu0
      %v4095 = vadd.f32 0.0, %v4094
      %v4096 = vpop.f32.mrb[0].mxu0
      %v4097 = vpop.f32.mrb[0].mxu0
      %v4098 = vadd.f32 0.0, %v4097
      %v4099 = vpop.f32.mrb[0].mxu0
      %4100 = vmatprep.mubr.bf16.mxu0 0
      %4101 = vmatmul.mubr.bf16.gmra.mrb[0].mxu0 %v1420
      %v4102 = vpop.f32.mrb[0].mxu0
      %v4103 = vadd.f32 0.0, %v4102
      %v4104 = vpop.f32.mrb[0].mxu0
      %v4105 = vpop.f32.mrb[0].mxu0
      %v4106 = vadd.f32 0.0, %v4105
      %v4107 = vpop.f32.mrb[0].mxu0
      %4108 = vmatprep.mubr.bf16.mxu0 0
      %4109 = vmatmul.mubr.bf16.gmra.mrb[0].mxu0 %v1421
      %v4110 = vpop.f32.mrb[0].mxu0
      %v4111 = vadd.f32 0.0, %v4110
      %v4112 = vpop.f32.mrb[0].mxu0
      %v4113 = vpop.f32.mrb[0].mxu0
      %v4114 = vadd.f32 0.0, %v4113
      %v4115 = vpop.f32.mrb[0].mxu0
      %4116 = vmatprep.mubr.bf16.mxu0 0
      %4117 = vmatmul.mubr.bf16.gmra.mrb[0].mxu0 %v1424
      %v4118 = vpop.f32.mrb[0].mxu0
      %v4119 = vadd.f32 0.0, %v4118
      %v4120 = vpop.f32.mrb[0].mxu0
      %v4121 = vpop.f32.mrb[0].mxu0
      %v4122 = vadd.f32 0.0, %v4121
      %v4123 = vpop.f32.mrb[0].mxu0
      %4124 = vmatprep.mubr.bf16.mxu0 0
      %4125 = vmatmul.mubr.bf16.gmra.mrb[0].mxu0 %v1425
      %v4126 = vpop.f32.mrb[0].mxu0
      %v4127 = vadd.f32 0.0, %v4126
      %v4128 = vpop.f32.mrb[0].mxu0
      %v4129 = vpop.f32.mrb[0].mxu0
      %v4130 = vadd.f32 0.0, %v4129
      %v4131 = vpop.f32.mrb[0].mxu0
      %4132 = vmatprep.mubr.bf16.mxu0 0
      %4133 = vmatmul.mubr.bf16.gmra.mrb[0].mxu0 %v1426
      %v4134 = vpop.f32.mrb[0].mxu0
      %v4135 = vadd.f32 0.0, %v4134
      %v4136 = vpop.f32.mrb[0].mxu0
      %v4137 = vpop.f32.mrb[0].mxu0
      %v4138 = vadd.f32 0.0, %v4137
      %v4139 = vpop.f32.mrb[0].mxu0
      %4140 = vmatprep.mubr.bf16.mxu0 0
      %4141 = vmatmul.mubr.bf16.gmra.mrb[0].mxu0 %v1427
      %v4142 = vpop.f32.mrb[0].mxu0
      %v4143 = vadd.f32 0.0, %v4142
      %v4144 = vpop.f32.mrb[0].mxu0
      %v4145 = vpop.f32.mrb[0].mxu0
      %v4146 = vadd.f32 0.0, %v4145
      %v4147 = vpop.f32.mrb[0].mxu0
      %4148 = vmatprep.mubr.bf16.mxu0 0
      %4149 = vmatmul.mubr.bf16.gmra.mrb[0].mxu0 %v1428
      %v4150 = vpop.f32.mrb[0].mxu0
      %v4151 = vadd.f32 0.0, %v4150
      %v4152 = vpop.f32.mrb[0].mxu0
      %v4153 = vpop.f32.mrb[0].mxu0
      %v4154 = vadd.f32 0.0, %v4153
      %v4155 = vpop.f32.mrb[0].mxu0
      %4156 = vmatprep.mubr.bf16.mxu0 0
      %4157 = vmatmul.mubr.bf16.gmra.mrb[0].mxu0 %v1429
      %v4158 = vpop.f32.mrb[0].mxu0
      %v4159 = vadd.f32 0.0, %v4158
      %v4160 = vpop.f32.mrb[0].mxu0
      %v4161 = vpop.f32.mrb[0].mxu0
      %v4162 = vadd.f32 0.0, %v4161
      %v4163 = vpop.f32.mrb[0].mxu0
      %4164 = vmatprep.mubr.bf16.mxu0 0
      %4165 = vmatmul.mubr.bf16.gmra.mrb[0].mxu0 %v1430
      %v4166 = vpop.f32.mrb[0].mxu0
      %v4167 = vadd.f32 0.0, %v4166
      %v4168 = vpop.f32.mrb[0].mxu0
      %v4169 = vpop.f32.mrb[0].mxu0
      %v4170 = vadd.f32 0.0, %v4169
      %v4171 = vpop.f32.mrb[0].mxu0
      %4172 = vmatprep.mubr.bf16.mxu0 0
      %4173 = vmatmul.mubr.bf16.gmra.mrb[0].mxu0 %v1431
      %v4174 = vpop.f32.mrb[0].mxu0
      %v4175 = vadd.f32 0.0, %v4174
      %v4176 = vpop.f32.mrb[0].mxu0
      %v4177 = vpop.f32.mrb[0].mxu0
      %v4178 = vadd.f32 0.0, %v4177
      %v4179 = vpop.f32.mrb[0].mxu0
      %4180 = vmatprep.mubr.bf16.mxu0 0
      %4181 = vmatmul.mubr.bf16.gmra.mrb[0].mxu0 %v1432
      %v4182 = vpop.f32.mrb[0].mxu0
      %v4183 = vadd.f32 0.0, %v4182
      %v4184 = vpop.f32.mrb[0].mxu0
      %v4185 = vpop.f32.mrb[0].mxu0
      %v4186 = vadd.f32 0.0, %v4185
      %v4187 = vpop.f32.mrb[0].mxu0
      %4188 = vmatprep.mubr.bf16.mxu0 0
      %4189 = vmatmul.mubr.bf16.gmra.mrb[0].mxu0 %v1433
      %v4190 = vpop.f32.mrb[0].mxu0
      %v4191 = vadd.f32 0.0, %v4190
      %v4192 = vpop.f32.mrb[0].mxu0
      %v4193 = vpop.f32.mrb[0].mxu0
      %v4194 = vadd.f32 0.0, %v4193
      %v4195 = vpop.f32.mrb[0].mxu0
      %4196 = vmatprep.mubr.bf16.mxu0 0
      %4197 = vmatmul.mubr.bf16.gmra.mrb[0].mxu0 %v1434
      %v4198 = vpop.f32.mrb[0].mxu0
      %v4199 = vadd.f32 0.0, %v4198
      %v4200 = vpop.f32.mrb[0].mxu0
      %v4201 = vpop.f32.mrb[0].mxu0
      %v4202 = vadd.f32 0.0, %v4201
      %v4203 = vpop.f32.mrb[0].mxu0
      %4204 = vmatprep.mubr.bf16.mxu0 0
      %4205 = vmatmul.mubr.bf16.gmra.mrb[0].mxu0 %v1435
      %v4206 = vpop.f32.mrb[0].mxu0
      %v4207 = vadd.f32 0.0, %v4206
      %v4208 = vpop.f32.mrb[0].mxu0
      %v4209 = vpop.f32.mrb[0].mxu0
      %v4210 = vadd.f32 0.0, %v4209
      %v4211 = vpop.f32.mrb[0].mxu0
      %4212 = vmatprep.mubr.bf16.mxu0 0
      %4213 = vmatmul.mubr.bf16.gmra.mrb[0].mxu0 %v1436
      %v4214 = vpop.f32.mrb[0].mxu0
      %v4215 = vadd.f32 0.0, %v4214
      %v4216 = vpop.f32.mrb[0].mxu0
      %v4217 = vpop.f32.mrb[0].mxu0
      %v4218 = vadd.f32 0.0, %v4217
      %v4219 = vpop.f32.mrb[0].mxu0
      %4220 = vmatprep.mubr.bf16.mxu0 0
      %4221 = vmatmul.mubr.bf16.gmra.mrb[0].mxu0 %v1437
      %v4222 = vpop.f32.mrb[0].mxu0
      %v4223 = vadd.f32 0.0, %v4222
      %v4224 = vpop.f32.mrb[0].mxu0
      %v4225 = vpop.f32.mrb[0].mxu0
      %v4226 = vadd.f32 0.0, %v4225
      %v4227 = vpop.f32.mrb[0].mxu0
      %4228 = vmatprep.mubr.bf16.mxu0 0
      %4229 = vmatmul.mubr.bf16.gmra.mrb[0].mxu0 %v1438
      %v4230 = vpop.f32.mrb[0].mxu0
      %v4231 = vadd.f32 0.0, %v4230
      %v4232 = vpop.f32.mrb[0].mxu0
      %v4233 = vpop.f32.mrb[0].mxu0
      %v4234 = vadd.f32 0.0, %v4233
      %v4235 = vpop.f32.mrb[0].mxu0
      %4236 = vmatprep.mubr.bf16.mxu0 0
      %4237 = vmatmul.mubr.bf16.gmra.mrb[0].mxu0 %v1439
      %v4238 = vpop.f32.mrb[0].mxu0
      %v4239 = vadd.f32 0.0, %v4238
      %v4240 = vpop.f32.mrb[0].mxu0
      %v4241 = vpop.f32.mrb[0].mxu0
      %v4242 = vadd.f32 0.0, %v4241
      %v4243 = vpop.f32.mrb[0].mxu0
      %4244 = vdwg.mxu0
      %v4245 = vadd.f32 %v3827, %v3991
      %v4246 = vadd.f32 %v3828, %v3994
      %v4247 = vadd.f32 %v3829, %v3999
      %v4248 = vadd.f32 %v3830, %v4002
      %v4249 = vadd.f32 %v3831, %v4007
      %v4250 = vadd.f32 %v3832, %v4010
      %v4251 = vadd.f32 %v3833, %v4015
      %v4252 = vadd.f32 %v3834, %v4018
      %v4253 = vadd.f32 %v3835, %v4023
      %v4254 = vadd.f32 %v3836, %v4026
      %v4255 = vadd.f32 %v3837, %v4031
      %v4256 = vadd.f32 %v3838, %v4034
      %v4257 = vadd.f32 %v3839, %v4039
      %v4258 = vadd.f32 %v3840, %v4042
      %v4259 = vadd.f32 %v3841, %v4047
      %v4260 = vadd.f32 %v3842, %v4050
      %v4261 = vadd.f32 %v3843, %v4055
      %v4262 = vadd.f32 %v3844, %v4058
      %v4263 = vadd.f32 %v3845, %v4063
      %v4264 = vadd.f32 %v3846, %v4066
      %v4265 = vadd.f32 %v3847, %v4071
      %v4266 = vadd.f32 %v3848, %v4074
      %v4267 = vadd.f32 %v3849, %v4079
      %v4268 = vadd.f32 %v3850, %v4082
      %v4269 = vadd.f32 %v3851, %v4087
      %v4270 = vadd.f32 %v3852, %v4090
      %v4271 = vadd.f32 %v3853, %v4095
      %v4272 = vadd.f32 %v3854, %v4098
      %v4273 = vadd.f32 %v3855, %v4103
      %v4274 = vadd.f32 %v3856, %v4106
      %v4275 = vadd.f32 %v3857, %v4111
      %v4276 = vadd.f32 %v3858, %v4114
      %v4277 = vadd.f32 %v3859, %v4119
      %v4278 = vadd.f32 %v3860, %v4122
      %v4279 = vadd.f32 %v3861, %v4127
      %v4280 = vadd.f32 %v3862, %v4130
      %v4281 = vadd.f32 %v3863, %v4135
      %v4282 = vadd.f32 %v3864, %v4138
      %v4283 = vadd.f32 %v3865, %v4143
      %v4284 = vadd.f32 %v3866, %v4146
      %v4285 = vadd.f32 %v3867, %v4151
      %v4286 = vadd.f32 %v3868, %v4154
      %v4287 = vadd.f32 %v3869, %v4159
      %v4288 = vadd.f32 %v3870, %v4162
      %v4289 = vadd.f32 %v3871, %v4167
      %v4290 = vadd.f32 %v3872, %v4170
      %v4291 = vadd.f32 %v3873, %v4175
      %v4292 = vadd.f32 %v3874, %v4178
      %v4293 = vadd.f32 %v3875, %v4183
      %v4294 = vadd.f32 %v3876, %v4186
      %v4295 = vadd.f32 %v3877, %v4191
      %v4296 = vadd.f32 %v3878, %v4194
      %v4297 = vadd.f32 %v3879, %v4199
      %v4298 = vadd.f32 %v3880, %v4202
      %v4299 = vadd.f32 %v3881, %v4207
      %v4300 = vadd.f32 %v3882, %v4210
      %v4301 = vadd.f32 %v3883, %v4215
      %v4302 = vadd.f32 %v3884, %v4218
      %v4303 = vadd.f32 %v3885, %v4223
      %v4304 = vadd.f32 %v3886, %v4226
      %v4305 = vadd.f32 %v3887, %v4231
      %v4306 = vadd.f32 %v3888, %v4234
      %v4307 = vadd.f32 %v3889, %v4239
      %v4308 = vadd.f32 %v3890, %v4242
      %s4309 = scalar_lea.vmem %s222, 448
      %v4310 = vld [vmem:[%s4309] sm:$0xf]
      %v4311 = vld [vmem:[%s4309 + $0x4] sm:$0xf]
      %v4312 = vld [vmem:[%s4309 + $0x8] sm:$0xf]
      %v4313 = vld [vmem:[%s4309 + $0xc] sm:$0xf]
      %v4314 = vld [vmem:[%s4309 + $0x10] sm:$0xf]
      %v4315 = vld [vmem:[%s4309 + $0x14] sm:$0xf]
      %v4316 = vld [vmem:[%s4309 + $0x18] sm:$0xf]
      %v4317 = vld [vmem:[%s4309 + $0x1c] sm:$0xf]
      %v4318 = vld [vmem:[%s4309 + $0x20] sm:$0xf]
      %v4319 = vld [vmem:[%s4309 + $0x24] sm:$0xf]
      %v4320 = vld [vmem:[%s4309 + $0x28] sm:$0xf]
      %v4321 = vld [vmem:[%s4309 + $0x2c] sm:$0xf]
      %v4322 = vld [vmem:[%s4309 + $0x30] sm:$0xf]
      %v4323 = vld [vmem:[%s4309 + $0x34] sm:$0xf]
      %v4324 = vld [vmem:[%s4309 + $0x38] sm:$0xf]
      %v4325 = vld [vmem:[%s4309 + $0x3c] sm:$0xf]
      %v4342 = vunpack.c.l.b16 %v4310
      %v4343 = vunpack.c.l.b16 %v4311
      %v4344 = vunpack.c.l.b16 %v4312
      %v4345 = vunpack.c.l.b16 %v4313
      %v4346 = vunpack.c.l.b16 %v4314
      %v4347 = vunpack.c.l.b16 %v4315
      %v4348 = vunpack.c.l.b16 %v4316
      %v4349 = vunpack.c.l.b16 %v4317
      %v4350 = vunpack.c.l.b16 %v4318
      %v4351 = vunpack.c.l.b16 %v4319
      %v4352 = vunpack.c.l.b16 %v4320
      %v4353 = vunpack.c.l.b16 %v4321
      %v4354 = vunpack.c.l.b16 %v4322
      %v4355 = vunpack.c.l.b16 %v4323
      %v4356 = vunpack.c.l.b16 %v4324
      %v4357 = vunpack.c.l.b16 %v4325
      %v4358 = vpack.c.b16 %v4343, %v4342
      %v4359 = vpack.c.b16 %v4345, %v4344
      %v4360 = vpack.c.b16 %v4347, %v4346
      %v4361 = vpack.c.b16 %v4349, %v4348
      %v4362 = vpack.c.b16 %v4351, %v4350
      %v4363 = vpack.c.b16 %v4353, %v4352
      %v4364 = vpack.c.b16 %v4355, %v4354
      %v4365 = vpack.c.b16 %v4357, %v4356
      %4374 = vmatprep.subr.bf16.mxu0 0
      %4375 = vmatpush1.bf16.msra.mxu0 %v4358
      %4376 = vmatprep.subr.bf16.mxu0 0
      %4377 = vmatpush1.bf16.msra.mxu0 %v4359
      %4378 = vmatprep.subr.bf16.mxu0 0
      %4379 = vmatpush1.bf16.msra.mxu0 %v4360
      %4380 = vmatprep.subr.bf16.mxu0 0
      %4381 = vmatpush1.bf16.msra.mxu0 %v4361
      %4382 = vmatprep.subr.bf16.mxu0 0
      %4383 = vmatpush1.bf16.msra.mxu0 %v4362
      %4384 = vmatprep.subr.bf16.mxu0 0
      %4385 = vmatpush1.bf16.msra.mxu0 %v4363
      %4386 = vmatprep.subr.bf16.mxu0 0
      %4387 = vmatpush1.bf16.msra.mxu0 %v4364
      %4388 = vmatprep.subr.bf16.mxu0 0
      %4389 = vmatpush1.bf16.msra.mxu0 %v4365
      %4390 = vmatprep.subr.bf16.mxu0 0
      %4391 = vmatpush1.bf16.msra.mxu0 0
      %4392 = vmatprep.subr.bf16.mxu0 0
      %4393 = vmatpush1.bf16.msra.mxu0 0
      %4394 = vmatprep.subr.bf16.mxu0 0
      %4395 = vmatpush1.bf16.msra.mxu0 0
      %4396 = vmatprep.subr.bf16.mxu0 0
      %4397 = vmatpush1.bf16.msra.mxu0 0
      %4398 = vmatprep.subr.bf16.mxu0 0
      %4399 = vmatpush1.bf16.msra.mxu0 0
      %4400 = vmatprep.subr.bf16.mxu0 0
      %4401 = vmatpush1.bf16.msra.mxu0 0
      %4402 = vmatprep.subr.bf16.mxu0 0
      %4403 = vmatpush1.bf16.msra.mxu0 0
      %4404 = vmatprep.subr.bf16.mxu0 0
      %4405 = vmatpush1.bf16.msra.mxu0 0
      %4406 = vmatprep.mubr.bf16.mxu0 0
      %4407 = vmatmul.mubr.bf16.gmra.mrb[0].mxu0 %v1442
      %v4408 = vpop.f32.mrb[0].mxu0
      %v4409 = vadd.f32 0.0, %v4408
      %v4410 = vpop.f32.mrb[0].mxu0
      %v4411 = vpop.f32.mrb[0].mxu0
      %v4412 = vadd.f32 0.0, %v4411
      %v4413 = vpop.f32.mrb[0].mxu0
      %4414 = vmatprep.mubr.bf16.mxu0 0
      %4415 = vmatmul.mubr.bf16.gmra.mrb[0].mxu0 %v1443
      %v4416 = vpop.f32.mrb[0].mxu0
      %v4417 = vadd.f32 0.0, %v4416
      %v4418 = vpop.f32.mrb[0].mxu0
      %v4419 = vpop.f32.mrb[0].mxu0
      %v4420 = vadd.f32 0.0, %v4419
      %v4421 = vpop.f32.mrb[0].mxu0
      %4422 = vmatprep.mubr.bf16.mxu0 0
      %4423 = vmatmul.mubr.bf16.gmra.mrb[0].mxu0 %v1444
      %v4424 = vpop.f32.mrb[0].mxu0
      %v4425 = vadd.f32 0.0, %v4424
      %v4426 = vpop.f32.mrb[0].mxu0
      %v4427 = vpop.f32.mrb[0].mxu0
      %v4428 = vadd.f32 0.0, %v4427
      %v4429 = vpop.f32.mrb[0].mxu0
      %4430 = vmatprep.mubr.bf16.mxu0 0
      %4431 = vmatmul.mubr.bf16.gmra.mrb[0].mxu0 %v1445
      %v4432 = vpop.f32.mrb[0].mxu0
      %v4433 = vadd.f32 0.0, %v4432
      %v4434 = vpop.f32.mrb[0].mxu0
      %v4435 = vpop.f32.mrb[0].mxu0
      %v4436 = vadd.f32 0.0, %v4435
      %v4437 = vpop.f32.mrb[0].mxu0
      %4438 = vmatprep.mubr.bf16.mxu0 0
      %4439 = vmatmul.mubr.bf16.gmra.mrb[0].mxu0 %v1446
      %v4440 = vpop.f32.mrb[0].mxu0
      %v4441 = vadd.f32 0.0, %v4440
      %v4442 = vpop.f32.mrb[0].mxu0
      %v4443 = vpop.f32.mrb[0].mxu0
      %v4444 = vadd.f32 0.0, %v4443
      %v4445 = vpop.f32.mrb[0].mxu0
      %4446 = vmatprep.mubr.bf16.mxu0 0
      %4447 = vmatmul.mubr.bf16.gmra.mrb[0].mxu0 %v1447
      %v4448 = vpop.f32.mrb[0].mxu0
      %v4449 = vadd.f32 0.0, %v4448
      %v4450 = vpop.f32.mrb[0].mxu0
      %v4451 = vpop.f32.mrb[0].mxu0
      %v4452 = vadd.f32 0.0, %v4451
      %v4453 = vpop.f32.mrb[0].mxu0
      %4454 = vmatprep.mubr.bf16.mxu0 0
      %4455 = vmatmul.mubr.bf16.gmra.mrb[0].mxu0 %v1448
      %v4456 = vpop.f32.mrb[0].mxu0
      %v4457 = vadd.f32 0.0, %v4456
      %v4458 = vpop.f32.mrb[0].mxu0
      %v4459 = vpop.f32.mrb[0].mxu0
      %v4460 = vadd.f32 0.0, %v4459
      %v4461 = vpop.f32.mrb[0].mxu0
      %4462 = vmatprep.mubr.bf16.mxu0 0
      %4463 = vmatmul.mubr.bf16.gmra.mrb[0].mxu0 %v1449
      %v4464 = vpop.f32.mrb[0].mxu0
      %v4465 = vadd.f32 0.0, %v4464
      %v4466 = vpop.f32.mrb[0].mxu0
      %v4467 = vpop.f32.mrb[0].mxu0
      %v4468 = vadd.f32 0.0, %v4467
      %v4469 = vpop.f32.mrb[0].mxu0
      %4470 = vmatprep.mubr.bf16.mxu0 0
      %4471 = vmatmul.mubr.bf16.gmra.mrb[0].mxu0 %v1450
      %v4472 = vpop.f32.mrb[0].mxu0
      %v4473 = vadd.f32 0.0, %v4472
      %v4474 = vpop.f32.mrb[0].mxu0
      %v4475 = vpop.f32.mrb[0].mxu0
      %v4476 = vadd.f32 0.0, %v4475
      %v4477 = vpop.f32.mrb[0].mxu0
      %4478 = vmatprep.mubr.bf16.mxu0 0
      %4479 = vmatmul.mubr.bf16.gmra.mrb[0].mxu0 %v1451
      %v4480 = vpop.f32.mrb[0].mxu0
      %v4481 = vadd.f32 0.0, %v4480
      %v4482 = vpop.f32.mrb[0].mxu0
      %v4483 = vpop.f32.mrb[0].mxu0
      %v4484 = vadd.f32 0.0, %v4483
      %v4485 = vpop.f32.mrb[0].mxu0
      %4486 = vmatprep.mubr.bf16.mxu0 0
      %4487 = vmatmul.mubr.bf16.gmra.mrb[0].mxu0 %v1452
      %v4488 = vpop.f32.mrb[0].mxu0
      %v4489 = vadd.f32 0.0, %v4488
      %v4490 = vpop.f32.mrb[0].mxu0
      %v4491 = vpop.f32.mrb[0].mxu0
      %v4492 = vadd.f32 0.0, %v4491
      %v4493 = vpop.f32.mrb[0].mxu0
      %4494 = vmatprep.mubr.bf16.mxu0 0
      %4495 = vmatmul.mubr.bf16.gmra.mrb[0].mxu0 %v1453
      %v4496 = vpop.f32.mrb[0].mxu0
      %v4497 = vadd.f32 0.0, %v4496
      %v4498 = vpop.f32.mrb[0].mxu0
      %v4499 = vpop.f32.mrb[0].mxu0
      %v4500 = vadd.f32 0.0, %v4499
      %v4501 = vpop.f32.mrb[0].mxu0
      %4502 = vmatprep.mubr.bf16.mxu0 0
      %4503 = vmatmul.mubr.bf16.gmra.mrb[0].mxu0 %v1454
      %v4504 = vpop.f32.mrb[0].mxu0
      %v4505 = vadd.f32 0.0, %v4504
      %v4506 = vpop.f32.mrb[0].mxu0
      %v4507 = vpop.f32.mrb[0].mxu0
      %v4508 = vadd.f32 0.0, %v4507
      %v4509 = vpop.f32.mrb[0].mxu0
      %4510 = vmatprep.mubr.bf16.mxu0 0
      %4511 = vmatmul.mubr.bf16.gmra.mrb[0].mxu0 %v1455
      %v4512 = vpop.f32.mrb[0].mxu0
      %v4513 = vadd.f32 0.0, %v4512
      %v4514 = vpop.f32.mrb[0].mxu0
      %v4515 = vpop.f32.mrb[0].mxu0
      %v4516 = vadd.f32 0.0, %v4515
      %v4517 = vpop.f32.mrb[0].mxu0
      %4518 = vmatprep.mubr.bf16.mxu0 0
      %4519 = vmatmul.mubr.bf16.gmra.mrb[0].mxu0 %v1456
      %v4520 = vpop.f32.mrb[0].mxu0
      %v4521 = vadd.f32 0.0, %v4520
      %v4522 = vpop.f32.mrb[0].mxu0
      %v4523 = vpop.f32.mrb[0].mxu0
      %v4524 = vadd.f32 0.0, %v4523
      %v4525 = vpop.f32.mrb[0].mxu0
      %4526 = vmatprep.mubr.bf16.mxu0 0
      %4527 = vmatmul.mubr.bf16.gmra.mrb[0].mxu0 %v1457
      %v4528 = vpop.f32.mrb[0].mxu0
      %v4529 = vadd.f32 0.0, %v4528
      %v4530 = vpop.f32.mrb[0].mxu0
      %v4531 = vpop.f32.mrb[0].mxu0
      %v4532 = vadd.f32 0.0, %v4531
      %v4533 = vpop.f32.mrb[0].mxu0
      %4534 = vmatprep.mubr.bf16.mxu0 0
      %4535 = vmatmul.mubr.bf16.gmra.mrb[0].mxu0 %v1460
      %v4536 = vpop.f32.mrb[0].mxu0
      %v4537 = vadd.f32 0.0, %v4536
      %v4538 = vpop.f32.mrb[0].mxu0
      %v4539 = vpop.f32.mrb[0].mxu0
      %v4540 = vadd.f32 0.0, %v4539
      %v4541 = vpop.f32.mrb[0].mxu0
      %4542 = vmatprep.mubr.bf16.mxu0 0
      %4543 = vmatmul.mubr.bf16.gmra.mrb[0].mxu0 %v1461
      %v4544 = vpop.f32.mrb[0].mxu0
      %v4545 = vadd.f32 0.0, %v4544
      %v4546 = vpop.f32.mrb[0].mxu0
      %v4547 = vpop.f32.mrb[0].mxu0
      %v4548 = vadd.f32 0.0, %v4547
      %v4549 = vpop.f32.mrb[0].mxu0
      %4550 = vmatprep.mubr.bf16.mxu0 0
      %4551 = vmatmul.mubr.bf16.gmra.mrb[0].mxu0 %v1462
      %v4552 = vpop.f32.mrb[0].mxu0
      %v4553 = vadd.f32 0.0, %v4552
      %v4554 = vpop.f32.mrb[0].mxu0
      %v4555 = vpop.f32.mrb[0].mxu0
      %v4556 = vadd.f32 0.0, %v4555
      %v4557 = vpop.f32.mrb[0].mxu0
      %4558 = vmatprep.mubr.bf16.mxu0 0
      %4559 = vmatmul.mubr.bf16.gmra.mrb[0].mxu0 %v1463
      %v4560 = vpop.f32.mrb[0].mxu0
      %v4561 = vadd.f32 0.0, %v4560
      %v4562 = vpop.f32.mrb[0].mxu0
      %v4563 = vpop.f32.mrb[0].mxu0
      %v4564 = vadd.f32 0.0, %v4563
      %v4565 = vpop.f32.mrb[0].mxu0
      %4566 = vmatprep.mubr.bf16.mxu0 0
      %4567 = vmatmul.mubr.bf16.gmra.mrb[0].mxu0 %v1464
      %v4568 = vpop.f32.mrb[0].mxu0
      %v4569 = vadd.f32 0.0, %v4568
      %v4570 = vpop.f32.mrb[0].mxu0
      %v4571 = vpop.f32.mrb[0].mxu0
      %v4572 = vadd.f32 0.0, %v4571
      %v4573 = vpop.f32.mrb[0].mxu0
      %4574 = vmatprep.mubr.bf16.mxu0 0
      %4575 = vmatmul.mubr.bf16.gmra.mrb[0].mxu0 %v1465
      %v4576 = vpop.f32.mrb[0].mxu0
      %v4577 = vadd.f32 0.0, %v4576
      %v4578 = vpop.f32.mrb[0].mxu0
      %v4579 = vpop.f32.mrb[0].mxu0
      %v4580 = vadd.f32 0.0, %v4579
      %v4581 = vpop.f32.mrb[0].mxu0
      %4582 = vmatprep.mubr.bf16.mxu0 0
      %4583 = vmatmul.mubr.bf16.gmra.mrb[0].mxu0 %v1466
      %v4584 = vpop.f32.mrb[0].mxu0
      %v4585 = vadd.f32 0.0, %v4584
      %v4586 = vpop.f32.mrb[0].mxu0
      %v4587 = vpop.f32.mrb[0].mxu0
      %v4588 = vadd.f32 0.0, %v4587
      %v4589 = vpop.f32.mrb[0].mxu0
      %4590 = vmatprep.mubr.bf16.mxu0 0
      %4591 = vmatmul.mubr.bf16.gmra.mrb[0].mxu0 %v1467
      %v4592 = vpop.f32.mrb[0].mxu0
      %v4593 = vadd.f32 0.0, %v4592
      %v4594 = vpop.f32.mrb[0].mxu0
      %v4595 = vpop.f32.mrb[0].mxu0
      %v4596 = vadd.f32 0.0, %v4595
      %v4597 = vpop.f32.mrb[0].mxu0
      %4598 = vmatprep.mubr.bf16.mxu0 0
      %4599 = vmatmul.mubr.bf16.gmra.mrb[0].mxu0 %v1468
      %v4600 = vpop.f32.mrb[0].mxu0
      %v4601 = vadd.f32 0.0, %v4600
      %v4602 = vpop.f32.mrb[0].mxu0
      %v4603 = vpop.f32.mrb[0].mxu0
      %v4604 = vadd.f32 0.0, %v4603
      %v4605 = vpop.f32.mrb[0].mxu0
      %4606 = vmatprep.mubr.bf16.mxu0 0
      %4607 = vmatmul.mubr.bf16.gmra.mrb[0].mxu0 %v1469
      %v4608 = vpop.f32.mrb[0].mxu0
      %v4609 = vadd.f32 0.0, %v4608
      %v4610 = vpop.f32.mrb[0].mxu0
      %v4611 = vpop.f32.mrb[0].mxu0
      %v4612 = vadd.f32 0.0, %v4611
      %v4613 = vpop.f32.mrb[0].mxu0
      %4614 = vmatprep.mubr.bf16.mxu0 0
      %4615 = vmatmul.mubr.bf16.gmra.mrb[0].mxu0 %v1470
      %v4616 = vpop.f32.mrb[0].mxu0
      %v4617 = vadd.f32 0.0, %v4616
      %v4618 = vpop.f32.mrb[0].mxu0
      %v4619 = vpop.f32.mrb[0].mxu0
      %v4620 = vadd.f32 0.0, %v4619
      %v4621 = vpop.f32.mrb[0].mxu0
      %4622 = vmatprep.mubr.bf16.mxu0 0
      %4623 = vmatmul.mubr.bf16.gmra.mrb[0].mxu0 %v1471
      %v4624 = vpop.f32.mrb[0].mxu0
      %v4625 = vadd.f32 0.0, %v4624
      %v4626 = vpop.f32.mrb[0].mxu0
      %v4627 = vpop.f32.mrb[0].mxu0
      %v4628 = vadd.f32 0.0, %v4627
      %v4629 = vpop.f32.mrb[0].mxu0
      %4630 = vmatprep.mubr.bf16.mxu0 0
      %4631 = vmatmul.mubr.bf16.gmra.mrb[0].mxu0 %v1472
      %v4632 = vpop.f32.mrb[0].mxu0
      %v4633 = vadd.f32 0.0, %v4632
      %v4634 = vpop.f32.mrb[0].mxu0
      %v4635 = vpop.f32.mrb[0].mxu0
      %v4636 = vadd.f32 0.0, %v4635
      %v4637 = vpop.f32.mrb[0].mxu0
      %4638 = vmatprep.mubr.bf16.mxu0 0
      %4639 = vmatmul.mubr.bf16.gmra.mrb[0].mxu0 %v1473
      %v4640 = vpop.f32.mrb[0].mxu0
      %v4641 = vadd.f32 0.0, %v4640
      %v4642 = vpop.f32.mrb[0].mxu0
      %v4643 = vpop.f32.mrb[0].mxu0
      %v4644 = vadd.f32 0.0, %v4643
      %v4645 = vpop.f32.mrb[0].mxu0
      %4646 = vmatprep.mubr.bf16.mxu0 0
      %4647 = vmatmul.mubr.bf16.gmra.mrb[0].mxu0 %v1474
      %v4648 = vpop.f32.mrb[0].mxu0
      %v4649 = vadd.f32 0.0, %v4648
      %v4650 = vpop.f32.mrb[0].mxu0
      %v4651 = vpop.f32.mrb[0].mxu0
      %v4652 = vadd.f32 0.0, %v4651
      %v4653 = vpop.f32.mrb[0].mxu0
      %4654 = vmatprep.mubr.bf16.mxu0 0
      %4655 = vmatmul.mubr.bf16.gmra.mrb[0].mxu0 %v1475
      %v4656 = vpop.f32.mrb[0].mxu0
      %v4657 = vadd.f32 0.0, %v4656
      %v4658 = vpop.f32.mrb[0].mxu0
      %v4659 = vpop.f32.mrb[0].mxu0
      %v4660 = vadd.f32 0.0, %v4659
      %v4661 = vpop.f32.mrb[0].mxu0
      %4662 = vdwg.mxu0
      %v4663 = vadd.f32 %v4245, %v4409
      %v4664 = vadd.f32 %v4246, %v4412
      %v4665 = vadd.f32 %v4247, %v4417
      %v4666 = vadd.f32 %v4248, %v4420
      %v4667 = vadd.f32 %v4249, %v4425
      %v4668 = vadd.f32 %v4250, %v4428
      %v4669 = vadd.f32 %v4251, %v4433
      %v4670 = vadd.f32 %v4252, %v4436
      %v4671 = vadd.f32 %v4253, %v4441
      %v4672 = vadd.f32 %v4254, %v4444
      %v4673 = vadd.f32 %v4255, %v4449
      %v4674 = vadd.f32 %v4256, %v4452
      %v4675 = vadd.f32 %v4257, %v4457
      %v4676 = vadd.f32 %v4258, %v4460
      %v4677 = vadd.f32 %v4259, %v4465
      %v4678 = vadd.f32 %v4260, %v4468
      %v4679 = vadd.f32 %v4261, %v4473
      %v4680 = vadd.f32 %v4262, %v4476
      %v4681 = vadd.f32 %v4263, %v4481
      %v4682 = vadd.f32 %v4264, %v4484
      %v4683 = vadd.f32 %v4265, %v4489
      %v4684 = vadd.f32 %v4266, %v4492
      %v4685 = vadd.f32 %v4267, %v4497
      %v4686 = vadd.f32 %v4268, %v4500
      %v4687 = vadd.f32 %v4269, %v4505
      %v4688 = vadd.f32 %v4270, %v4508
      %v4689 = vadd.f32 %v4271, %v4513
      %v4690 = vadd.f32 %v4272, %v4516
      %v4691 = vadd.f32 %v4273, %v4521
      %v4692 = vadd.f32 %v4274, %v4524
      %v4693 = vadd.f32 %v4275, %v4529
      %v4694 = vadd.f32 %v4276, %v4532
      %v4695 = vadd.f32 %v4277, %v4537
      %v4696 = vadd.f32 %v4278, %v4540
      %v4697 = vadd.f32 %v4279, %v4545
      %v4698 = vadd.f32 %v4280, %v4548
      %v4699 = vadd.f32 %v4281, %v4553
      %v4700 = vadd.f32 %v4282, %v4556
      %v4701 = vadd.f32 %v4283, %v4561
      %v4702 = vadd.f32 %v4284, %v4564
      %v4703 = vadd.f32 %v4285, %v4569
      %v4704 = vadd.f32 %v4286, %v4572
      %v4705 = vadd.f32 %v4287, %v4577
      %v4706 = vadd.f32 %v4288, %v4580
      %v4707 = vadd.f32 %v4289, %v4585
      %v4708 = vadd.f32 %v4290, %v4588
      %v4709 = vadd.f32 %v4291, %v4593
      %v4710 = vadd.f32 %v4292, %v4596
      %v4711 = vadd.f32 %v4293, %v4601
      %v4712 = vadd.f32 %v4294, %v4604
      %v4713 = vadd.f32 %v4295, %v4609
      %v4714 = vadd.f32 %v4296, %v4612
      %v4715 = vadd.f32 %v4297, %v4617
      %v4716 = vadd.f32 %v4298, %v4620
      %v4717 = vadd.f32 %v4299, %v4625
      %v4718 = vadd.f32 %v4300, %v4628
      %v4719 = vadd.f32 %v4301, %v4633
      %v4720 = vadd.f32 %v4302, %v4636
      %v4721 = vadd.f32 %v4303, %v4641
      %v4722 = vadd.f32 %v4304, %v4644
      %v4723 = vadd.f32 %v4305, %v4649
      %v4724 = vadd.f32 %v4306, %v4652
      %v4725 = vadd.f32 %v4307, %v4657
      %v4726 = vadd.f32 %v4308, %v4660
      %s4727 = scalar_lea.vmem %s222, 512
      %v4728 = vld [vmem:[%s4727] sm:$0xf]
      %v4729 = vld [vmem:[%s4727 + $0x4] sm:$0xf]
      %v4730 = vld [vmem:[%s4727 + $0x8] sm:$0xf]
      %v4731 = vld [vmem:[%s4727 + $0xc] sm:$0xf]
      %v4732 = vld [vmem:[%s4727 + $0x10] sm:$0xf]
      %v4733 = vld [vmem:[%s4727 + $0x14] sm:$0xf]
      %v4734 = vld [vmem:[%s4727 + $0x18] sm:$0xf]
      %v4735 = vld [vmem:[%s4727 + $0x1c] sm:$0xf]
      %v4736 = vld [vmem:[%s4727 + $0x20] sm:$0xf]
      %v4737 = vld [vmem:[%s4727 + $0x24] sm:$0xf]
      %v4738 = vld [vmem:[%s4727 + $0x28] sm:$0xf]
      %v4739 = vld [vmem:[%s4727 + $0x2c] sm:$0xf]
      %v4740 = vld [vmem:[%s4727 + $0x30] sm:$0xf]
      %v4741 = vld [vmem:[%s4727 + $0x34] sm:$0xf]
      %v4742 = vld [vmem:[%s4727 + $0x38] sm:$0xf]
      %v4743 = vld [vmem:[%s4727 + $0x3c] sm:$0xf]
      %v4760 = vunpack.c.l.b16 %v4728
      %v4761 = vunpack.c.l.b16 %v4729
      %v4762 = vunpack.c.l.b16 %v4730
      %v4763 = vunpack.c.l.b16 %v4731
      %v4764 = vunpack.c.l.b16 %v4732
      %v4765 = vunpack.c.l.b16 %v4733
      %v4766 = vunpack.c.l.b16 %v4734
      %v4767 = vunpack.c.l.b16 %v4735
      %v4768 = vunpack.c.l.b16 %v4736
      %v4769 = vunpack.c.l.b16 %v4737
      %v4770 = vunpack.c.l.b16 %v4738
      %v4771 = vunpack.c.l.b16 %v4739
      %v4772 = vunpack.c.l.b16 %v4740
      %v4773 = vunpack.c.l.b16 %v4741
      %v4774 = vunpack.c.l.b16 %v4742
      %v4775 = vunpack.c.l.b16 %v4743
      %v4776 = vpack.c.b16 %v4761, %v4760
      %v4777 = vpack.c.b16 %v4763, %v4762
      %v4778 = vpack.c.b16 %v4765, %v4764
      %v4779 = vpack.c.b16 %v4767, %v4766
      %v4780 = vpack.c.b16 %v4769, %v4768
      %v4781 = vpack.c.b16 %v4771, %v4770
      %v4782 = vpack.c.b16 %v4773, %v4772
      %v4783 = vpack.c.b16 %v4775, %v4774
      %4792 = vmatprep.subr.bf16.mxu0 0
      %4793 = vmatpush1.bf16.msra.mxu0 %v4776
      %4794 = vmatprep.subr.bf16.mxu0 0
      %4795 = vmatpush1.bf16.msra.mxu0 %v4777
      %4796 = vmatprep.subr.bf16.mxu0 0
      %4797 = vmatpush1.bf16.msra.mxu0 %v4778
      %4798 = vmatprep.subr.bf16.mxu0 0
      %4799 = vmatpush1.bf16.msra.mxu0 %v4779
      %4800 = vmatprep.subr.bf16.mxu0 0
      %4801 = vmatpush1.bf16.msra.mxu0 %v4780
      %4802 = vmatprep.subr.bf16.mxu0 0
      %4803 = vmatpush1.bf16.msra.mxu0 %v4781
      %4804 = vmatprep.subr.bf16.mxu0 0
      %4805 = vmatpush1.bf16.msra.mxu0 %v4782
      %4806 = vmatprep.subr.bf16.mxu0 0
      %4807 = vmatpush1.bf16.msra.mxu0 %v4783
      %4808 = vmatprep.subr.bf16.mxu0 0
      %4809 = vmatpush1.bf16.msra.mxu0 0
      %4810 = vmatprep.subr.bf16.mxu0 0
      %4811 = vmatpush1.bf16.msra.mxu0 0
      %4812 = vmatprep.subr.bf16.mxu0 0
      %4813 = vmatpush1.bf16.msra.mxu0 0
      %4814 = vmatprep.subr.bf16.mxu0 0
      %4815 = vmatpush1.bf16.msra.mxu0 0
      %4816 = vmatprep.subr.bf16.mxu0 0
      %4817 = vmatpush1.bf16.msra.mxu0 0
      %4818 = vmatprep.subr.bf16.mxu0 0
      %4819 = vmatpush1.bf16.msra.mxu0 0
      %4820 = vmatprep.subr.bf16.mxu0 0
      %4821 = vmatpush1.bf16.msra.mxu0 0
      %4822 = vmatprep.subr.bf16.mxu0 0
      %4823 = vmatpush1.bf16.msra.mxu0 0
      %4824 = vmatprep.mubr.bf16.mxu0 0
      %4825 = vmatmul.mubr.bf16.gmra.mrb[0].mxu0 %v1478
      %v4826 = vpop.f32.mrb[0].mxu0
      %v4827 = vadd.f32 0.0, %v4826
      %v4828 = vpop.f32.mrb[0].mxu0
      %v4829 = vpop.f32.mrb[0].mxu0
      %v4830 = vadd.f32 0.0, %v4829
      %v4831 = vpop.f32.mrb[0].mxu0
      %4832 = vmatprep.mubr.bf16.mxu0 0
      %4833 = vmatmul.mubr.bf16.gmra.mrb[0].mxu0 %v1479
      %v4834 = vpop.f32.mrb[0].mxu0
      %v4835 = vadd.f32 0.0, %v4834
      %v4836 = vpop.f32.mrb[0].mxu0
      %v4837 = vpop.f32.mrb[0].mxu0
      %v4838 = vadd.f32 0.0, %v4837
      %v4839 = vpop.f32.mrb[0].mxu0
      %4840 = vmatprep.mubr.bf16.mxu0 0
      %4841 = vmatmul.mubr.bf16.gmra.mrb[0].mxu0 %v1480
      %v4842 = vpop.f32.mrb[0].mxu0
      %v4843 = vadd.f32 0.0, %v4842
      %v4844 = vpop.f32.mrb[0].mxu0
      %v4845 = vpop.f32.mrb[0].mxu0
      %v4846 = vadd.f32 0.0, %v4845
      %v4847 = vpop.f32.mrb[0].mxu0
      %4848 = vmatprep.mubr.bf16.mxu0 0
      %4849 = vmatmul.mubr.bf16.gmra.mrb[0].mxu0 %v1481
      %v4850 = vpop.f32.mrb[0].mxu0
      %v4851 = vadd.f32 0.0, %v4850
      %v4852 = vpop.f32.mrb[0].mxu0
      %v4853 = vpop.f32.mrb[0].mxu0
      %v4854 = vadd.f32 0.0, %v4853
      %v4855 = vpop.f32.mrb[0].mxu0
      %4856 = vmatprep.mubr.bf16.mxu0 0
      %4857 = vmatmul.mubr.bf16.gmra.mrb[0].mxu0 %v1482
      %v4858 = vpop.f32.mrb[0].mxu0
      %v4859 = vadd.f32 0.0, %v4858
      %v4860 = vpop.f32.mrb[0].mxu0
      %v4861 = vpop.f32.mrb[0].mxu0
      %v4862 = vadd.f32 0.0, %v4861
      %v4863 = vpop.f32.mrb[0].mxu0
      %4864 = vmatprep.mubr.bf16.mxu0 0
      %4865 = vmatmul.mubr.bf16.gmra.mrb[0].mxu0 %v1483
      %v4866 = vpop.f32.mrb[0].mxu0
      %v4867 = vadd.f32 0.0, %v4866
      %v4868 = vpop.f32.mrb[0].mxu0
      %v4869 = vpop.f32.mrb[0].mxu0
      %v4870 = vadd.f32 0.0, %v4869
      %v4871 = vpop.f32.mrb[0].mxu0
      %4872 = vmatprep.mubr.bf16.mxu0 0
      %4873 = vmatmul.mubr.bf16.gmra.mrb[0].mxu0 %v1484
      %v4874 = vpop.f32.mrb[0].mxu0
      %v4875 = vadd.f32 0.0, %v4874
      %v4876 = vpop.f32.mrb[0].mxu0
      %v4877 = vpop.f32.mrb[0].mxu0
      %v4878 = vadd.f32 0.0, %v4877
      %v4879 = vpop.f32.mrb[0].mxu0
      %4880 = vmatprep.mubr.bf16.mxu0 0
      %4881 = vmatmul.mubr.bf16.gmra.mrb[0].mxu0 %v1485
      %v4882 = vpop.f32.mrb[0].mxu0
      %v4883 = vadd.f32 0.0, %v4882
      %v4884 = vpop.f32.mrb[0].mxu0
      %v4885 = vpop.f32.mrb[0].mxu0
      %v4886 = vadd.f32 0.0, %v4885
      %v4887 = vpop.f32.mrb[0].mxu0
      %4888 = vmatprep.mubr.bf16.mxu0 0
      %4889 = vmatmul.mubr.bf16.gmra.mrb[0].mxu0 %v1486
      %v4890 = vpop.f32.mrb[0].mxu0
      %v4891 = vadd.f32 0.0, %v4890
      %v4892 = vpop.f32.mrb[0].mxu0
      %v4893 = vpop.f32.mrb[0].mxu0
      %v4894 = vadd.f32 0.0, %v4893
      %v4895 = vpop.f32.mrb[0].mxu0
      %4896 = vmatprep.mubr.bf16.mxu0 0
      %4897 = vmatmul.mubr.bf16.gmra.mrb[0].mxu0 %v1487
      %v4898 = vpop.f32.mrb[0].mxu0
      %v4899 = vadd.f32 0.0, %v4898
      %v4900 = vpop.f32.mrb[0].mxu0
      %v4901 = vpop.f32.mrb[0].mxu0
      %v4902 = vadd.f32 0.0, %v4901
      %v4903 = vpop.f32.mrb[0].mxu0
      %4904 = vmatprep.mubr.bf16.mxu0 0
      %4905 = vmatmul.mubr.bf16.gmra.mrb[0].mxu0 %v1488
      %v4906 = vpop.f32.mrb[0].mxu0
      %v4907 = vadd.f32 0.0, %v4906
      %v4908 = vpop.f32.mrb[0].mxu0
      %v4909 = vpop.f32.mrb[0].mxu0
      %v4910 = vadd.f32 0.0, %v4909
      %v4911 = vpop.f32.mrb[0].mxu0
      %4912 = vmatprep.mubr.bf16.mxu0 0
      %4913 = vmatmul.mubr.bf16.gmra.mrb[0].mxu0 %v1489
      %v4914 = vpop.f32.mrb[0].mxu0
      %v4915 = vadd.f32 0.0, %v4914
      %v4916 = vpop.f32.mrb[0].mxu0
      %v4917 = vpop.f32.mrb[0].mxu0
      %v4918 = vadd.f32 0.0, %v4917
      %v4919 = vpop.f32.mrb[0].mxu0
      %4920 = vmatprep.mubr.bf16.mxu0 0
      %4921 = vmatmul.mubr.bf16.gmra.mrb[0].mxu0 %v1490
      %v4922 = vpop.f32.mrb[0].mxu0
      %v4923 = vadd.f32 0.0, %v4922
      %v4924 = vpop.f32.mrb[0].mxu0
      %v4925 = vpop.f32.mrb[0].mxu0
      %v4926 = vadd.f32 0.0, %v4925
      %v4927 = vpop.f32.mrb[0].mxu0
      %4928 = vmatprep.mubr.bf16.mxu0 0
      %4929 = vmatmul.mubr.bf16.gmra.mrb[0].mxu0 %v1491
      %v4930 = vpop.f32.mrb[0].mxu0
      %v4931 = vadd.f32 0.0, %v4930
      %v4932 = vpop.f32.mrb[0].mxu0
      %v4933 = vpop.f32.mrb[0].mxu0
      %v4934 = vadd.f32 0.0, %v4933
      %v4935 = vpop.f32.mrb[0].mxu0
      %4936 = vmatprep.mubr.bf16.mxu0 0
      %4937 = vmatmul.mubr.bf16.gmra.mrb[0].mxu0 %v1492
      %v4938 = vpop.f32.mrb[0].mxu0
      %v4939 = vadd.f32 0.0, %v4938
      %v4940 = vpop.f32.mrb[0].mxu0
      %v4941 = vpop.f32.mrb[0].mxu0
      %v4942 = vadd.f32 0.0, %v4941
      %v4943 = vpop.f32.mrb[0].mxu0
      %4944 = vmatprep.mubr.bf16.mxu0 0
      %4945 = vmatmul.mubr.bf16.gmra.mrb[0].mxu0 %v1493
      %v4946 = vpop.f32.mrb[0].mxu0
      %v4947 = vadd.f32 0.0, %v4946
      %v4948 = vpop.f32.mrb[0].mxu0
      %v4949 = vpop.f32.mrb[0].mxu0
      %v4950 = vadd.f32 0.0, %v4949
      %v4951 = vpop.f32.mrb[0].mxu0
      %4952 = vmatprep.mubr.bf16.mxu0 0
      %4953 = vmatmul.mubr.bf16.gmra.mrb[0].mxu0 %v1496
      %v4954 = vpop.f32.mrb[0].mxu0
      %v4955 = vadd.f32 0.0, %v4954
      %v4956 = vpop.f32.mrb[0].mxu0
      %v4957 = vpop.f32.mrb[0].mxu0
      %v4958 = vadd.f32 0.0, %v4957
      %v4959 = vpop.f32.mrb[0].mxu0
      %4960 = vmatprep.mubr.bf16.mxu0 0
      %4961 = vmatmul.mubr.bf16.gmra.mrb[0].mxu0 %v1497
      %v4962 = vpop.f32.mrb[0].mxu0
      %v4963 = vadd.f32 0.0, %v4962
      %v4964 = vpop.f32.mrb[0].mxu0
      %v4965 = vpop.f32.mrb[0].mxu0
      %v4966 = vadd.f32 0.0, %v4965
      %v4967 = vpop.f32.mrb[0].mxu0
      %4968 = vmatprep.mubr.bf16.mxu0 0
      %4969 = vmatmul.mubr.bf16.gmra.mrb[0].mxu0 %v1498
      %v4970 = vpop.f32.mrb[0].mxu0
      %v4971 = vadd.f32 0.0, %v4970
      %v4972 = vpop.f32.mrb[0].mxu0
      %v4973 = vpop.f32.mrb[0].mxu0
      %v4974 = vadd.f32 0.0, %v4973
      %v4975 = vpop.f32.mrb[0].mxu0
      %4976 = vmatprep.mubr.bf16.mxu0 0
      %4977 = vmatmul.mubr.bf16.gmra.mrb[0].mxu0 %v1499
      %v4978 = vpop.f32.mrb[0].mxu0
      %v4979 = vadd.f32 0.0, %v4978
      %v4980 = vpop.f32.mrb[0].mxu0
      %v4981 = vpop.f32.mrb[0].mxu0
      %v4982 = vadd.f32 0.0, %v4981
      %v4983 = vpop.f32.mrb[0].mxu0
      %4984 = vmatprep.mubr.bf16.mxu0 0
      %4985 = vmatmul.mubr.bf16.gmra.mrb[0].mxu0 %v1500
      %v4986 = vpop.f32.mrb[0].mxu0
      %v4987 = vadd.f32 0.0, %v4986
      %v4988 = vpop.f32.mrb[0].mxu0
      %v4989 = vpop.f32.mrb[0].mxu0
      %v4990 = vadd.f32 0.0, %v4989
      %v4991 = vpop.f32.mrb[0].mxu0
      %4992 = vmatprep.mubr.bf16.mxu0 0
      %4993 = vmatmul.mubr.bf16.gmra.mrb[0].mxu0 %v1501
      %v4994 = vpop.f32.mrb[0].mxu0
      %v4995 = vadd.f32 0.0, %v4994
      %v4996 = vpop.f32.mrb[0].mxu0
      %v4997 = vpop.f32.mrb[0].mxu0
      %v4998 = vadd.f32 0.0, %v4997
      %v4999 = vpop.f32.mrb[0].mxu0
      %5000 = vmatprep.mubr.bf16.mxu0 0
      %5001 = vmatmul.mubr.bf16.gmra.mrb[0].mxu0 %v1502
      %v5002 = vpop.f32.mrb[0].mxu0
      %v5003 = vadd.f32 0.0, %v5002
      %v5004 = vpop.f32.mrb[0].mxu0
      %v5005 = vpop.f32.mrb[0].mxu0
      %v5006 = vadd.f32 0.0, %v5005
      %v5007 = vpop.f32.mrb[0].mxu0
      %5008 = vmatprep.mubr.bf16.mxu0 0
      %5009 = vmatmul.mubr.bf16.gmra.mrb[0].mxu0 %v1503
      %v5010 = vpop.f32.mrb[0].mxu0
      %v5011 = vadd.f32 0.0, %v5010
      %v5012 = vpop.f32.mrb[0].mxu0
      %v5013 = vpop.f32.mrb[0].mxu0
      %v5014 = vadd.f32 0.0, %v5013
      %v5015 = vpop.f32.mrb[0].mxu0
      %5016 = vmatprep.mubr.bf16.mxu0 0
      %5017 = vmatmul.mubr.bf16.gmra.mrb[0].mxu0 %v1504
      %v5018 = vpop.f32.mrb[0].mxu0
      %v5019 = vadd.f32 0.0, %v5018
      %v5020 = vpop.f32.mrb[0].mxu0
      %v5021 = vpop.f32.mrb[0].mxu0
      %v5022 = vadd.f32 0.0, %v5021
      %v5023 = vpop.f32.mrb[0].mxu0
      %5024 = vmatprep.mubr.bf16.mxu0 0
      %5025 = vmatmul.mubr.bf16.gmra.mrb[0].mxu0 %v1505
      %v5026 = vpop.f32.mrb[0].mxu0
      %v5027 = vadd.f32 0.0, %v5026
      %v5028 = vpop.f32.mrb[0].mxu0
      %v5029 = vpop.f32.mrb[0].mxu0
      %v5030 = vadd.f32 0.0, %v5029
      %v5031 = vpop.f32.mrb[0].mxu0
      %5032 = vmatprep.mubr.bf16.mxu0 0
      %5033 = vmatmul.mubr.bf16.gmra.mrb[0].mxu0 %v1506
      %v5034 = vpop.f32.mrb[0].mxu0
      %v5035 = vadd.f32 0.0, %v5034
      %v5036 = vpop.f32.mrb[0].mxu0
      %v5037 = vpop.f32.mrb[0].mxu0
      %v5038 = vadd.f32 0.0, %v5037
      %v5039 = vpop.f32.mrb[0].mxu0
      %5040 = vmatprep.mubr.bf16.mxu0 0
      %5041 = vmatmul.mubr.bf16.gmra.mrb[0].mxu0 %v1507
      %v5042 = vpop.f32.mrb[0].mxu0
      %v5043 = vadd.f32 0.0, %v5042
      %v5044 = vpop.f32.mrb[0].mxu0
      %v5045 = vpop.f32.mrb[0].mxu0
      %v5046 = vadd.f32 0.0, %v5045
      %v5047 = vpop.f32.mrb[0].mxu0
      %5048 = vmatprep.mubr.bf16.mxu0 0
      %5049 = vmatmul.mubr.bf16.gmra.mrb[0].mxu0 %v1508
      %v5050 = vpop.f32.mrb[0].mxu0
      %v5051 = vadd.f32 0.0, %v5050
      %v5052 = vpop.f32.mrb[0].mxu0
      %v5053 = vpop.f32.mrb[0].mxu0
      %v5054 = vadd.f32 0.0, %v5053
      %v5055 = vpop.f32.mrb[0].mxu0
      %5056 = vmatprep.mubr.bf16.mxu0 0
      %5057 = vmatmul.mubr.bf16.gmra.mrb[0].mxu0 %v1509
      %v5058 = vpop.f32.mrb[0].mxu0
      %v5059 = vadd.f32 0.0, %v5058
      %v5060 = vpop.f32.mrb[0].mxu0
      %v5061 = vpop.f32.mrb[0].mxu0
      %v5062 = vadd.f32 0.0, %v5061
      %v5063 = vpop.f32.mrb[0].mxu0
      %5064 = vmatprep.mubr.bf16.mxu0 0
      %5065 = vmatmul.mubr.bf16.gmra.mrb[0].mxu0 %v1510
      %v5066 = vpop.f32.mrb[0].mxu0
      %v5067 = vadd.f32 0.0, %v5066
      %v5068 = vpop.f32.mrb[0].mxu0
      %v5069 = vpop.f32.mrb[0].mxu0
      %v5070 = vadd.f32 0.0, %v5069
      %v5071 = vpop.f32.mrb[0].mxu0
      %5072 = vmatprep.mubr.bf16.mxu0 0
      %5073 = vmatmul.mubr.bf16.gmra.mrb[0].mxu0 %v1511
      %v5074 = vpop.f32.mrb[0].mxu0
      %v5075 = vadd.f32 0.0, %v5074
      %v5076 = vpop.f32.mrb[0].mxu0
      %v5077 = vpop.f32.mrb[0].mxu0
      %v5078 = vadd.f32 0.0, %v5077
      %v5079 = vpop.f32.mrb[0].mxu0
      %5080 = vdwg.mxu0
      %v5081 = vadd.f32 %v4663, %v4827
      %v5082 = vadd.f32 %v4664, %v4830
      %v5083 = vadd.f32 %v4665, %v4835
      %v5084 = vadd.f32 %v4666, %v4838
      %v5085 = vadd.f32 %v4667, %v4843
      %v5086 = vadd.f32 %v4668, %v4846
      %v5087 = vadd.f32 %v4669, %v4851
      %v5088 = vadd.f32 %v4670, %v4854
      %v5089 = vadd.f32 %v4671, %v4859
      %v5090 = vadd.f32 %v4672, %v4862
      %v5091 = vadd.f32 %v4673, %v4867
      %v5092 = vadd.f32 %v4674, %v4870
      %v5093 = vadd.f32 %v4675, %v4875
      %v5094 = vadd.f32 %v4676, %v4878
      %v5095 = vadd.f32 %v4677, %v4883
      %v5096 = vadd.f32 %v4678, %v4886
      %v5097 = vadd.f32 %v4679, %v4891
      %v5098 = vadd.f32 %v4680, %v4894
      %v5099 = vadd.f32 %v4681, %v4899
      %v5100 = vadd.f32 %v4682, %v4902
      %v5101 = vadd.f32 %v4683, %v4907
      %v5102 = vadd.f32 %v4684, %v4910
      %v5103 = vadd.f32 %v4685, %v4915
      %v5104 = vadd.f32 %v4686, %v4918
      %v5105 = vadd.f32 %v4687, %v4923
      %v5106 = vadd.f32 %v4688, %v4926
      %v5107 = vadd.f32 %v4689, %v4931
      %v5108 = vadd.f32 %v4690, %v4934
      %v5109 = vadd.f32 %v4691, %v4939
      %v5110 = vadd.f32 %v4692, %v4942
      %v5111 = vadd.f32 %v4693, %v4947
      %v5112 = vadd.f32 %v4694, %v4950
      %v5113 = vadd.f32 %v4695, %v4955
      %v5114 = vadd.f32 %v4696, %v4958
      %v5115 = vadd.f32 %v4697, %v4963
      %v5116 = vadd.f32 %v4698, %v4966
      %v5117 = vadd.f32 %v4699, %v4971
      %v5118 = vadd.f32 %v4700, %v4974
      %v5119 = vadd.f32 %v4701, %v4979
      %v5120 = vadd.f32 %v4702, %v4982
      %v5121 = vadd.f32 %v4703, %v4987
      %v5122 = vadd.f32 %v4704, %v4990
      %v5123 = vadd.f32 %v4705, %v4995
      %v5124 = vadd.f32 %v4706, %v4998
      %v5125 = vadd.f32 %v4707, %v5003
      %v5126 = vadd.f32 %v4708, %v5006
      %v5127 = vadd.f32 %v4709, %v5011
      %v5128 = vadd.f32 %v4710, %v5014
      %v5129 = vadd.f32 %v4711, %v5019
      %v5130 = vadd.f32 %v4712, %v5022
      %v5131 = vadd.f32 %v4713, %v5027
      %v5132 = vadd.f32 %v4714, %v5030
      %v5133 = vadd.f32 %v4715, %v5035
      %v5134 = vadd.f32 %v4716, %v5038
      %v5135 = vadd.f32 %v4717, %v5043
      %v5136 = vadd.f32 %v4718, %v5046
      %v5137 = vadd.f32 %v4719, %v5051
      %v5138 = vadd.f32 %v4720, %v5054
      %v5139 = vadd.f32 %v4721, %v5059
      %v5140 = vadd.f32 %v4722, %v5062
      %v5141 = vadd.f32 %v4723, %v5067
      %v5142 = vadd.f32 %v4724, %v5070
      %v5143 = vadd.f32 %v4725, %v5075
      %v5144 = vadd.f32 %v4726, %v5078
      %v5145 = vld [vmem:[%s225] sm:$0x1]
      %v5147 = vlaneseq
      %v5148 = vshrl.u32 %v5147, 7
      %v5149 = vsub.s32 0, %v5148
      %v5150 = vrot.slane %v5145, %v5149
      %v5152 = vadd.f32 %v5081, %v5150
      %v5153 = vadd.f32 %v5082, %v5150
      %v5154 = vadd.f32 %v5083, %v5150
      %v5155 = vadd.f32 %v5084, %v5150
      %v5156 = vadd.f32 %v5085, %v5150
      %v5157 = vadd.f32 %v5086, %v5150
      %v5158 = vadd.f32 %v5087, %v5150
      %v5159 = vadd.f32 %v5088, %v5150
      %v5160 = vadd.f32 %v5089, %v5150
      %v5161 = vadd.f32 %v5090, %v5150
      %v5162 = vadd.f32 %v5091, %v5150
      %v5163 = vadd.f32 %v5092, %v5150
      %v5164 = vadd.f32 %v5093, %v5150
      %v5165 = vadd.f32 %v5094, %v5150
      %v5166 = vadd.f32 %v5095, %v5150
      %v5167 = vadd.f32 %v5096, %v5150
      %v5168 = vadd.f32 %v5097, %v5150
      %v5169 = vadd.f32 %v5098, %v5150
      %v5170 = vadd.f32 %v5099, %v5150
      %v5171 = vadd.f32 %v5100, %v5150
      %v5172 = vadd.f32 %v5101, %v5150
      %v5173 = vadd.f32 %v5102, %v5150
      %v5174 = vadd.f32 %v5103, %v5150
      %v5175 = vadd.f32 %v5104, %v5150
      %v5176 = vadd.f32 %v5105, %v5150
      %v5177 = vadd.f32 %v5106, %v5150
      %v5178 = vadd.f32 %v5107, %v5150
      %v5179 = vadd.f32 %v5108, %v5150
      %v5180 = vadd.f32 %v5109, %v5150
      %v5181 = vadd.f32 %v5110, %v5150
      %v5182 = vadd.f32 %v5111, %v5150
      %v5183 = vadd.f32 %v5112, %v5150
      %v5184 = vadd.f32 %v5113, %v5150
      %v5185 = vadd.f32 %v5114, %v5150
      %v5186 = vadd.f32 %v5115, %v5150
      %v5187 = vadd.f32 %v5116, %v5150
      %v5188 = vadd.f32 %v5117, %v5150
      %v5189 = vadd.f32 %v5118, %v5150
      %v5190 = vadd.f32 %v5119, %v5150
      %v5191 = vadd.f32 %v5120, %v5150
      %v5192 = vadd.f32 %v5121, %v5150
      %v5193 = vadd.f32 %v5122, %v5150
      %v5194 = vadd.f32 %v5123, %v5150
      %v5195 = vadd.f32 %v5124, %v5150
      %v5196 = vadd.f32 %v5125, %v5150
      %v5197 = vadd.f32 %v5126, %v5150
      %v5198 = vadd.f32 %v5127, %v5150
      %v5199 = vadd.f32 %v5128, %v5150
      %v5200 = vadd.f32 %v5129, %v5150
      %v5201 = vadd.f32 %v5130, %v5150
      %v5202 = vadd.f32 %v5131, %v5150
      %v5203 = vadd.f32 %v5132, %v5150
      %v5204 = vadd.f32 %v5133, %v5150
      %v5205 = vadd.f32 %v5134, %v5150
      %v5206 = vadd.f32 %v5135, %v5150
      %v5207 = vadd.f32 %v5136, %v5150
      %v5208 = vadd.f32 %v5137, %v5150
      %v5209 = vadd.f32 %v5138, %v5150
      %v5210 = vadd.f32 %v5139, %v5150
      %v5211 = vadd.f32 %v5140, %v5150
      %v5212 = vadd.f32 %v5141, %v5150
      %v5213 = vadd.f32 %v5142, %v5150
      %v5214 = vadd.f32 %v5143, %v5150
      %v5215 = vadd.f32 %v5144, %v5150
      %v5216 = vmax.f32 %v5152, 0.0
      %v5217 = vmax.f32 %v5153, 0.0
      %v5218 = vmax.f32 %v5154, 0.0
      %v5219 = vmax.f32 %v5155, 0.0
      %v5220 = vmax.f32 %v5156, 0.0
      %v5221 = vmax.f32 %v5157, 0.0
      %v5222 = vmax.f32 %v5158, 0.0
      %v5223 = vmax.f32 %v5159, 0.0
      %v5224 = vmax.f32 %v5160, 0.0
      %v5225 = vmax.f32 %v5161, 0.0
      %v5226 = vmax.f32 %v5162, 0.0
      %v5227 = vmax.f32 %v5163, 0.0
      %v5228 = vmax.f32 %v5164, 0.0
      %v5229 = vmax.f32 %v5165, 0.0
      %v5230 = vmax.f32 %v5166, 0.0
      %v5231 = vmax.f32 %v5167, 0.0
      %v5232 = vmax.f32 %v5168, 0.0
      %v5233 = vmax.f32 %v5169, 0.0
      %v5234 = vmax.f32 %v5170, 0.0
      %v5235 = vmax.f32 %v5171, 0.0
      %v5236 = vmax.f32 %v5172, 0.0
      %v5237 = vmax.f32 %v5173, 0.0
      %v5238 = vmax.f32 %v5174, 0.0
      %v5239 = vmax.f32 %v5175, 0.0
      %v5240 = vmax.f32 %v5176, 0.0
      %v5241 = vmax.f32 %v5177, 0.0
      %v5242 = vmax.f32 %v5178, 0.0
      %v5243 = vmax.f32 %v5179, 0.0
      %v5244 = vmax.f32 %v5180, 0.0
      %v5245 = vmax.f32 %v5181, 0.0
      %v5246 = vmax.f32 %v5182, 0.0
      %v5247 = vmax.f32 %v5183, 0.0
      %v5248 = vmax.f32 %v5184, 0.0
      %v5249 = vmax.f32 %v5185, 0.0
      %v5250 = vmax.f32 %v5186, 0.0
      %v5251 = vmax.f32 %v5187, 0.0
      %v5252 = vmax.f32 %v5188, 0.0
      %v5253 = vmax.f32 %v5189, 0.0
      %v5254 = vmax.f32 %v5190, 0.0
      %v5255 = vmax.f32 %v5191, 0.0
      %v5256 = vmax.f32 %v5192, 0.0
      %v5257 = vmax.f32 %v5193, 0.0
      %v5258 = vmax.f32 %v5194, 0.0
      %v5259 = vmax.f32 %v5195, 0.0
      %v5260 = vmax.f32 %v5196, 0.0
      %v5261 = vmax.f32 %v5197, 0.0
      %v5262 = vmax.f32 %v5198, 0.0
      %v5263 = vmax.f32 %v5199, 0.0
      %v5264 = vmax.f32 %v5200, 0.0
      %v5265 = vmax.f32 %v5201, 0.0
      %v5266 = vmax.f32 %v5202, 0.0
      %v5267 = vmax.f32 %v5203, 0.0
      %v5268 = vmax.f32 %v5204, 0.0
      %v5269 = vmax.f32 %v5205, 0.0
      %v5270 = vmax.f32 %v5206, 0.0
      %v5271 = vmax.f32 %v5207, 0.0
      %v5272 = vmax.f32 %v5208, 0.0
      %v5273 = vmax.f32 %v5209, 0.0
      %v5274 = vmax.f32 %v5210, 0.0
      %v5275 = vmax.f32 %v5211, 0.0
      %v5276 = vmax.f32 %v5212, 0.0
      %v5277 = vmax.f32 %v5213, 0.0
      %v5278 = vmax.f32 %v5214, 0.0
      %v5279 = vmax.f32 %v5215, 0.0
      %s5280 = scalar_lea.vmem [#allocation2], 16
      %5281 = vst [vmem:[%s5280] sm:$0xff] %v5216
      %5282 = vst [vmem:[%s5280 + $0x8] sm:$0xff] %v5217
      %5283 = vst [vmem:[%s5280 + $0x10] sm:$0xff] %v5218
      %5284 = vst [vmem:[%s5280 + $0x18] sm:$0xff] %v5219
      %5285 = vst [vmem:[%s5280 + $0x20] sm:$0xff] %v5220
      %5286 = vst [vmem:[%s5280 + $0x28] sm:$0xff] %v5221
      %5287 = vst [vmem:[%s5280 + $0x30] sm:$0xff] %v5222
      %5288 = vst [vmem:[%s5280 + $0x38] sm:$0xff] %v5223
      %5289 = vst [vmem:[%s5280 + $0x40] sm:$0xff] %v5224
      %5290 = vst [vmem:[%s5280 + $0x48] sm:$0xff] %v5225
      %5291 = vst [vmem:[%s5280 + $0x50] sm:$0xff] %v5226
      %5292 = vst [vmem:[%s5280 + $0x58] sm:$0xff] %v5227
      %5293 = vst [vmem:[%s5280 + $0x60] sm:$0xff] %v5228
      %5294 = vst [vmem:[%s5280 + $0x68] sm:$0xff] %v5229
      %5295 = vst [vmem:[%s5280 + $0x70] sm:$0xff] %v5230
      %5296 = vst [vmem:[%s5280 + $0x78] sm:$0xff] %v5231
      %5297 = vst [vmem:[%s5280 + $0x80] sm:$0xff] %v5232
      %5298 = vst [vmem:[%s5280 + $0x88] sm:$0xff] %v5233
      %5299 = vst [vmem:[%s5280 + $0x90] sm:$0xff] %v5234
      %5300 = vst [vmem:[%s5280 + $0x98] sm:$0xff] %v5235
      %5301 = vst [vmem:[%s5280 + $0xa0] sm:$0xff] %v5236
      %5302 = vst [vmem:[%s5280 + $0xa8] sm:$0xff] %v5237
      %5303 = vst [vmem:[%s5280 + $0xb0] sm:$0xff] %v5238
      %5304 = vst [vmem:[%s5280 + $0xb8] sm:$0xff] %v5239
      %5305 = vst [vmem:[%s5280 + $0xc0] sm:$0xff] %v5240
      %5306 = vst [vmem:[%s5280 + $0xc8] sm:$0xff] %v5241
      %5307 = vst [vmem:[%s5280 + $0xd0] sm:$0xff] %v5242
      %5308 = vst [vmem:[%s5280 + $0xd8] sm:$0xff] %v5243
      %5309 = vst [vmem:[%s5280 + $0xe0] sm:$0xff] %v5244
      %5310 = vst [vmem:[%s5280 + $0xe8] sm:$0xff] %v5245
      %5311 = vst [vmem:[%s5280 + $0xf0] sm:$0xff] %v5246
      %5312 = vst [vmem:[%s5280 + $0xf8] sm:$0xff] %v5247
      %5313 = vst [vmem:[%s5280 + $0x120] sm:$0xff] %v5248
      %5314 = vst [vmem:[%s5280 + $0x128] sm:$0xff] %v5249
      %5315 = vst [vmem:[%s5280 + $0x130] sm:$0xff] %v5250
      %5316 = vst [vmem:[%s5280 + $0x138] sm:$0xff] %v5251
      %5317 = vst [vmem:[%s5280 + $0x140] sm:$0xff] %v5252
      %5318 = vst [vmem:[%s5280 + $0x148] sm:$0xff] %v5253
      %5319 = vst [vmem:[%s5280 + $0x150] sm:$0xff] %v5254
      %5320 = vst [vmem:[%s5280 + $0x158] sm:$0xff] %v5255
      %5321 = vst [vmem:[%s5280 + $0x160] sm:$0xff] %v5256
      %5322 = vst [vmem:[%s5280 + $0x168] sm:$0xff] %v5257
      %5323 = vst [vmem:[%s5280 + $0x170] sm:$0xff] %v5258
      %5324 = vst [vmem:[%s5280 + $0x178] sm:$0xff] %v5259
      %5325 = vst [vmem:[%s5280 + $0x180] sm:$0xff] %v5260
      %5326 = vst [vmem:[%s5280 + $0x188] sm:$0xff] %v5261
      %5327 = vst [vmem:[%s5280 + $0x190] sm:$0xff] %v5262
      %5328 = vst [vmem:[%s5280 + $0x198] sm:$0xff] %v5263
      %5329 = vst [vmem:[%s5280 + $0x1a0] sm:$0xff] %v5264
      %5330 = vst [vmem:[%s5280 + $0x1a8] sm:$0xff] %v5265
      %5331 = vst [vmem:[%s5280 + $0x1b0] sm:$0xff] %v5266
      %5332 = vst [vmem:[%s5280 + $0x1b8] sm:$0xff] %v5267
      %5333 = vst [vmem:[%s5280 + $0x1c0] sm:$0xff] %v5268
      %5334 = vst [vmem:[%s5280 + $0x1c8] sm:$0xff] %v5269
      %5335 = vst [vmem:[%s5280 + $0x1d0] sm:$0xff] %v5270
      %5336 = vst [vmem:[%s5280 + $0x1d8] sm:$0xff] %v5271
      %5337 = vst [vmem:[%s5280 + $0x1e0] sm:$0xff] %v5272
      %5338 = vst [vmem:[%s5280 + $0x1e8] sm:$0xff] %v5273
      %5339 = vst [vmem:[%s5280 + $0x1f0] sm:$0xff] %v5274
      %5340 = vst [vmem:[%s5280 + $0x1f8] sm:$0xff] %v5275
      %5341 = vst [vmem:[%s5280 + $0x200] sm:$0xff] %v5276
      %5342 = vst [vmem:[%s5280 + $0x208] sm:$0xff] %v5277
      %5343 = vst [vmem:[%s5280 + $0x210] sm:$0xff] %v5278
      %5344 = vst [vmem:[%s5280 + $0x218] sm:$0xff] %v5279
      %p5345 = scmp.eq.s32.totalorder %s18, 2
      // Predicated region
      $region49: #{_train.1} parent=39 // pred_check
        %p5346 = pneg %p5345
      $region50: #{_train.1} parent=39 // pred_check_branch
        %5348 = sbr.rel (%p5346) target = $region52
      $region51: #{_train.1} parent=39 // pred_region
        %5349 = vst [vmem:[%s5] sm:$0xff] %v5216
        %5350 = vst [vmem:[%s5 + $0x8] sm:$0xff] %v5217
        %5351 = vst [vmem:[%s5 + $0x10] sm:$0xff] %v5218
        %5352 = vst [vmem:[%s5 + $0x18] sm:$0xff] %v5219
        %5353 = vst [vmem:[%s5 + $0x20] sm:$0xff] %v5220
        %5354 = vst [vmem:[%s5 + $0x28] sm:$0xff] %v5221
        %5355 = vst [vmem:[%s5 + $0x30] sm:$0xff] %v5222
        %5356 = vst [vmem:[%s5 + $0x38] sm:$0xff] %v5223
        %5357 = vst [vmem:[%s5 + $0x40] sm:$0xff] %v5224
        %5358 = vst [vmem:[%s5 + $0x48] sm:$0xff] %v5225
        %5359 = vst [vmem:[%s5 + $0x50] sm:$0xff] %v5226
        %5360 = vst [vmem:[%s5 + $0x58] sm:$0xff] %v5227
        %5361 = vst [vmem:[%s5 + $0x60] sm:$0xff] %v5228
        %5362 = vst [vmem:[%s5 + $0x68] sm:$0xff] %v5229
        %5363 = vst [vmem:[%s5 + $0x70] sm:$0xff] %v5230
        %5364 = vst [vmem:[%s5 + $0x78] sm:$0xff] %v5231
        %5365 = vst [vmem:[%s5 + $0x80] sm:$0xff] %v5232
        %5366 = vst [vmem:[%s5 + $0x88] sm:$0xff] %v5233
        %5367 = vst [vmem:[%s5 + $0x90] sm:$0xff] %v5234
        %5368 = vst [vmem:[%s5 + $0x98] sm:$0xff] %v5235
        %5369 = vst [vmem:[%s5 + $0xa0] sm:$0xff] %v5236
        %5370 = vst [vmem:[%s5 + $0xa8] sm:$0xff] %v5237
        %5371 = vst [vmem:[%s5 + $0xb0] sm:$0xff] %v5238
        %5372 = vst [vmem:[%s5 + $0xb8] sm:$0xff] %v5239
        %5373 = vst [vmem:[%s5 + $0xc0] sm:$0xff] %v5240
        %5374 = vst [vmem:[%s5 + $0xc8] sm:$0xff] %v5241
        %5375 = vst [vmem:[%s5 + $0xd0] sm:$0xff] %v5242
        %5376 = vst [vmem:[%s5 + $0xd8] sm:$0xff] %v5243
        %5377 = vst [vmem:[%s5 + $0xe0] sm:$0xff] %v5244
        %5378 = vst [vmem:[%s5 + $0xe8] sm:$0xff] %v5245
        %5379 = vst [vmem:[%s5 + $0xf0] sm:$0xff] %v5246
        %5380 = vst [vmem:[%s5 + $0xf8] sm:$0xff] %v5247
        %5381 = vst [vmem:[%s5 + $0x100] sm:$0xff] %v5248
        %5382 = vst [vmem:[%s5 + $0x108] sm:$0xff] %v5249
        %5383 = vst [vmem:[%s5 + $0x110] sm:$0xff] %v5250
        %5384 = vst [vmem:[%s5 + $0x118] sm:$0xff] %v5251
        %5385 = vst [vmem:[%s5 + $0x120] sm:$0xff] %v5252
        %5386 = vst [vmem:[%s5 + $0x128] sm:$0xff] %v5253
        %5387 = vst [vmem:[%s5 + $0x130] sm:$0xff] %v5254
        %5388 = vst [vmem:[%s5 + $0x138] sm:$0xff] %v5255
        %5389 = vst [vmem:[%s5 + $0x140] sm:$0xff] %v5256
        %5390 = vst [vmem:[%s5 + $0x148] sm:$0xff] %v5257
        %5391 = vst [vmem:[%s5 + $0x150] sm:$0xff] %v5258
        %5392 = vst [vmem:[%s5 + $0x158] sm:$0xff] %v5259
        %5393 = vst [vmem:[%s5 + $0x160] sm:$0xff] %v5260
        %5394 = vst [vmem:[%s5 + $0x168] sm:$0xff] %v5261
        %5395 = vst [vmem:[%s5 + $0x170] sm:$0xff] %v5262
        %5396 = vst [vmem:[%s5 + $0x178] sm:$0xff] %v5263
        %5397 = vst [vmem:[%s5 + $0x180] sm:$0xff] %v5264
        %5398 = vst [vmem:[%s5 + $0x188] sm:$0xff] %v5265
        %5399 = vst [vmem:[%s5 + $0x190] sm:$0xff] %v5266
        %5400 = vst [vmem:[%s5 + $0x198] sm:$0xff] %v5267
        %5401 = vst [vmem:[%s5 + $0x1a0] sm:$0xff] %v5268
        %5402 = vst [vmem:[%s5 + $0x1a8] sm:$0xff] %v5269
        %5403 = vst [vmem:[%s5 + $0x1b0] sm:$0xff] %v5270
        %5404 = vst [vmem:[%s5 + $0x1b8] sm:$0xff] %v5271
        %5405 = vst [vmem:[%s5 + $0x1c0] sm:$0xff] %v5272
        %5406 = vst [vmem:[%s5 + $0x1c8] sm:$0xff] %v5273
        %5407 = vst [vmem:[%s5 + $0x1d0] sm:$0xff] %v5274
        %5408 = vst [vmem:[%s5 + $0x1d8] sm:$0xff] %v5275
        %5409 = vst [vmem:[%s5 + $0x1e0] sm:$0xff] %v5276
        %5410 = vst [vmem:[%s5 + $0x1e8] sm:$0xff] %v5277
        %5411 = vst [vmem:[%s5 + $0x1f0] sm:$0xff] %v5278
        %5412 = vst [vmem:[%s5 + $0x1f8] sm:$0xff] %v5279
      $region52: #{_train.1} parent=39 // pred_fallthru
        _
      // Predicated region
      $region53: #{_train.1} parent=39 // pred_check
        %p5413 = pneg %p146
      $region54: #{_train.1} parent=39 // pred_check_branch
        %5415 = sbr.rel (%p5413) target = $region56
      $region55: #{_train.1} parent=39 // pred_region
        _
      $region56: #{_train.1} parent=39 // pred_fallthru
        _
      // Predicated region
      $region57: #{_train.1} parent=39 // pred_check
        %p5416 = pneg %p146
      $region58: #{_train.1} parent=39 // pred_check_branch
        %5418 = sbr.rel (%p5416) target = $region60
      $region59: #{_train.1} parent=39 // pred_region
        _
      $region60: #{_train.1} parent=39 // pred_fallthru
        _
    $region40: #{_train.1} parent=5 // pred_fallthru
      _
    %p5419 = scmp.le.s32.totalorder 2, %s13
    // Predicated region
    $region61: #{_train.1} parent=5 // pred_check
      %p5420 = pneg %p5419
    $region62: #{_train.1} parent=5 // pred_check_branch
      %5422 = sbr.rel (%p5420) target = $region64
    $region63: #{_train.1} parent=5 // pred_region
      %s5423 = ssub.s32 %s13, 2
    $region64: #{_train.1} parent=5 // pred_fallthru
      _
  $region6: #{_train.1} parent=0 // loop_footer
    %s17 = sadd.s32 1, %s13
  $region7: #{_train.1} parent=0 // loop_footer_branch
    %12 = sbr.rel target = $region3
  $region8: #{_train.1} parent=0 // loop_exit
    _

</llo_original>
